<compile_context>
chip_gen: v7x
topology: tpu7x:2x2x1
jax: 0.10.0
libtpu: 0.0.40
codegen_flags: <defaults>
</compile_context>

<pallas_src>
import functools
import math

import jax
import jax.numpy as jnp
from jax.experimental import pallas as pl
from jax.experimental.pallas import tpu as pltpu


# ----------------------------- kernel ---------------------------------------

def _gelu_tanh(x):
    c = math.sqrt(2.0 / math.pi)
    return 0.5 * x * (1.0 + jnp.tanh(c * (x + 0.044715 * x * x * x)))


def _layernorm(v, gamma, beta, eps=1e-5):
    mu = jnp.mean(v, axis=-1, keepdims=True)
    var = jnp.mean((v - mu) * (v - mu), axis=-1, keepdims=True)
    return (v - mu) * jax.lax.rsqrt(var + eps) * gamma + beta


def _bf16(x):
    return x.astype(jnp.bfloat16)


def _text_feature_kernel(
    x_ref,                                # [B, D_in]            f32
    w_in_ref, b_in_ref,                   # [D_in, H] bf16, [1, H] f32
    wv_ref, bv_ref, wo_ref, bo_ref,       # [L,H,H] bf16, [L,1,H] f32, ...
    ln1g_ref, ln1b_ref,                   # [L,1,H] f32
    wf1_ref, bf1_ref, wf2_ref, bf2_ref,   # [L,H,4H] bf16, [L,1,4H] f32, ...
    ln2g_ref, ln2b_ref,                   # [L,1,H] f32
    w_out_ref, b_out_ref,                 # [H, TN] bf16, [1, TN] f32   (streamed tiles)
    out_ref,                              # [B, TN] f32                  (streamed tiles)
    *, num_layers,
):
    # Straight-line body.  The transformer part (M = batch, a handful of tiny MXU
    # launches) is recomputed per output tile so every grid step is independent
    # ("parallel" grid axis -> both v7x TensorCores can take tiles).
    x = x_ref[...]

    # input projection (dropout is identity in eval)
    h = jnp.dot(_bf16(x), w_in_ref[...],
                preferred_element_type=jnp.float32) + b_in_ref[...]

    # transformer blocks, sequence length == 1 (fully unrolled; L is tiny)
    for l in range(num_layers):
        # single-token self-attention: softmax(QK^T) == 1
        #   => attn = out_proj(v_proj(h))   (exact)
        v = jnp.dot(_bf16(h), wv_ref[l],
                    preferred_element_type=jnp.float32) + bv_ref[l]
        attn = jnp.dot(_bf16(v), wo_ref[l],
                       preferred_element_type=jnp.float32) + bo_ref[l]
        h = _layernorm(h + attn, ln1g_ref[l], ln1b_ref[l])

        # feed-forward: Linear -> GELU -> Linear (dropouts are identity)
        f = jnp.dot(_bf16(h), wf1_ref[l],
                    preferred_element_type=jnp.float32) + bf1_ref[l]
        f = _gelu_tanh(f)
        f = jnp.dot(_bf16(f), wf2_ref[l],
                    preferred_element_type=jnp.float32) + bf2_ref[l]
        h = _layernorm(h + f, ln2g_ref[l], ln2b_ref[l])

    # output projection tile + tanh * (8/255)   (single bf16 cast of the hidden state)
    p = jnp.dot(_bf16(h), w_out_ref[...],
                preferred_element_type=jnp.float32) + b_out_ref[...]
    out_ref[...] = jnp.tanh(p) * (8.0 / 255.0)


# ----------------------------- parameters ------------------------------------

def init_params(key, input_dim=768, hidden_dim=128, num_layers=2, out_dim=3 * 32 * 32):
    """Deterministic synthetic parameters (weights ~ N(0,0.02) in bf16, biases 0)."""
    ks = jax.random.split(key, 6)
    s = 0.02
    f32, bf16 = jnp.float32, jnp.bfloat16
    L, H = num_layers, hidden_dim
    return dict(
        w_in=(jax.random.normal(ks[0], (input_dim, H), f32) * s).astype(bf16),
        b_in=jnp.zeros((1, H), f32),
        wv=(jax.random.normal(ks[1], (L, H, H), f32) * s).astype(bf16),
        bv=jnp.zeros((L, 1, H), f32),
        wo=(jax.random.normal(ks[2], (L, H, H), f32) * s).astype(bf16),
        bo=jnp.zeros((L, 1, H), f32),
        ln1g=jnp.ones((L, 1, H), f32),
        ln1b=jnp.zeros((L, 1, H), f32),
        wf1=(jax.random.normal(ks[3], (L, H, 4 * H), f32) * s).astype(bf16),
        bf1=jnp.zeros((L, 1, 4 * H), f32),
        wf2=(jax.random.normal(ks[4], (L, 4 * H, H), f32) * s).astype(bf16),
        bf2=jnp.zeros((L, 1, H), f32),
        ln2g=jnp.ones((L, 1, H), f32),
        ln2b=jnp.zeros((L, 1, H), f32),
        w_out=(jax.random.normal(ks[5], (H, out_dim), f32) * s).astype(bf16),
        b_out=jnp.zeros((1, out_dim), f32),
    )


# ----------------------------- wrapper ---------------------------------------

def text_feature_extractor(text_embeddings, target_shape, params, num_layers,
                           tile_n=None):
    B, C, Hh, Ww = target_shape
    D_in = text_embeddings.shape[1]
    Hdim = params["w_in"].shape[1]
    out_dim = params["w_out"].shape[1]
    L = num_layers

    # Lane-dense output tiling over the projection N axis.  Default: 2 tiles
    # (one per v7x TensorCore; DMA overlap of the two w_out halves on v5e; a single
    # extra grid step on v6e).  Fall back to one full-width tile if it doesn't
    # divide cleanly or the caller asks for tile_n >= out_dim.
    if tile_n is None:
        tile_n = out_dim // 2 if (out_dim % 2 == 0 and (out_dim // 2) % 128 == 0) else out_dim
    if tile_n >= out_dim or out_dim % tile_n != 0 or tile_n % 128 != 0:
        tile_n = out_dim
    n_tiles = out_dim // tile_n

    # NOTE: the 15 constant-index inputs below could be single-buffered via
    # pipeline_mode=pl.Buffered(1); skipped here (VMEM footprint is only ~2 MiB).
    in_specs = [
        pl.BlockSpec((B, D_in), lambda j: (0, 0)),                 # x
        pl.BlockSpec((D_in, Hdim), lambda j: (0, 0)),              # w_in
        pl.BlockSpec((1, Hdim), lambda j: (0, 0)),                 # b_in
        pl.BlockSpec((L, Hdim, Hdim), lambda j: (0, 0, 0)),        # wv
        pl.BlockSpec((L, 1, Hdim), lambda j: (0, 0, 0)),           # bv
        pl.BlockSpec((L, Hdim, Hdim), lambda j: (0, 0, 0)),        # wo
        pl.BlockSpec((L, 1, Hdim), lambda j: (0, 0, 0)),           # bo
        pl.BlockSpec((L, 1, Hdim), lambda j: (0, 0, 0)),           # ln1g
        pl.BlockSpec((L, 1, Hdim), lambda j: (0, 0, 0)),           # ln1b
        pl.BlockSpec((L, Hdim, 4 * Hdim), lambda j: (0, 0, 0)),    # wf1
        pl.BlockSpec((L, 1, 4 * Hdim), lambda j: (0, 0, 0)),       # bf1
        pl.BlockSpec((L, 4 * Hdim, Hdim), lambda j: (0, 0, 0)),    # wf2
        pl.BlockSpec((L, 1, Hdim), lambda j: (0, 0, 0)),           # bf2
        pl.BlockSpec((L, 1, Hdim), lambda j: (0, 0, 0)),           # ln2g
        pl.BlockSpec((L, 1, Hdim), lambda j: (0, 0, 0)),           # ln2b
        pl.BlockSpec((Hdim, tile_n), lambda j: (0, j)),            # w_out (streamed)
        pl.BlockSpec((1, tile_n), lambda j: (0, j)),               # b_out (streamed)
    ]
    out_spec = pl.BlockSpec((B, tile_n), lambda j: (0, j))

    kernel = functools.partial(_text_feature_kernel, num_layers=num_layers)

    flat = pl.pallas_call(
        kernel,
        out_shape=jax.ShapeDtypeStruct((B, out_dim), jnp.float32),
        grid_spec=pltpu.PrefetchScalarGridSpec(
            num_scalar_prefetch=0,
            grid=(n_tiles,),
            in_specs=in_specs,
            out_specs=out_spec,
        ),
        compiler_params=pltpu.CompilerParams(
            # Every grid step is self-contained (transformer recomputed per tile),
            # so the axis is truly parallel -> both TensorCores on v7x.
            dimension_semantics=("parallel",),
            vmem_limit_bytes=32 << 20,   # actual footprint ~2-3 MiB; ample headroom
        ),
    )(
        text_embeddings,
        params["w_in"], params["b_in"],
        params["wv"], params["bv"], params["wo"], params["bo"],
        params["ln1g"], params["ln1b"],
        params["wf1"], params["bf1"], params["wf2"], params["bf2"],
        params["ln2g"], params["ln2b"],
        params["w_out"], params["b_out"],
    )

    # Glue: truncate / zero-pad to the requested size (tanh(0)*8/255 == 0, so
    # zero-padding after the in-kernel tanh matches the PyTorch pad-then-tanh path).
    expected = C * Hh * Ww
    if out_dim > expected:
        flat = flat[:, :expected]
    elif out_dim < expected:
        flat = jnp.concatenate(
            [flat, jnp.zeros((B, expected - out_dim), flat.dtype)], axis=1
        )
    return flat.reshape(B, C, Hh, Ww)


# ----------------------------- reference (pure JAX) ---------------------------

def _reference(text_embeddings, target_shape, params, num_layers):
    B, C, Hh, Ww = target_shape
    f32 = jnp.float32
    h = jnp.dot(_bf16(text_embeddings), params["w_in"],
                preferred_element_type=f32) + params["b_in"]
    for l in range(num_layers):
        v = jnp.dot(_bf16(h), params["wv"][l], preferred_element_type=f32) + params["bv"][l]
        attn = jnp.dot(_bf16(v), params["wo"][l], preferred_element_type=f32) + params["bo"][l]
        h = _layernorm(h + attn, params["ln1g"][l], params["ln1b"][l])
        f = jnp.dot(_bf16(h), params["wf1"][l], preferred_element_type=f32) + params["bf1"][l]
        f = _gelu_tanh(f)
        f = jnp.dot(_bf16(f), params["wf2"][l], preferred_element_type=f32) + params["bf2"][l]
        h = _layernorm(h + f, params["ln2g"][l], params["ln2b"][l])
    p = jnp.dot(_bf16(h), params["w_out"], preferred_element_type=f32) + params["b_out"]
    p = jnp.tanh(p) * (8.0 / 255.0)
    return p[:, : C * Hh * Ww].reshape(B, C, Hh, Ww)


# ----------------------------- demo ------------------------------------------

if __name__ == "__main__":
    key = jax.random.PRNGKey(0)
    k_param, k_x = jax.random.split(key)

    batch = 2
    input_dim = 768          # BERT embedding dim (fixed by the module)
    hidden_dim = 128         # Config.DEM.TEXT_HIDDEN_DIM (synthetic choice)
    num_layers = 2           # Config.DEM.TEXT_NUM_LAYERS (synthetic choice)
    target_shape = (batch, 3, 32, 32)   # cifar10 head -> 32*32*3 = 3072

    params = init_params(k_param, input_dim, hidden_dim, num_layers,
                         out_dim=3 * 32 * 32)
    text_embeddings = jax.random.normal(k_x, (batch, input_dim), jnp.float32)

    perturbation = text_feature_extractor(text_embeddings, target_shape,
                                          params, num_layers)
    perturbation = jax.block_until_ready(perturbation)

    assert perturbation.shape == target_shape
    assert bool(jnp.all(jnp.abs(perturbation) <= 8.0 / 255.0 + 1e-6))

    ref = jax.block_until_ready(
        _reference(text_embeddings, target_shape, params, num_layers))
    assert bool(jnp.max(jnp.abs(perturbation - ref)) < 1e-3), \
        float(jnp.max(jnp.abs(perturbation - ref)))

    print("KERNEL_OK")
</pallas_src>

<mosaic_0001>
module attributes {stable_mosaic.version = 11 : i64} {
  func.func @_text_feature_kernel(%arg0: i32, %arg1: memref<2x768xf32, #tpu.memory_space<vmem>>, %arg2: memref<768x128xbf16, #tpu.memory_space<vmem>>, %arg3: memref<1x128xf32, #tpu.memory_space<vmem>>, %arg4: memref<2x128x128xbf16, #tpu.memory_space<vmem>>, %arg5: memref<2x1x128xf32, #tpu.memory_space<vmem>>, %arg6: memref<2x128x128xbf16, #tpu.memory_space<vmem>>, %arg7: memref<2x1x128xf32, #tpu.memory_space<vmem>>, %arg8: memref<2x1x128xf32, #tpu.memory_space<vmem>>, %arg9: memref<2x1x128xf32, #tpu.memory_space<vmem>>, %arg10: memref<2x128x512xbf16, #tpu.memory_space<vmem>>, %arg11: memref<2x1x512xf32, #tpu.memory_space<vmem>>, %arg12: memref<2x512x128xbf16, #tpu.memory_space<vmem>>, %arg13: memref<2x1x128xf32, #tpu.memory_space<vmem>>, %arg14: memref<2x1x128xf32, #tpu.memory_space<vmem>>, %arg15: memref<2x1x128xf32, #tpu.memory_space<vmem>>, %arg16: memref<128x1536xbf16, #tpu.memory_space<vmem>>, %arg17: memref<1x1536xf32, #tpu.memory_space<vmem>>, %arg18: memref<2x1536xf32, #tpu.memory_space<vmem>>) attributes {dimension_semantics = [#tpu.dimension_semantics<parallel>], iteration_bounds = array<i64: 2>, scalar_prefetch = 0 : i64, scratch_operands = 0 : i64, tpu.core_type = #tpu.core_type<tc>, window_params = [{pipeline_mode = #tpu.pipeline_mode<synchronous>, transform_indices = @transform_0, window_bounds = array<i64: 2, 768>}, {pipeline_mode = #tpu.pipeline_mode<synchronous>, transform_indices = @transform_1, window_bounds = array<i64: 768, 128>}, {pipeline_mode = #tpu.pipeline_mode<synchronous>, transform_indices = @transform_2, window_bounds = array<i64: 1, 128>}, {pipeline_mode = #tpu.pipeline_mode<synchronous>, transform_indices = @transform_3, window_bounds = array<i64: 2, 128, 128>}, {pipeline_mode = #tpu.pipeline_mode<synchronous>, transform_indices = @transform_4, window_bounds = array<i64: 2, 1, 128>}, {pipeline_mode = #tpu.pipeline_mode<synchronous>, transform_indices = @transform_5, window_bounds = array<i64: 2, 128, 128>}, {pipeline_mode = #tpu.pipeline_mode<synchronous>, transform_indices = @transform_6, window_bounds = array<i64: 2, 1, 128>}, {pipeline_mode = #tpu.pipeline_mode<synchronous>, transform_indices = @transform_7, window_bounds = array<i64: 2, 1, 128>}, {pipeline_mode = #tpu.pipeline_mode<synchronous>, transform_indices = @transform_8, window_bounds = array<i64: 2, 1, 128>}, {pipeline_mode = #tpu.pipeline_mode<synchronous>, transform_indices = @transform_9, window_bounds = array<i64: 2, 128, 512>}, {pipeline_mode = #tpu.pipeline_mode<synchronous>, transform_indices = @transform_10, window_bounds = array<i64: 2, 1, 512>}, {pipeline_mode = #tpu.pipeline_mode<synchronous>, transform_indices = @transform_11, window_bounds = array<i64: 2, 512, 128>}, {pipeline_mode = #tpu.pipeline_mode<synchronous>, transform_indices = @transform_12, window_bounds = array<i64: 2, 1, 128>}, {pipeline_mode = #tpu.pipeline_mode<synchronous>, transform_indices = @transform_13, window_bounds = array<i64: 2, 1, 128>}, {pipeline_mode = #tpu.pipeline_mode<synchronous>, transform_indices = @transform_14, window_bounds = array<i64: 2, 1, 128>}, {transform_indices = @transform_15, window_bounds = array<i64: 128, 1536>}, {transform_indices = @transform_16, window_bounds = array<i64: 1, 1536>}, {transform_indices = @transform_17, window_bounds = array<i64: 2, 1536>}]} {
    %c0 = arith.constant 0 : index
    %c0_0 = arith.constant 0 : index
    %0 = vector.load %arg1[%c0, %c0_0] : memref<2x768xf32, #tpu.memory_space<vmem>>, vector<2x768xf32>
    %1 = arith.truncf %0 : vector<2x768xf32> to vector<2x768xbf16>
    %c0_1 = arith.constant 0 : index
    %c0_2 = arith.constant 0 : index
    %2 = vector.load %arg2[%c0_1, %c0_2] : memref<768x128xbf16, #tpu.memory_space<vmem>>, vector<768x128xbf16>
    %cst = arith.constant dense<0.000000e+00> : vector<2x128xf32>
    %3 = tpu.matmul %1, %2, %cst {dimension_numbers = #tpu.dot_dimension_numbers<[1], [0], [0], [1], [0, 0, 1, 1], [], []>} : vector<2x768xbf16>, vector<768x128xbf16>, vector<2x128xf32> -> vector<2x128xf32>
    %c0_3 = arith.constant 0 : index
    %c0_4 = arith.constant 0 : index
    %4 = vector.load %arg3[%c0_3, %c0_4] : memref<1x128xf32, #tpu.memory_space<vmem>>, vector<1x128xf32>
    %5 = vector.broadcast %4 : vector<1x128xf32> to vector<2x128xf32>
    %6 = arith.addf %3, %5 : vector<2x128xf32>
    %7 = arith.truncf %6 : vector<2x128xf32> to vector<2x128xbf16>
    %c0_5 = arith.constant 0 : index
    %c0_6 = arith.constant 0 : index
    %c0_7 = arith.constant 0 : index
    %8 = vector.load %arg4[%c0_5, %c0_6, %c0_7] : memref<2x128x128xbf16, #tpu.memory_space<vmem>>, vector<1x128x128xbf16>
    %9 = vector.shape_cast %8 : vector<1x128x128xbf16> to vector<128x128xbf16>
    %cst_8 = arith.constant dense<0.000000e+00> : vector<2x128xf32>
    %10 = tpu.matmul %7, %9, %cst_8 {dimension_numbers = #tpu.dot_dimension_numbers<[1], [0], [0], [1], [0, 0, 1, 1], [], []>} : vector<2x128xbf16>, vector<128x128xbf16>, vector<2x128xf32> -> vector<2x128xf32>
    %c0_9 = arith.constant 0 : index
    %c0_10 = arith.constant 0 : index
    %c0_11 = arith.constant 0 : index
    %11 = vector.load %arg5[%c0_9, %c0_10, %c0_11] : memref<2x1x128xf32, #tpu.memory_space<vmem>>, vector<1x1x128xf32>
    %12 = vector.shape_cast %11 : vector<1x1x128xf32> to vector<1x128xf32>
    %13 = vector.broadcast %12 : vector<1x128xf32> to vector<2x128xf32>
    %14 = arith.addf %10, %13 : vector<2x128xf32>
    %15 = arith.truncf %14 : vector<2x128xf32> to vector<2x128xbf16>
    %c0_12 = arith.constant 0 : index
    %c0_13 = arith.constant 0 : index
    %c0_14 = arith.constant 0 : index
    %16 = vector.load %arg6[%c0_12, %c0_13, %c0_14] : memref<2x128x128xbf16, #tpu.memory_space<vmem>>, vector<1x128x128xbf16>
    %17 = vector.shape_cast %16 : vector<1x128x128xbf16> to vector<128x128xbf16>
    %cst_15 = arith.constant dense<0.000000e+00> : vector<2x128xf32>
    %18 = tpu.matmul %15, %17, %cst_15 {dimension_numbers = #tpu.dot_dimension_numbers<[1], [0], [0], [1], [0, 0, 1, 1], [], []>} : vector<2x128xbf16>, vector<128x128xbf16>, vector<2x128xf32> -> vector<2x128xf32>
    %c0_16 = arith.constant 0 : index
    %c0_17 = arith.constant 0 : index
    %c0_18 = arith.constant 0 : index
    %19 = vector.load %arg7[%c0_16, %c0_17, %c0_18] : memref<2x1x128xf32, #tpu.memory_space<vmem>>, vector<1x1x128xf32>
    %20 = vector.shape_cast %19 : vector<1x1x128xf32> to vector<1x128xf32>
    %21 = vector.broadcast %20 : vector<1x128xf32> to vector<2x128xf32>
    %22 = arith.addf %18, %21 : vector<2x128xf32>
    %23 = arith.addf %6, %22 : vector<2x128xf32>
    %c0_19 = arith.constant 0 : index
    %c0_20 = arith.constant 0 : index
    %c0_21 = arith.constant 0 : index
    %24 = vector.load %arg8[%c0_19, %c0_20, %c0_21] : memref<2x1x128xf32, #tpu.memory_space<vmem>>, vector<1x1x128xf32>
    %25 = vector.shape_cast %24 : vector<1x1x128xf32> to vector<1x128xf32>
    %c0_22 = arith.constant 0 : index
    %c0_23 = arith.constant 0 : index
    %c0_24 = arith.constant 0 : index
    %26 = vector.load %arg9[%c0_22, %c0_23, %c0_24] : memref<2x1x128xf32, #tpu.memory_space<vmem>>, vector<1x1x128xf32>
    %27 = vector.shape_cast %26 : vector<1x1x128xf32> to vector<1x128xf32>
    %cst_25 = arith.constant dense<0.000000e+00> : vector<2xf32>
    %28 = vector.multi_reduction <add>, %23, %cst_25 [1] : vector<2x128xf32> to vector<2xf32>
    %29 = vector.shape_cast %28 : vector<2xf32> to vector<2x1xf32>
    %cst_26 = arith.constant 1.280000e+02 : f32
    %30 = vector.broadcast %cst_26 : f32 to vector<2x1xf32>
    %31 = arith.divf %29, %30 : vector<2x1xf32>
    %32 = vector.broadcast %31 : vector<2x1xf32> to vector<2x128xf32>
    %33 = arith.subf %23, %32 : vector<2x128xf32>
    %34 = vector.broadcast %31 : vector<2x1xf32> to vector<2x128xf32>
    %35 = arith.subf %23, %34 : vector<2x128xf32>
    %36 = arith.mulf %33, %35 : vector<2x128xf32>
    %cst_27 = arith.constant dense<0.000000e+00> : vector<2xf32>
    %37 = vector.multi_reduction <add>, %36, %cst_27 [1] : vector<2x128xf32> to vector<2xf32>
    %38 = vector.shape_cast %37 : vector<2xf32> to vector<2x1xf32>
    %cst_28 = arith.constant 1.280000e+02 : f32
    %39 = vector.broadcast %cst_28 : f32 to vector<2x1xf32>
    %40 = arith.divf %38, %39 : vector<2x1xf32>
    %41 = vector.broadcast %31 : vector<2x1xf32> to vector<2x128xf32>
    %42 = arith.subf %23, %41 : vector<2x128xf32>
    %cst_29 = arith.constant 9.99999974E-6 : f32
    %43 = vector.broadcast %cst_29 : f32 to vector<2x1xf32>
    %44 = arith.addf %40, %43 : vector<2x1xf32>
    %45 = math.rsqrt %44 : vector<2x1xf32>
    %46 = vector.broadcast %45 : vector<2x1xf32> to vector<2x128xf32>
    %47 = arith.mulf %42, %46 : vector<2x128xf32>
    %48 = vector.broadcast %25 : vector<1x128xf32> to vector<2x128xf32>
    %49 = arith.mulf %47, %48 : vector<2x128xf32>
    %50 = vector.broadcast %27 : vector<1x128xf32> to vector<2x128xf32>
    %51 = arith.addf %49, %50 : vector<2x128xf32>
    %52 = arith.truncf %51 : vector<2x128xf32> to vector<2x128xbf16>
    %c0_30 = arith.constant 0 : index
    %c0_31 = arith.constant 0 : index
    %c0_32 = arith.constant 0 : index
    %53 = vector.load %arg10[%c0_30, %c0_31, %c0_32] : memref<2x128x512xbf16, #tpu.memory_space<vmem>>, vector<1x128x512xbf16>
    %54 = vector.shape_cast %53 : vector<1x128x512xbf16> to vector<128x512xbf16>
    %cst_33 = arith.constant dense<0.000000e+00> : vector<2x512xf32>
    %55 = tpu.matmul %52, %54, %cst_33 {dimension_numbers = #tpu.dot_dimension_numbers<[1], [0], [0], [1], [0, 0, 1, 1], [], []>} : vector<2x128xbf16>, vector<128x512xbf16>, vector<2x512xf32> -> vector<2x512xf32>
    %c0_34 = arith.constant 0 : index
    %c0_35 = arith.constant 0 : index
    %c0_36 = arith.constant 0 : index
    %56 = vector.load %arg11[%c0_34, %c0_35, %c0_36] : memref<2x1x512xf32, #tpu.memory_space<vmem>>, vector<1x1x512xf32>
    %57 = vector.shape_cast %56 : vector<1x1x512xf32> to vector<1x512xf32>
    %58 = vector.broadcast %57 : vector<1x512xf32> to vector<2x512xf32>
    %59 = arith.addf %55, %58 : vector<2x512xf32>
    %cst_37 = arith.constant 5.000000e-01 : f32
    %60 = vector.broadcast %cst_37 : f32 to vector<2x512xf32>
    %61 = arith.mulf %60, %59 : vector<2x512xf32>
    %cst_38 = arith.constant 4.471500e-02 : f32
    %62 = vector.broadcast %cst_38 : f32 to vector<2x512xf32>
    %63 = arith.mulf %62, %59 : vector<2x512xf32>
    %64 = arith.mulf %63, %59 : vector<2x512xf32>
    %65 = arith.mulf %64, %59 : vector<2x512xf32>
    %66 = arith.addf %59, %65 : vector<2x512xf32>
    %cst_39 = arith.constant 0.797884583 : f32
    %67 = vector.broadcast %cst_39 : f32 to vector<2x512xf32>
    %68 = arith.mulf %67, %66 : vector<2x512xf32>
    %69 = math.tanh %68 : vector<2x512xf32>
    %cst_40 = arith.constant 1.000000e+00 : f32
    %70 = vector.broadcast %cst_40 : f32 to vector<2x512xf32>
    %71 = arith.addf %70, %69 : vector<2x512xf32>
    %72 = arith.mulf %61, %71 : vector<2x512xf32>
    %73 = arith.truncf %72 : vector<2x512xf32> to vector<2x512xbf16>
    %c0_41 = arith.constant 0 : index
    %c0_42 = arith.constant 0 : index
    %c0_43 = arith.constant 0 : index
    %74 = vector.load %arg12[%c0_41, %c0_42, %c0_43] : memref<2x512x128xbf16, #tpu.memory_space<vmem>>, vector<1x512x128xbf16>
    %75 = vector.shape_cast %74 : vector<1x512x128xbf16> to vector<512x128xbf16>
    %cst_44 = arith.constant dense<0.000000e+00> : vector<2x128xf32>
    %76 = tpu.matmul %73, %75, %cst_44 {dimension_numbers = #tpu.dot_dimension_numbers<[1], [0], [0], [1], [0, 0, 1, 1], [], []>} : vector<2x512xbf16>, vector<512x128xbf16>, vector<2x128xf32> -> vector<2x128xf32>
    %c0_45 = arith.constant 0 : index
    %c0_46 = arith.constant 0 : index
    %c0_47 = arith.constant 0 : index
    %77 = vector.load %arg13[%c0_45, %c0_46, %c0_47] : memref<2x1x128xf32, #tpu.memory_space<vmem>>, vector<1x1x128xf32>
    %78 = vector.shape_cast %77 : vector<1x1x128xf32> to vector<1x128xf32>
    %79 = vector.broadcast %78 : vector<1x128xf32> to vector<2x128xf32>
    %80 = arith.addf %76, %79 : vector<2x128xf32>
    %81 = arith.addf %51, %80 : vector<2x128xf32>
    %c0_48 = arith.constant 0 : index
    %c0_49 = arith.constant 0 : index
    %c0_50 = arith.constant 0 : index
    %82 = vector.load %arg14[%c0_48, %c0_49, %c0_50] : memref<2x1x128xf32, #tpu.memory_space<vmem>>, vector<1x1x128xf32>
    %83 = vector.shape_cast %82 : vector<1x1x128xf32> to vector<1x128xf32>
    %c0_51 = arith.constant 0 : index
    %c0_52 = arith.constant 0 : index
    %c0_53 = arith.constant 0 : index
    %84 = vector.load %arg15[%c0_51, %c0_52, %c0_53] : memref<2x1x128xf32, #tpu.memory_space<vmem>>, vector<1x1x128xf32>
    %85 = vector.shape_cast %84 : vector<1x1x128xf32> to vector<1x128xf32>
    %cst_54 = arith.constant dense<0.000000e+00> : vector<2xf32>
    %86 = vector.multi_reduction <add>, %81, %cst_54 [1] : vector<2x128xf32> to vector<2xf32>
    %87 = vector.shape_cast %86 : vector<2xf32> to vector<2x1xf32>
    %cst_55 = arith.constant 1.280000e+02 : f32
    %88 = vector.broadcast %cst_55 : f32 to vector<2x1xf32>
    %89 = arith.divf %87, %88 : vector<2x1xf32>
    %90 = vector.broadcast %89 : vector<2x1xf32> to vector<2x128xf32>
    %91 = arith.subf %81, %90 : vector<2x128xf32>
    %92 = vector.broadcast %89 : vector<2x1xf32> to vector<2x128xf32>
    %93 = arith.subf %81, %92 : vector<2x128xf32>
    %94 = arith.mulf %91, %93 : vector<2x128xf32>
    %cst_56 = arith.constant dense<0.000000e+00> : vector<2xf32>
    %95 = vector.multi_reduction <add>, %94, %cst_56 [1] : vector<2x128xf32> to vector<2xf32>
    %96 = vector.shape_cast %95 : vector<2xf32> to vector<2x1xf32>
    %cst_57 = arith.constant 1.280000e+02 : f32
    %97 = vector.broadcast %cst_57 : f32 to vector<2x1xf32>
    %98 = arith.divf %96, %97 : vector<2x1xf32>
    %99 = vector.broadcast %89 : vector<2x1xf32> to vector<2x128xf32>
    %100 = arith.subf %81, %99 : vector<2x128xf32>
    %cst_58 = arith.constant 9.99999974E-6 : f32
    %101 = vector.broadcast %cst_58 : f32 to vector<2x1xf32>
    %102 = arith.addf %98, %101 : vector<2x1xf32>
    %103 = math.rsqrt %102 : vector<2x1xf32>
    %104 = vector.broadcast %103 : vector<2x1xf32> to vector<2x128xf32>
    %105 = arith.mulf %100, %104 : vector<2x128xf32>
    %106 = vector.broadcast %83 : vector<1x128xf32> to vector<2x128xf32>
    %107 = arith.mulf %105, %106 : vector<2x128xf32>
    %108 = vector.broadcast %85 : vector<1x128xf32> to vector<2x128xf32>
    %109 = arith.addf %107, %108 : vector<2x128xf32>
    %110 = arith.truncf %109 : vector<2x128xf32> to vector<2x128xbf16>
    %c1 = arith.constant 1 : index
    %c0_59 = arith.constant 0 : index
    %c0_60 = arith.constant 0 : index
    %111 = vector.load %arg4[%c1, %c0_59, %c0_60] : memref<2x128x128xbf16, #tpu.memory_space<vmem>>, vector<1x128x128xbf16>
    %112 = vector.shape_cast %111 : vector<1x128x128xbf16> to vector<128x128xbf16>
    %cst_61 = arith.constant dense<0.000000e+00> : vector<2x128xf32>
    %113 = tpu.matmul %110, %112, %cst_61 {dimension_numbers = #tpu.dot_dimension_numbers<[1], [0], [0], [1], [0, 0, 1, 1], [], []>} : vector<2x128xbf16>, vector<128x128xbf16>, vector<2x128xf32> -> vector<2x128xf32>
    %c1_62 = arith.constant 1 : index
    %c0_63 = arith.constant 0 : index
    %c0_64 = arith.constant 0 : index
    %114 = vector.load %arg5[%c1_62, %c0_63, %c0_64] : memref<2x1x128xf32, #tpu.memory_space<vmem>>, vector<1x1x128xf32>
    %115 = vector.shape_cast %114 : vector<1x1x128xf32> to vector<1x128xf32>
    %116 = vector.broadcast %115 : vector<1x128xf32> to vector<2x128xf32>
    %117 = arith.addf %113, %116 : vector<2x128xf32>
    %118 = arith.truncf %117 : vector<2x128xf32> to vector<2x128xbf16>
    %c1_65 = arith.constant 1 : index
    %c0_66 = arith.constant 0 : index
    %c0_67 = arith.constant 0 : index
    %119 = vector.load %arg6[%c1_65, %c0_66, %c0_67] : memref<2x128x128xbf16, #tpu.memory_space<vmem>>, vector<1x128x128xbf16>
    %120 = vector.shape_cast %119 : vector<1x128x128xbf16> to vector<128x128xbf16>
    %cst_68 = arith.constant dense<0.000000e+00> : vector<2x128xf32>
    %121 = tpu.matmul %118, %120, %cst_68 {dimension_numbers = #tpu.dot_dimension_numbers<[1], [0], [0], [1], [0, 0, 1, 1], [], []>} : vector<2x128xbf16>, vector<128x128xbf16>, vector<2x128xf32> -> vector<2x128xf32>
    %c1_69 = arith.constant 1 : index
    %c0_70 = arith.constant 0 : index
    %c0_71 = arith.constant 0 : index
    %122 = vector.load %arg7[%c1_69, %c0_70, %c0_71] : memref<2x1x128xf32, #tpu.memory_space<vmem>>, vector<1x1x128xf32>
    %123 = vector.shape_cast %122 : vector<1x1x128xf32> to vector<1x128xf32>
    %124 = vector.broadcast %123 : vector<1x128xf32> to vector<2x128xf32>
    %125 = arith.addf %121, %124 : vector<2x128xf32>
    %126 = arith.addf %109, %125 : vector<2x128xf32>
    %c1_72 = arith.constant 1 : index
    %c0_73 = arith.constant 0 : index
    %c0_74 = arith.constant 0 : index
    %127 = vector.load %arg8[%c1_72, %c0_73, %c0_74] : memref<2x1x128xf32, #tpu.memory_space<vmem>>, vector<1x1x128xf32>
    %128 = vector.shape_cast %127 : vector<1x1x128xf32> to vector<1x128xf32>
    %c1_75 = arith.constant 1 : index
    %c0_76 = arith.constant 0 : index
    %c0_77 = arith.constant 0 : index
    %129 = vector.load %arg9[%c1_75, %c0_76, %c0_77] : memref<2x1x128xf32, #tpu.memory_space<vmem>>, vector<1x1x128xf32>
    %130 = vector.shape_cast %129 : vector<1x1x128xf32> to vector<1x128xf32>
    %cst_78 = arith.constant dense<0.000000e+00> : vector<2xf32>
    %131 = vector.multi_reduction <add>, %126, %cst_78 [1] : vector<2x128xf32> to vector<2xf32>
    %132 = vector.shape_cast %131 : vector<2xf32> to vector<2x1xf32>
    %cst_79 = arith.constant 1.280000e+02 : f32
    %133 = vector.broadcast %cst_79 : f32 to vector<2x1xf32>
    %134 = arith.divf %132, %133 : vector<2x1xf32>
    %135 = vector.broadcast %134 : vector<2x1xf32> to vector<2x128xf32>
    %136 = arith.subf %126, %135 : vector<2x128xf32>
    %137 = vector.broadcast %134 : vector<2x1xf32> to vector<2x128xf32>
    %138 = arith.subf %126, %137 : vector<2x128xf32>
    %139 = arith.mulf %136, %138 : vector<2x128xf32>
    %cst_80 = arith.constant dense<0.000000e+00> : vector<2xf32>
    %140 = vector.multi_reduction <add>, %139, %cst_80 [1] : vector<2x128xf32> to vector<2xf32>
    %141 = vector.shape_cast %140 : vector<2xf32> to vector<2x1xf32>
    %cst_81 = arith.constant 1.280000e+02 : f32
    %142 = vector.broadcast %cst_81 : f32 to vector<2x1xf32>
    %143 = arith.divf %141, %142 : vector<2x1xf32>
    %144 = vector.broadcast %134 : vector<2x1xf32> to vector<2x128xf32>
    %145 = arith.subf %126, %144 : vector<2x128xf32>
    %cst_82 = arith.constant 9.99999974E-6 : f32
    %146 = vector.broadcast %cst_82 : f32 to vector<2x1xf32>
    %147 = arith.addf %143, %146 : vector<2x1xf32>
    %148 = math.rsqrt %147 : vector<2x1xf32>
    %149 = vector.broadcast %148 : vector<2x1xf32> to vector<2x128xf32>
    %150 = arith.mulf %145, %149 : vector<2x128xf32>
    %151 = vector.broadcast %128 : vector<1x128xf32> to vector<2x128xf32>
    %152 = arith.mulf %150, %151 : vector<2x128xf32>
    %153 = vector.broadcast %130 : vector<1x128xf32> to vector<2x128xf32>
    %154 = arith.addf %152, %153 : vector<2x128xf32>
    %155 = arith.truncf %154 : vector<2x128xf32> to vector<2x128xbf16>
    %c1_83 = arith.constant 1 : index
    %c0_84 = arith.constant 0 : index
    %c0_85 = arith.constant 0 : index
    %156 = vector.load %arg10[%c1_83, %c0_84, %c0_85] : memref<2x128x512xbf16, #tpu.memory_space<vmem>>, vector<1x128x512xbf16>
    %157 = vector.shape_cast %156 : vector<1x128x512xbf16> to vector<128x512xbf16>
    %cst_86 = arith.constant dense<0.000000e+00> : vector<2x512xf32>
    %158 = tpu.matmul %155, %157, %cst_86 {dimension_numbers = #tpu.dot_dimension_numbers<[1], [0], [0], [1], [0, 0, 1, 1], [], []>} : vector<2x128xbf16>, vector<128x512xbf16>, vector<2x512xf32> -> vector<2x512xf32>
    %c1_87 = arith.constant 1 : index
    %c0_88 = arith.constant 0 : index
    %c0_89 = arith.constant 0 : index
    %159 = vector.load %arg11[%c1_87, %c0_88, %c0_89] : memref<2x1x512xf32, #tpu.memory_space<vmem>>, vector<1x1x512xf32>
    %160 = vector.shape_cast %159 : vector<1x1x512xf32> to vector<1x512xf32>
    %161 = vector.broadcast %160 : vector<1x512xf32> to vector<2x512xf32>
    %162 = arith.addf %158, %161 : vector<2x512xf32>
    %cst_90 = arith.constant 5.000000e-01 : f32
    %163 = vector.broadcast %cst_90 : f32 to vector<2x512xf32>
    %164 = arith.mulf %163, %162 : vector<2x512xf32>
    %cst_91 = arith.constant 4.471500e-02 : f32
    %165 = vector.broadcast %cst_91 : f32 to vector<2x512xf32>
    %166 = arith.mulf %165, %162 : vector<2x512xf32>
    %167 = arith.mulf %166, %162 : vector<2x512xf32>
    %168 = arith.mulf %167, %162 : vector<2x512xf32>
    %169 = arith.addf %162, %168 : vector<2x512xf32>
    %cst_92 = arith.constant 0.797884583 : f32
    %170 = vector.broadcast %cst_92 : f32 to vector<2x512xf32>
    %171 = arith.mulf %170, %169 : vector<2x512xf32>
    %172 = math.tanh %171 : vector<2x512xf32>
    %cst_93 = arith.constant 1.000000e+00 : f32
    %173 = vector.broadcast %cst_93 : f32 to vector<2x512xf32>
    %174 = arith.addf %173, %172 : vector<2x512xf32>
    %175 = arith.mulf %164, %174 : vector<2x512xf32>
    %176 = arith.truncf %175 : vector<2x512xf32> to vector<2x512xbf16>
    %c1_94 = arith.constant 1 : index
    %c0_95 = arith.constant 0 : index
    %c0_96 = arith.constant 0 : index
    %177 = vector.load %arg12[%c1_94, %c0_95, %c0_96] : memref<2x512x128xbf16, #tpu.memory_space<vmem>>, vector<1x512x128xbf16>
    %178 = vector.shape_cast %177 : vector<1x512x128xbf16> to vector<512x128xbf16>
    %cst_97 = arith.constant dense<0.000000e+00> : vector<2x128xf32>
    %179 = tpu.matmul %176, %178, %cst_97 {dimension_numbers = #tpu.dot_dimension_numbers<[1], [0], [0], [1], [0, 0, 1, 1], [], []>} : vector<2x512xbf16>, vector<512x128xbf16>, vector<2x128xf32> -> vector<2x128xf32>
    %c1_98 = arith.constant 1 : index
    %c0_99 = arith.constant 0 : index
    %c0_100 = arith.constant 0 : index
    %180 = vector.load %arg13[%c1_98, %c0_99, %c0_100] : memref<2x1x128xf32, #tpu.memory_space<vmem>>, vector<1x1x128xf32>
    %181 = vector.shape_cast %180 : vector<1x1x128xf32> to vector<1x128xf32>
    %182 = vector.broadcast %181 : vector<1x128xf32> to vector<2x128xf32>
    %183 = arith.addf %179, %182 : vector<2x128xf32>
    %184 = arith.addf %154, %183 : vector<2x128xf32>
    %c1_101 = arith.constant 1 : index
    %c0_102 = arith.constant 0 : index
    %c0_103 = arith.constant 0 : index
    %185 = vector.load %arg14[%c1_101, %c0_102, %c0_103] : memref<2x1x128xf32, #tpu.memory_space<vmem>>, vector<1x1x128xf32>
    %186 = vector.shape_cast %185 : vector<1x1x128xf32> to vector<1x128xf32>
    %c1_104 = arith.constant 1 : index
    %c0_105 = arith.constant 0 : index
    %c0_106 = arith.constant 0 : index
    %187 = vector.load %arg15[%c1_104, %c0_105, %c0_106] : memref<2x1x128xf32, #tpu.memory_space<vmem>>, vector<1x1x128xf32>
    %188 = vector.shape_cast %187 : vector<1x1x128xf32> to vector<1x128xf32>
    %cst_107 = arith.constant dense<0.000000e+00> : vector<2xf32>
    %189 = vector.multi_reduction <add>, %184, %cst_107 [1] : vector<2x128xf32> to vector<2xf32>
    %190 = vector.shape_cast %189 : vector<2xf32> to vector<2x1xf32>
    %cst_108 = arith.constant 1.280000e+02 : f32
    %191 = vector.broadcast %cst_108 : f32 to vector<2x1xf32>
    %192 = arith.divf %190, %191 : vector<2x1xf32>
    %193 = vector.broadcast %192 : vector<2x1xf32> to vector<2x128xf32>
    %194 = arith.subf %184, %193 : vector<2x128xf32>
    %195 = vector.broadcast %192 : vector<2x1xf32> to vector<2x128xf32>
    %196 = arith.subf %184, %195 : vector<2x128xf32>
    %197 = arith.mulf %194, %196 : vector<2x128xf32>
    %cst_109 = arith.constant dense<0.000000e+00> : vector<2xf32>
    %198 = vector.multi_reduction <add>, %197, %cst_109 [1] : vector<2x128xf32> to vector<2xf32>
    %199 = vector.shape_cast %198 : vector<2xf32> to vector<2x1xf32>
    %cst_110 = arith.constant 1.280000e+02 : f32
    %200 = vector.broadcast %cst_110 : f32 to vector<2x1xf32>
    %201 = arith.divf %199, %200 : vector<2x1xf32>
    %202 = vector.broadcast %192 : vector<2x1xf32> to vector<2x128xf32>
    %203 = arith.subf %184, %202 : vector<2x128xf32>
    %cst_111 = arith.constant 9.99999974E-6 : f32
    %204 = vector.broadcast %cst_111 : f32 to vector<2x1xf32>
    %205 = arith.addf %201, %204 : vector<2x1xf32>
    %206 = math.rsqrt %205 : vector<2x1xf32>
    %207 = vector.broadcast %206 : vector<2x1xf32> to vector<2x128xf32>
    %208 = arith.mulf %203, %207 : vector<2x128xf32>
    %209 = vector.broadcast %186 : vector<1x128xf32> to vector<2x128xf32>
    %210 = arith.mulf %208, %209 : vector<2x128xf32>
    %211 = vector.broadcast %188 : vector<1x128xf32> to vector<2x128xf32>
    %212 = arith.addf %210, %211 : vector<2x128xf32>
    %213 = arith.truncf %212 : vector<2x128xf32> to vector<2x128xbf16>
    %c0_112 = arith.constant 0 : index
    %c0_113 = arith.constant 0 : index
    %214 = vector.load %arg16[%c0_112, %c0_113] : memref<128x1536xbf16, #tpu.memory_space<vmem>>, vector<128x1536xbf16>
    %cst_114 = arith.constant dense<0.000000e+00> : vector<2x1536xf32>
    %215 = tpu.matmul %213, %214, %cst_114 {dimension_numbers = #tpu.dot_dimension_numbers<[1], [0], [0], [1], [0, 0, 1, 1], [], []>} : vector<2x128xbf16>, vector<128x1536xbf16>, vector<2x1536xf32> -> vector<2x1536xf32>
    %c0_115 = arith.constant 0 : index
    %c0_116 = arith.constant 0 : index
    %216 = vector.load %arg17[%c0_115, %c0_116] : memref<1x1536xf32, #tpu.memory_space<vmem>>, vector<1x1536xf32>
    %217 = vector.broadcast %216 : vector<1x1536xf32> to vector<2x1536xf32>
    %218 = arith.addf %215, %217 : vector<2x1536xf32>
    %219 = math.tanh %218 : vector<2x1536xf32>
    %cst_117 = arith.constant 0.0313725509 : f32
    %220 = vector.broadcast %cst_117 : f32 to vector<2x1536xf32>
    %221 = arith.mulf %219, %220 : vector<2x1536xf32>
    %c0_118 = arith.constant 0 : index
    %c0_119 = arith.constant 0 : index
    %222 = vector.load %arg18[%c0_118, %c0_119] : memref<2x1536xf32, #tpu.memory_space<vmem>>, vector<2x1536xf32>
    tpu.vector_store %arg18[%c0_118, %c0_119], %221 {strides = array<i32>} : memref<2x1536xf32, #tpu.memory_space<vmem>>, vector<2x1536xf32>,
    return
  }
  func.func @transform_0(%arg0: i32) -> (i32, i32) {
    %c0_i32 = arith.constant 0 : i32
    %c0_i32_0 = arith.constant 0 : i32
    %c0_i32_1 = arith.constant 0 : i32
    return %c0_i32, %c0_i32_0 : i32, i32
  }
  func.func @transform_1(%arg0: i32) -> (i32, i32) {
    %c0_i32 = arith.constant 0 : i32
    %c0_i32_0 = arith.constant 0 : i32
    %c0_i32_1 = arith.constant 0 : i32
    return %c0_i32, %c0_i32_0 : i32, i32
  }
  func.func @transform_2(%arg0: i32) -> (i32, i32) {
    %c0_i32 = arith.constant 0 : i32
    %c0_i32_0 = arith.constant 0 : i32
    %c0_i32_1 = arith.constant 0 : i32
    return %c0_i32, %c0_i32_0 : i32, i32
  }
  func.func @transform_3(%arg0: i32) -> (i32, i32, i32) {
    %c0_i32 = arith.constant 0 : i32
    %c0_i32_0 = arith.constant 0 : i32
    %c0_i32_1 = arith.constant 0 : i32
    %c0_i32_2 = arith.constant 0 : i32
    return %c0_i32, %c0_i32_0, %c0_i32_1 : i32, i32, i32
  }
  func.func @transform_4(%arg0: i32) -> (i32, i32, i32) {
    %c0_i32 = arith.constant 0 : i32
    %c0_i32_0 = arith.constant 0 : i32
    %c0_i32_1 = arith.constant 0 : i32
    %c0_i32_2 = arith.constant 0 : i32
    return %c0_i32, %c0_i32_0, %c0_i32_1 : i32, i32, i32
  }
  func.func @transform_5(%arg0: i32) -> (i32, i32, i32) {
    %c0_i32 = arith.constant 0 : i32
    %c0_i32_0 = arith.constant 0 : i32
    %c0_i32_1 = arith.constant 0 : i32
    %c0_i32_2 = arith.constant 0 : i32
    return %c0_i32, %c0_i32_0, %c0_i32_1 : i32, i32, i32
  }
  func.func @transform_6(%arg0: i32) -> (i32, i32, i32) {
    %c0_i32 = arith.constant 0 : i32
    %c0_i32_0 = arith.constant 0 : i32
    %c0_i32_1 = arith.constant 0 : i32
    %c0_i32_2 = arith.constant 0 : i32
    return %c0_i32, %c0_i32_0, %c0_i32_1 : i32, i32, i32
  }
  func.func @transform_7(%arg0: i32) -> (i32, i32, i32) {
    %c0_i32 = arith.constant 0 : i32
    %c0_i32_0 = arith.constant 0 : i32
    %c0_i32_1 = arith.constant 0 : i32
    %c0_i32_2 = arith.constant 0 : i32
    return %c0_i32, %c0_i32_0, %c0_i32_1 : i32, i32, i32
  }
  func.func @transform_8(%arg0: i32) -> (i32, i32, i32) {
    %c0_i32 = arith.constant 0 : i32
    %c0_i32_0 = arith.constant 0 : i32
    %c0_i32_1 = arith.constant 0 : i32
    %c0_i32_2 = arith.constant 0 : i32
    return %c0_i32, %c0_i32_0, %c0_i32_1 : i32, i32, i32
  }
  func.func @transform_9(%arg0: i32) -> (i32, i32, i32) {
    %c0_i32 = arith.constant 0 : i32
    %c0_i32_0 = arith.constant 0 : i32
    %c0_i32_1 = arith.constant 0 : i32
    %c0_i32_2 = arith.constant 0 : i32
    return %c0_i32, %c0_i32_0, %c0_i32_1 : i32, i32, i32
  }
  func.func @transform_10(%arg0: i32) -> (i32, i32, i32) {
    %c0_i32 = arith.constant 0 : i32
    %c0_i32_0 = arith.constant 0 : i32
    %c0_i32_1 = arith.constant 0 : i32
    %c0_i32_2 = arith.constant 0 : i32
    return %c0_i32, %c0_i32_0, %c0_i32_1 : i32, i32, i32
  }
  func.func @transform_11(%arg0: i32) -> (i32, i32, i32) {
    %c0_i32 = arith.constant 0 : i32
    %c0_i32_0 = arith.constant 0 : i32
    %c0_i32_1 = arith.constant 0 : i32
    %c0_i32_2 = arith.constant 0 : i32
    return %c0_i32, %c0_i32_0, %c0_i32_1 : i32, i32, i32
  }
  func.func @transform_12(%arg0: i32) -> (i32, i32, i32) {
    %c0_i32 = arith.constant 0 : i32
    %c0_i32_0 = arith.constant 0 : i32
    %c0_i32_1 = arith.constant 0 : i32
    %c0_i32_2 = arith.constant 0 : i32
    return %c0_i32, %c0_i32_0, %c0_i32_1 : i32, i32, i32
  }
  func.func @transform_13(%arg0: i32) -> (i32, i32, i32) {
    %c0_i32 = arith.constant 0 : i32
    %c0_i32_0 = arith.constant 0 : i32
    %c0_i32_1 = arith.constant 0 : i32
    %c0_i32_2 = arith.constant 0 : i32
    return %c0_i32, %c0_i32_0, %c0_i32_1 : i32, i32, i32
  }
  func.func @transform_14(%arg0: i32) -> (i32, i32, i32) {
    %c0_i32 = arith.constant 0 : i32
    %c0_i32_0 = arith.constant 0 : i32
    %c0_i32_1 = arith.constant 0 : i32
    %c0_i32_2 = arith.constant 0 : i32
    return %c0_i32, %c0_i32_0, %c0_i32_1 : i32, i32, i32
  }
  func.func @transform_15(%arg0: i32) -> (i32, i32) {
    %c0_i32 = arith.constant 0 : i32
    %c0_i32_0 = arith.constant 0 : i32
    return %c0_i32, %arg0 : i32, i32
  }
  func.func @transform_16(%arg0: i32) -> (i32, i32) {
    %c0_i32 = arith.constant 0 : i32
    %c0_i32_0 = arith.constant 0 : i32
    return %c0_i32, %arg0 : i32, i32
  }
  func.func @transform_17(%arg0: i32) -> (i32, i32) {
    %c0_i32 = arith.constant 0 : i32
    %c0_i32_0 = arith.constant 0 : i32
    return %c0_i32, %arg0 : i32, i32
  }
}

</mosaic_0001>

<llo_original>
// kernel: tpu_custom_call.1
$region0: #{tpu_custom_call.1}
  #allocation0 [shape = 'u32[]', space=smem, size = 0x4, offset = 0x4, fixed_abs, tag = 'smem constant byte address 0x4 - core index']
  #allocation1 [shape = 'u32[144,128]{1,0:T(1,128)}', space=vmem, size = 0x12000, scoped, tag = 'internal scratch']
  %s0 = inlined_call_operand.hbm [shape: f32[2,768], index: 0, kind: input, shape index: {}]
  %s1 = inlined_call_operand.hbm [shape: bf16[768,128], index: 1, kind: input, shape index: {}]
  %s2 = inlined_call_operand.hbm [shape: f32[1,128], index: 2, kind: input, shape index: {}]
  %s3 = inlined_call_operand.hbm [shape: bf16[2,128,128], index: 3, kind: input, shape index: {}]
  %s4 = inlined_call_operand.vmem [shape: f32[2,1,128], index: 4, kind: input, shape index: {}]
  %s5 = inlined_call_operand.hbm [shape: bf16[2,128,128], index: 5, kind: input, shape index: {}]
  %s6 = inlined_call_operand.vmem [shape: f32[2,1,128], index: 6, kind: input, shape index: {}]
  %s7 = inlined_call_operand.vmem [shape: f32[2,1,128], index: 7, kind: input, shape index: {}]
  %s8 = inlined_call_operand.vmem [shape: f32[2,1,128], index: 8, kind: input, shape index: {}]
  %s9 = inlined_call_operand.hbm [shape: bf16[2,128,512], index: 9, kind: input, shape index: {}]
  %s10 = inlined_call_operand.vmem [shape: f32[2,1,512], index: 10, kind: input, shape index: {}]
  %s11 = inlined_call_operand.hbm [shape: bf16[2,512,128], index: 11, kind: input, shape index: {}]
  %s12 = inlined_call_operand.vmem [shape: f32[2,1,128], index: 12, kind: input, shape index: {}]
  %s13 = inlined_call_operand.vmem [shape: f32[2,1,128], index: 13, kind: input, shape index: {}]
  %s14 = inlined_call_operand.vmem [shape: f32[2,1,128], index: 14, kind: input, shape index: {}]
  %s15 = inlined_call_operand.hbm [shape: bf16[128,3072], index: 15, kind: input, shape index: {}]
  %s16 = inlined_call_operand.vmem [shape: f32[1,3072], index: 16, kind: input, shape index: {}]
  %s17 = inlined_call_operand.hbm [shape: f32[2,3072], index: 17, kind: output, shape index: {}]
  %s18 = sld [smem:[#allocation0]]
  $region133: #{tpu_custom_call.1} parent=0
    _
  %s20 = ssub.s32 1, %s18
  %s21 = scalar_select 0, %s20, %s18
  $region1: #{tpu_custom_call.1} parent=0
    #allocation2 [shape = 'u8[6144]{0}', space=vmem, size = 0x1800, scoped, tag = 'input window, operand 0, single buffered']
    #allocation3 [shape = 's32[2]{0}', space=sflag, size = 0x8, scoped, tag = 'scoped memory for tpu_custom_call.1']
    #allocation4 [shape = 's32[2]{0}', space=sflag, size = 0x8, scoped, tag = 'scoped memory for tpu_custom_call.1']
    #allocation5 [shape = 'u8[196608]{0}', space=vmem, size = 0x30000, scoped, tag = 'input window, operand 1, single buffered']
    #allocation6 [shape = 's32[1]{0}', space=sflag, size = 0x4, scoped, tag = 'scoped memory for tpu_custom_call.1']
    #allocation7 [shape = 'u8[512]{0}', space=vmem, size = 0x400, scoped, tag = 'input window, operand 2, single buffered']
    #allocation8 [shape = 'u8[65536]{0}', space=vmem, size = 0x10000, scoped, tag = 'input window, operand 3, single buffered']
    #allocation9 [shape = 's32[1]{0}', space=sflag, size = 0x4, scoped, tag = 'scoped memory for tpu_custom_call.1']
    #allocation10 [shape = 'u8[65536]{0}', space=vmem, size = 0x10000, scoped, tag = 'input window, operand 5, single buffered']
    #allocation11 [shape = 'u8[262144]{0}', space=vmem, size = 0x40000, scoped, tag = 'input window, operand 9, single buffered']
    #allocation12 [shape = 's32[1]{0}', space=sflag, size = 0x4, scoped, tag = 'scoped memory for tpu_custom_call.1']
    #allocation13 [shape = 'u8[262144]{0}', space=vmem, size = 0x40000, scoped, tag = 'input window, operand 11, single buffered']
    #allocation14 [shape = 'u8[786432]{0}', space=vmem, size = 0xc0000, scoped, tag = 'input window, operand 15']
    #allocation15 [shape = 's32[2]{0}', space=sflag, size = 0x8, scoped, tag = 'scoped memory for tpu_custom_call.1']
    #allocation16 [shape = 'u8[24576]{0}', space=vmem, size = 0x6000, scoped, tag = 'output window, operand 0']
    %22 = vsyncpa [#allocation3], 0
    %23 = vsyncpa [#allocation6], 0
    %24 = vsyncpa [#allocation9], 0
    %25 = vsyncpa [#allocation12], 0
    %26 = vsyncpa [#allocation15], 0
    %s27 = scalar_lea.sflag [#allocation15], 1
    %28 = vsyncpa %s27, 0
    %29 = vsyncpa [#allocation4], 0
    %s30 = scalar_lea.sflag [#allocation4], 1
    %31 = vsyncpa %s30, 0
    loop: start=0, step=1, limit=4
    $region2: #{tpu_custom_call.1} parent=1 // loop_pre_header
      _
    $region3: #{tpu_custom_call.1} parent=1 // loop_header
      %s33 = sphi 0, %s37
      %p34 = scmp.ge.s32.totalorder %s33, 4
      %s41 = sphi 0, %s41
      %s43 = sphi 0, %s41
      %s44 = sphi 0, %s43
      %s58 = sphi 0, %s44
      %s62 = sphi 0, %s62
      %s64 = sphi 0, %s62
      %s65 = sphi 0, %s64
      %s79 = sphi 0, %s65
      %s83 = sphi 0, %s83
      %s85 = sphi 0, %s83
      %s86 = sphi 0, %s85
      %s100 = sphi 0, %s86
      %s104 = sphi 0, %s104
      %s106 = sphi 0, %s104
      %s107 = sphi 0, %s106
      %s121 = sphi 0, %s107
      %s125 = sphi 0, %s125
      %s127 = sphi 0, %s125
      %s128 = sphi 0, %s127
      %s142 = sphi 0, %s128
      %s146 = sphi 0, %s146
      %s148 = sphi 0, %s146
      %s149 = sphi 0, %s148
      %s163 = sphi 0, %s149
      %s167 = sphi 0, %s167
      %s169 = sphi 0, %s167
      %s170 = sphi 0, %s169
      %s184 = sphi 0, %s170
      %s188 = sphi 0, %s188
      %s190 = sphi 0, %s188
      %s191 = sphi 0, %s190
      %s205 = sphi 0, %s191
      %s209 = sphi 0, %s209
      %s211 = sphi 0, %s209
      %s212 = sphi 0, %s211
      %s226 = sphi 0, %s212
      %s230 = sphi 0, %s230
      %s232 = sphi 0, %s230
      %s233 = sphi 0, %s232
      %s247 = sphi 0, %s233
      %s251 = sphi 0, %s251
      %s253 = sphi 0, %s251
      %s254 = sphi 0, %s253
      %s268 = sphi 0, %s254
      %s272 = sphi 0, %s272
      %s274 = sphi 0, %s272
      %s275 = sphi 0, %s274
      %s289 = sphi 0, %s275
      %s293 = sphi 0, %s293
      %s295 = sphi 0, %s293
      %s296 = sphi 0, %s295
      %s310 = sphi 0, %s296
      %s314 = sphi 0, %s314
      %s316 = sphi 0, %s314
      %s317 = sphi 0, %s316
      %s331 = sphi 0, %s317
      %s335 = sphi 0, %s335
      %s337 = sphi 0, %s335
      %s338 = sphi 0, %s337
      %s352 = sphi 0, %s338
      %s358 = sphi 0, %s360
      %s361 = sphi 0, %s358
      %s362 = sphi 0, %s361
      %s378 = sphi 0, %s362
      %s384 = sphi 0, %s386
      %s387 = sphi 0, %s384
      %s388 = sphi 0, %s387
      %s404 = sphi 0, %s388
      %s410 = sphi 0, %s412
      %s413 = sphi 0, %s410
      %s414 = sphi 0, %s413
      %s430 = sphi 0, %s414
    $region4: #{tpu_custom_call.1} parent=1 // loop_header_branch
      %36 = sbr.rel (%p34) target = $region8
    $region5: #{tpu_custom_call.1} parent=1 // loop_body
      %s38 = ssub.s32 %s33, 1
      %s39 = ssub.s32 %s33, 2
      %s40 = sadd.s32 %s33, 1
      %s42 = sadd.s32 %s41, 1
      %p45 = scmp.eq.s32.totalorder %s33, 1
      %p46 = scmp.ne.s32.totalorder %s41, %s43
      %p47 = scmp.eq.s32.totalorder %s33, 0
      %p48 = por %p46, %p47
      %p49 = scmp.ne.s32.totalorder %s41, %s43
      %p50 = scmp.eq.s32.totalorder %s38, 1
      %p51 = por %p49, %p50
      %p52 = scmp.ne.s32.totalorder %s43, %s44
      %p53 = scmp.eq.s32.totalorder %s38, 0
      %p54 = por %p52, %p53
      %p55 = scmp.ne.s32.totalorder %s43, %s44
      %p56 = scmp.eq.s32.totalorder %s39, 1
      %p57 = por %p55, %p56
      %p59 = scmp.ne.s32.totalorder %s44, %s58
      %p60 = scmp.eq.s32.totalorder %s39, 0
      %p61 = por %p59, %p60
      %s63 = sadd.s32 %s62, 1
      %p66 = scmp.eq.s32.totalorder %s33, 1
      %p67 = scmp.ne.s32.totalorder %s62, %s64
      %p68 = scmp.eq.s32.totalorder %s33, 0
      %p69 = por %p67, %p68
      %p70 = scmp.ne.s32.totalorder %s62, %s64
      %p71 = scmp.eq.s32.totalorder %s38, 1
      %p72 = por %p70, %p71
      %p73 = scmp.ne.s32.totalorder %s64, %s65
      %p74 = scmp.eq.s32.totalorder %s38, 0
      %p75 = por %p73, %p74
      %p76 = scmp.ne.s32.totalorder %s64, %s65
      %p77 = scmp.eq.s32.totalorder %s39, 1
      %p78 = por %p76, %p77
      %p80 = scmp.ne.s32.totalorder %s65, %s79
      %p81 = scmp.eq.s32.totalorder %s39, 0
      %p82 = por %p80, %p81
      %s84 = sadd.s32 %s83, 1
      %p87 = scmp.eq.s32.totalorder %s33, 1
      %p88 = scmp.ne.s32.totalorder %s83, %s85
      %p89 = scmp.eq.s32.totalorder %s33, 0
      %p90 = por %p88, %p89
      %p91 = scmp.ne.s32.totalorder %s83, %s85
      %p92 = scmp.eq.s32.totalorder %s38, 1
      %p93 = por %p91, %p92
      %p94 = scmp.ne.s32.totalorder %s85, %s86
      %p95 = scmp.eq.s32.totalorder %s38, 0
      %p96 = por %p94, %p95
      %p97 = scmp.ne.s32.totalorder %s85, %s86
      %p98 = scmp.eq.s32.totalorder %s39, 1
      %p99 = por %p97, %p98
      %p101 = scmp.ne.s32.totalorder %s86, %s100
      %p102 = scmp.eq.s32.totalorder %s39, 0
      %p103 = por %p101, %p102
      %s105 = sadd.s32 %s104, 1
      %p108 = scmp.eq.s32.totalorder %s33, 1
      %p109 = scmp.ne.s32.totalorder %s104, %s106
      %p110 = scmp.eq.s32.totalorder %s33, 0
      %p111 = por %p109, %p110
      %p112 = scmp.ne.s32.totalorder %s104, %s106
      %p113 = scmp.eq.s32.totalorder %s38, 1
      %p114 = por %p112, %p113
      %p115 = scmp.ne.s32.totalorder %s106, %s107
      %p116 = scmp.eq.s32.totalorder %s38, 0
      %p117 = por %p115, %p116
      %p118 = scmp.ne.s32.totalorder %s106, %s107
      %p119 = scmp.eq.s32.totalorder %s39, 1
      %p120 = por %p118, %p119
      %p122 = scmp.ne.s32.totalorder %s107, %s121
      %p123 = scmp.eq.s32.totalorder %s39, 0
      %p124 = por %p122, %p123
      %s126 = sadd.s32 %s125, 1
      %p129 = scmp.eq.s32.totalorder %s33, 1
      %p130 = scmp.ne.s32.totalorder %s125, %s127
      %p131 = scmp.eq.s32.totalorder %s33, 0
      %p132 = por %p130, %p131
      %p133 = scmp.ne.s32.totalorder %s125, %s127
      %p134 = scmp.eq.s32.totalorder %s38, 1
      %p135 = por %p133, %p134
      %p136 = scmp.ne.s32.totalorder %s127, %s128
      %p137 = scmp.eq.s32.totalorder %s38, 0
      %p138 = por %p136, %p137
      %p139 = scmp.ne.s32.totalorder %s127, %s128
      %p140 = scmp.eq.s32.totalorder %s39, 1
      %p141 = por %p139, %p140
      %p143 = scmp.ne.s32.totalorder %s128, %s142
      %p144 = scmp.eq.s32.totalorder %s39, 0
      %p145 = por %p143, %p144
      %s147 = sadd.s32 %s146, 1
      %p150 = scmp.eq.s32.totalorder %s33, 1
      %p151 = scmp.ne.s32.totalorder %s146, %s148
      %p152 = scmp.eq.s32.totalorder %s33, 0
      %p153 = por %p151, %p152
      %p154 = scmp.ne.s32.totalorder %s146, %s148
      %p155 = scmp.eq.s32.totalorder %s38, 1
      %p156 = por %p154, %p155
      %p157 = scmp.ne.s32.totalorder %s148, %s149
      %p158 = scmp.eq.s32.totalorder %s38, 0
      %p159 = por %p157, %p158
      %p160 = scmp.ne.s32.totalorder %s148, %s149
      %p161 = scmp.eq.s32.totalorder %s39, 1
      %p162 = por %p160, %p161
      %p164 = scmp.ne.s32.totalorder %s149, %s163
      %p165 = scmp.eq.s32.totalorder %s39, 0
      %p166 = por %p164, %p165
      %s168 = sadd.s32 %s167, 1
      %p171 = scmp.eq.s32.totalorder %s33, 1
      %p172 = scmp.ne.s32.totalorder %s167, %s169
      %p173 = scmp.eq.s32.totalorder %s33, 0
      %p174 = por %p172, %p173
      %p175 = scmp.ne.s32.totalorder %s167, %s169
      %p176 = scmp.eq.s32.totalorder %s38, 1
      %p177 = por %p175, %p176
      %p178 = scmp.ne.s32.totalorder %s169, %s170
      %p179 = scmp.eq.s32.totalorder %s38, 0
      %p180 = por %p178, %p179
      %p181 = scmp.ne.s32.totalorder %s169, %s170
      %p182 = scmp.eq.s32.totalorder %s39, 1
      %p183 = por %p181, %p182
      %p185 = scmp.ne.s32.totalorder %s170, %s184
      %p186 = scmp.eq.s32.totalorder %s39, 0
      %p187 = por %p185, %p186
      %s189 = sadd.s32 %s188, 1
      %p192 = scmp.eq.s32.totalorder %s33, 1
      %p193 = scmp.ne.s32.totalorder %s188, %s190
      %p194 = scmp.eq.s32.totalorder %s33, 0
      %p195 = por %p193, %p194
      %p196 = scmp.ne.s32.totalorder %s188, %s190
      %p197 = scmp.eq.s32.totalorder %s38, 1
      %p198 = por %p196, %p197
      %p199 = scmp.ne.s32.totalorder %s190, %s191
      %p200 = scmp.eq.s32.totalorder %s38, 0
      %p201 = por %p199, %p200
      %p202 = scmp.ne.s32.totalorder %s190, %s191
      %p203 = scmp.eq.s32.totalorder %s39, 1
      %p204 = por %p202, %p203
      %p206 = scmp.ne.s32.totalorder %s191, %s205
      %p207 = scmp.eq.s32.totalorder %s39, 0
      %p208 = por %p206, %p207
      %s210 = sadd.s32 %s209, 1
      %p213 = scmp.eq.s32.totalorder %s33, 1
      %p214 = scmp.ne.s32.totalorder %s209, %s211
      %p215 = scmp.eq.s32.totalorder %s33, 0
      %p216 = por %p214, %p215
      %p217 = scmp.ne.s32.totalorder %s209, %s211
      %p218 = scmp.eq.s32.totalorder %s38, 1
      %p219 = por %p217, %p218
      %p220 = scmp.ne.s32.totalorder %s211, %s212
      %p221 = scmp.eq.s32.totalorder %s38, 0
      %p222 = por %p220, %p221
      %p223 = scmp.ne.s32.totalorder %s211, %s212
      %p224 = scmp.eq.s32.totalorder %s39, 1
      %p225 = por %p223, %p224
      %p227 = scmp.ne.s32.totalorder %s212, %s226
      %p228 = scmp.eq.s32.totalorder %s39, 0
      %p229 = por %p227, %p228
      %s231 = sadd.s32 %s230, 1
      %p234 = scmp.eq.s32.totalorder %s33, 1
      %p235 = scmp.ne.s32.totalorder %s230, %s232
      %p236 = scmp.eq.s32.totalorder %s33, 0
      %p237 = por %p235, %p236
      %p238 = scmp.ne.s32.totalorder %s230, %s232
      %p239 = scmp.eq.s32.totalorder %s38, 1
      %p240 = por %p238, %p239
      %p241 = scmp.ne.s32.totalorder %s232, %s233
      %p242 = scmp.eq.s32.totalorder %s38, 0
      %p243 = por %p241, %p242
      %p244 = scmp.ne.s32.totalorder %s232, %s233
      %p245 = scmp.eq.s32.totalorder %s39, 1
      %p246 = por %p244, %p245
      %p248 = scmp.ne.s32.totalorder %s233, %s247
      %p249 = scmp.eq.s32.totalorder %s39, 0
      %p250 = por %p248, %p249
      %s252 = sadd.s32 %s251, 1
      %p255 = scmp.eq.s32.totalorder %s33, 1
      %p256 = scmp.ne.s32.totalorder %s251, %s253
      %p257 = scmp.eq.s32.totalorder %s33, 0
      %p258 = por %p256, %p257
      %p259 = scmp.ne.s32.totalorder %s251, %s253
      %p260 = scmp.eq.s32.totalorder %s38, 1
      %p261 = por %p259, %p260
      %p262 = scmp.ne.s32.totalorder %s253, %s254
      %p263 = scmp.eq.s32.totalorder %s38, 0
      %p264 = por %p262, %p263
      %p265 = scmp.ne.s32.totalorder %s253, %s254
      %p266 = scmp.eq.s32.totalorder %s39, 1
      %p267 = por %p265, %p266
      %p269 = scmp.ne.s32.totalorder %s254, %s268
      %p270 = scmp.eq.s32.totalorder %s39, 0
      %p271 = por %p269, %p270
      %s273 = sadd.s32 %s272, 1
      %p276 = scmp.eq.s32.totalorder %s33, 1
      %p277 = scmp.ne.s32.totalorder %s272, %s274
      %p278 = scmp.eq.s32.totalorder %s33, 0
      %p279 = por %p277, %p278
      %p280 = scmp.ne.s32.totalorder %s272, %s274
      %p281 = scmp.eq.s32.totalorder %s38, 1
      %p282 = por %p280, %p281
      %p283 = scmp.ne.s32.totalorder %s274, %s275
      %p284 = scmp.eq.s32.totalorder %s38, 0
      %p285 = por %p283, %p284
      %p286 = scmp.ne.s32.totalorder %s274, %s275
      %p287 = scmp.eq.s32.totalorder %s39, 1
      %p288 = por %p286, %p287
      %p290 = scmp.ne.s32.totalorder %s275, %s289
      %p291 = scmp.eq.s32.totalorder %s39, 0
      %p292 = por %p290, %p291
      %s294 = sadd.s32 %s293, 1
      %p297 = scmp.eq.s32.totalorder %s33, 1
      %p298 = scmp.ne.s32.totalorder %s293, %s295
      %p299 = scmp.eq.s32.totalorder %s33, 0
      %p300 = por %p298, %p299
      %p301 = scmp.ne.s32.totalorder %s293, %s295
      %p302 = scmp.eq.s32.totalorder %s38, 1
      %p303 = por %p301, %p302
      %p304 = scmp.ne.s32.totalorder %s295, %s296
      %p305 = scmp.eq.s32.totalorder %s38, 0
      %p306 = por %p304, %p305
      %p307 = scmp.ne.s32.totalorder %s295, %s296
      %p308 = scmp.eq.s32.totalorder %s39, 1
      %p309 = por %p307, %p308
      %p311 = scmp.ne.s32.totalorder %s296, %s310
      %p312 = scmp.eq.s32.totalorder %s39, 0
      %p313 = por %p311, %p312
      %s315 = sadd.s32 %s314, 1
      %p318 = scmp.eq.s32.totalorder %s33, 1
      %p319 = scmp.ne.s32.totalorder %s314, %s316
      %p320 = scmp.eq.s32.totalorder %s33, 0
      %p321 = por %p319, %p320
      %p322 = scmp.ne.s32.totalorder %s314, %s316
      %p323 = scmp.eq.s32.totalorder %s38, 1
      %p324 = por %p322, %p323
      %p325 = scmp.ne.s32.totalorder %s316, %s317
      %p326 = scmp.eq.s32.totalorder %s38, 0
      %p327 = por %p325, %p326
      %p328 = scmp.ne.s32.totalorder %s316, %s317
      %p329 = scmp.eq.s32.totalorder %s39, 1
      %p330 = por %p328, %p329
      %p332 = scmp.ne.s32.totalorder %s317, %s331
      %p333 = scmp.eq.s32.totalorder %s39, 0
      %p334 = por %p332, %p333
      %s336 = sadd.s32 %s335, 1
      %p339 = scmp.eq.s32.totalorder %s33, 1
      %p340 = scmp.ne.s32.totalorder %s335, %s337
      %p341 = scmp.eq.s32.totalorder %s33, 0
      %p342 = por %p340, %p341
      %p343 = scmp.ne.s32.totalorder %s335, %s337
      %p344 = scmp.eq.s32.totalorder %s38, 1
      %p345 = por %p343, %p344
      %p346 = scmp.ne.s32.totalorder %s337, %s338
      %p347 = scmp.eq.s32.totalorder %s38, 0
      %p348 = por %p346, %p347
      %p349 = scmp.ne.s32.totalorder %s337, %s338
      %p350 = scmp.eq.s32.totalorder %s39, 1
      %p351 = por %p349, %p350
      %p353 = scmp.ne.s32.totalorder %s338, %s352
      %p354 = scmp.eq.s32.totalorder %s39, 0
      %p355 = por %p353, %p354
      %s356 = ssub.s32 %s33, %s40
      %p357 = scmp.eq.s32.totalorder %s356, 0
      %s359 = sadd.s32 %s358, 1
      %s360 = scalar_select %p357, %s358, %s359
      %p363 = pneg %p357
      %p364 = scmp.eq.s32.totalorder %s33, 1
      %p365 = por %p363, %p364
      %p366 = scmp.ne.s32.totalorder %s358, %s361
      %p367 = scmp.eq.s32.totalorder %s33, 0
      %p368 = por %p366, %p367
      %p369 = scmp.ne.s32.totalorder %s358, %s361
      %p370 = scmp.eq.s32.totalorder %s38, 1
      %p371 = por %p369, %p370
      %p372 = scmp.ne.s32.totalorder %s361, %s362
      %p373 = scmp.eq.s32.totalorder %s38, 0
      %p374 = por %p372, %p373
      %p375 = scmp.ne.s32.totalorder %s361, %s362
      %p376 = scmp.eq.s32.totalorder %s39, 1
      %p377 = por %p375, %p376
      %p379 = scmp.ne.s32.totalorder %s362, %s378
      %p380 = scmp.eq.s32.totalorder %s39, 0
      %p381 = por %p379, %p380
      %s382 = ssub.s32 %s33, %s40
      %p383 = scmp.eq.s32.totalorder %s382, 0
      %s385 = sadd.s32 %s384, 1
      %s386 = scalar_select %p383, %s384, %s385
      %p389 = pneg %p383
      %p390 = scmp.eq.s32.totalorder %s33, 1
      %p391 = por %p389, %p390
      %p392 = scmp.ne.s32.totalorder %s384, %s387
      %p393 = scmp.eq.s32.totalorder %s33, 0
      %p394 = por %p392, %p393
      %p395 = scmp.ne.s32.totalorder %s384, %s387
      %p396 = scmp.eq.s32.totalorder %s38, 1
      %p397 = por %p395, %p396
      %p398 = scmp.ne.s32.totalorder %s387, %s388
      %p399 = scmp.eq.s32.totalorder %s38, 0
      %p400 = por %p398, %p399
      %p401 = scmp.ne.s32.totalorder %s387, %s388
      %p402 = scmp.eq.s32.totalorder %s39, 1
      %p403 = por %p401, %p402
      %p405 = scmp.ne.s32.totalorder %s388, %s404
      %p406 = scmp.eq.s32.totalorder %s39, 0
      %p407 = por %p405, %p406
      %s408 = ssub.s32 %s33, %s40
      %p409 = scmp.eq.s32.totalorder %s408, 0
      %s411 = sadd.s32 %s410, 1
      %s412 = scalar_select %p409, %s410, %s411
      %p415 = pneg %p409
      %p416 = scmp.eq.s32.totalorder %s33, 1
      %p417 = por %p415, %p416
      %p418 = scmp.ne.s32.totalorder %s410, %s413
      %p419 = scmp.eq.s32.totalorder %s33, 0
      %p420 = por %p418, %p419
      %p421 = scmp.ne.s32.totalorder %s410, %s413
      %p422 = scmp.eq.s32.totalorder %s38, 1
      %p423 = por %p421, %p422
      %p424 = scmp.ne.s32.totalorder %s413, %s414
      %p425 = scmp.eq.s32.totalorder %s38, 0
      %p426 = por %p424, %p425
      %p427 = scmp.ne.s32.totalorder %s413, %s414
      %p428 = scmp.eq.s32.totalorder %s39, 1
      %p429 = por %p427, %p428
      %p431 = scmp.ne.s32.totalorder %s414, %s430
      %p432 = scmp.eq.s32.totalorder %s39, 0
      %p433 = por %p431, %p432
      %p434 = scmp.le.s32.totalorder 1, %s33
      %p435 = scmp.lt.s32.totalorder %s33, 3
      %p436 = pnand %p434, %p435
      %p437 = pneg %p436
      // Predicated region
      $region9: #{tpu_custom_call.1} parent=5 // pred_check
        _
      $region10: #{tpu_custom_call.1} parent=5 // pred_check_branch
        %439 = sbr.rel (%p436) target = $region12
      $region11: #{tpu_custom_call.1} parent=5 // pred_region
        %s440 = ssub.s32 %s33, 1
        // Predicated region
        $region13: #{tpu_custom_call.1} parent=11 // pred_check
          %p441 = pneg %p54
        $region14: #{tpu_custom_call.1} parent=11 // pred_check_branch
          %443 = sbr.rel (%p441) target = $region16
        $region15: #{tpu_custom_call.1} parent=11 // pred_region
          %s445 = ssub.s32 192, 192
          %446 = vsyncadd [#allocation3], %s445
          %s448 = sshll.u32 [#allocation2], 4
          %s449 = int_to_ptr.vmem [resolvable:$true] %s448
          %451 = dma.hbm_to_vmem [thread:$0]  %s0, 192, %s449, [#allocation3]
        $region16: #{tpu_custom_call.1} parent=11 // pred_fallthru
          _
        // Predicated region
        $region17: #{tpu_custom_call.1} parent=11 // pred_check
          %p452 = pneg %p75
        $region18: #{tpu_custom_call.1} parent=11 // pred_check_branch
          %454 = sbr.rel (%p452) target = $region20
        $region19: #{tpu_custom_call.1} parent=11 // pred_region
          %s456 = ssub.s32 6144, 6144
          %457 = vsyncadd [#allocation6], %s456
          %s458 = sshll.u32 [#allocation5], 4
          %s459 = int_to_ptr.vmem [resolvable:$true] %s458
          %464 = dma.hbm_to_vmem [thread:$0]  %s1, 6144, %s459, [#allocation6], 64, 64, 4
        $region20: #{tpu_custom_call.1} parent=11 // pred_fallthru
          _
        // Predicated region
        $region21: #{tpu_custom_call.1} parent=11 // pred_check
          %p465 = pneg %p96
        $region22: #{tpu_custom_call.1} parent=11 // pred_check_branch
          %467 = sbr.rel (%p465) target = $region24
        $region23: #{tpu_custom_call.1} parent=11 // pred_region
          %s469 = ssub.s32 16, 16
          %470 = vsyncadd [#allocation6], %s469
          %s472 = sshll.u32 [#allocation7], 4
          %s473 = int_to_ptr.vmem [resolvable:$true] %s472
          %475 = dma.hbm_to_vmem [thread:$0]  %s2, 16, %s473, [#allocation6]
        $region24: #{tpu_custom_call.1} parent=11 // pred_fallthru
          _
        // Predicated region
        $region25: #{tpu_custom_call.1} parent=11 // pred_check
          %p476 = pneg %p117
        $region26: #{tpu_custom_call.1} parent=11 // pred_check_branch
          %478 = sbr.rel (%p476) target = $region28
        $region27: #{tpu_custom_call.1} parent=11 // pred_region
          %s480 = ssub.s32 2048, 2048
          %481 = vsyncadd [#allocation9], %s480
          %s482 = sshll.u32 [#allocation8], 4
          %s483 = int_to_ptr.vmem [resolvable:$true] %s482
          %488 = dma.hbm_to_vmem [thread:$0]  %s3, 2048, %s483, [#allocation9], 64, 64, 4
        $region28: #{tpu_custom_call.1} parent=11 // pred_fallthru
          _
        // Predicated region
        $region29: #{tpu_custom_call.1} parent=11 // pred_check
          %p489 = pneg %p138
        $region30: #{tpu_custom_call.1} parent=11 // pred_check_branch
          %491 = sbr.rel (%p489) target = $region32
        $region31: #{tpu_custom_call.1} parent=11 // pred_region
          _
        $region32: #{tpu_custom_call.1} parent=11 // pred_fallthru
          _
        // Predicated region
        $region33: #{tpu_custom_call.1} parent=11 // pred_check
          %p492 = pneg %p159
        $region34: #{tpu_custom_call.1} parent=11 // pred_check_branch
          %494 = sbr.rel (%p492) target = $region36
        $region35: #{tpu_custom_call.1} parent=11 // pred_region
          %s496 = ssub.s32 2048, 2048
          %497 = vsyncadd [#allocation9], %s496
          %s498 = sshll.u32 [#allocation10], 4
          %s499 = int_to_ptr.vmem [resolvable:$true] %s498
          %504 = dma.hbm_to_vmem [thread:$0]  %s5, 2048, %s499, [#allocation9], 64, 64, 4
        $region36: #{tpu_custom_call.1} parent=11 // pred_fallthru
          _
        // Predicated region
        $region37: #{tpu_custom_call.1} parent=11 // pred_check
          %p505 = pneg %p180
        $region38: #{tpu_custom_call.1} parent=11 // pred_check_branch
          %507 = sbr.rel (%p505) target = $region40
        $region39: #{tpu_custom_call.1} parent=11 // pred_region
          _
        $region40: #{tpu_custom_call.1} parent=11 // pred_fallthru
          _
        // Predicated region
        $region41: #{tpu_custom_call.1} parent=11 // pred_check
          %p508 = pneg %p201
        $region42: #{tpu_custom_call.1} parent=11 // pred_check_branch
          %510 = sbr.rel (%p508) target = $region44
        $region43: #{tpu_custom_call.1} parent=11 // pred_region
          _
        $region44: #{tpu_custom_call.1} parent=11 // pred_fallthru
          _
        // Predicated region
        $region45: #{tpu_custom_call.1} parent=11 // pred_check
          %p511 = pneg %p222
        $region46: #{tpu_custom_call.1} parent=11 // pred_check_branch
          %513 = sbr.rel (%p511) target = $region48
        $region47: #{tpu_custom_call.1} parent=11 // pred_region
          _
        $region48: #{tpu_custom_call.1} parent=11 // pred_fallthru
          _
        // Predicated region
        $region49: #{tpu_custom_call.1} parent=11 // pred_check
          %p514 = pneg %p243
        $region50: #{tpu_custom_call.1} parent=11 // pred_check_branch
          %516 = sbr.rel (%p514) target = $region52
        $region51: #{tpu_custom_call.1} parent=11 // pred_region
          %s518 = ssub.s32 8192, 8192
          %519 = vsyncadd [#allocation12], %s518
          %s520 = sshll.u32 [#allocation11], 4
          %s521 = int_to_ptr.vmem [resolvable:$true] %s520
          %526 = dma.hbm_to_vmem [thread:$0]  %s9, 8192, %s521, [#allocation12], 256, 256, 16
        $region52: #{tpu_custom_call.1} parent=11 // pred_fallthru
          _
        // Predicated region
        $region53: #{tpu_custom_call.1} parent=11 // pred_check
          %p527 = pneg %p264
        $region54: #{tpu_custom_call.1} parent=11 // pred_check_branch
          %529 = sbr.rel (%p527) target = $region56
        $region55: #{tpu_custom_call.1} parent=11 // pred_region
          _
        $region56: #{tpu_custom_call.1} parent=11 // pred_fallthru
          _
        // Predicated region
        $region57: #{tpu_custom_call.1} parent=11 // pred_check
          %p530 = pneg %p285
        $region58: #{tpu_custom_call.1} parent=11 // pred_check_branch
          %532 = sbr.rel (%p530) target = $region60
        $region59: #{tpu_custom_call.1} parent=11 // pred_region
          %s534 = ssub.s32 8192, 8192
          %535 = vsyncadd [#allocation12], %s534
          %s536 = sshll.u32 [#allocation13], 4
          %s537 = int_to_ptr.vmem [resolvable:$true] %s536
          %542 = dma.hbm_to_vmem [thread:$0]  %s11, 8192, %s537, [#allocation12], 64, 64, 4
        $region60: #{tpu_custom_call.1} parent=11 // pred_fallthru
          _
        // Predicated region
        $region61: #{tpu_custom_call.1} parent=11 // pred_check
          %p543 = pneg %p306
        $region62: #{tpu_custom_call.1} parent=11 // pred_check_branch
          %545 = sbr.rel (%p543) target = $region64
        $region63: #{tpu_custom_call.1} parent=11 // pred_region
          _
        $region64: #{tpu_custom_call.1} parent=11 // pred_fallthru
          _
        // Predicated region
        $region65: #{tpu_custom_call.1} parent=11 // pred_check
          %p546 = pneg %p327
        $region66: #{tpu_custom_call.1} parent=11 // pred_check_branch
          %548 = sbr.rel (%p546) target = $region68
        $region67: #{tpu_custom_call.1} parent=11 // pred_region
          _
        $region68: #{tpu_custom_call.1} parent=11 // pred_fallthru
          _
        // Predicated region
        $region69: #{tpu_custom_call.1} parent=11 // pred_check
          %p549 = pneg %p348
        $region70: #{tpu_custom_call.1} parent=11 // pred_check_branch
          %551 = sbr.rel (%p549) target = $region72
        $region71: #{tpu_custom_call.1} parent=11 // pred_region
          _
        $region72: #{tpu_custom_call.1} parent=11 // pred_fallthru
          _
      $region12: #{tpu_custom_call.1} parent=5 // pred_fallthru
        _
      %p552 = scmp.lt.s32.totalorder %s33, 2
      // Predicated region
      $region73: #{tpu_custom_call.1} parent=5 // pred_check
        %p553 = pneg %p552
      $region74: #{tpu_custom_call.1} parent=5 // pred_check_branch
        %555 = sbr.rel (%p553) target = $region76
      $region75: #{tpu_custom_call.1} parent=5 // pred_region
        // Predicated region
        $region77: #{tpu_custom_call.1} parent=75 // pred_check
          %p556 = pneg %p368
        $region78: #{tpu_custom_call.1} parent=75 // pred_check_branch
          %558 = sbr.rel (%p556) target = $region80
        $region79: #{tpu_custom_call.1} parent=75 // pred_region
          %s559 = sand.u32 %s358, 1
          %s560 = scalar_lea.sflag [#allocation15], %s559
          %s561 = sand.u32 %s358, 1
          %s562 = smul.addr %s561, 768
          %s563 = scalar_lea.vmem [#allocation14], %s562
          %s564 = smul.u32 12, %s33
          %s566 = ssub.s32 12288, 12288
          %567 = vsyncadd %s560, %s566
          %s568 = smul.addr %s564, 64
          %s569 = scalar_lea.hbm %s15, %s568
          %s570 = sshll.u32 %s563, 4
          %s571 = int_to_ptr.vmem [resolvable:$true] %s570
          %576 = dma.hbm_to_vmem [thread:$0]  %s569, 12288, %s571, %s560, 1536, 768, 48
        $region80: #{tpu_custom_call.1} parent=75 // pred_fallthru
          _
        // Predicated region
        $region81: #{tpu_custom_call.1} parent=75 // pred_check
          %p577 = pneg %p394
        $region82: #{tpu_custom_call.1} parent=75 // pred_check_branch
          %579 = sbr.rel (%p577) target = $region84
        $region83: #{tpu_custom_call.1} parent=75 // pred_region
          %s580 = smul.u32 12, %s33
          %p581 = scmp.lt.s32.totalorder %s580, 23
          %s582 = scalar_select %p581, %s580, 23
          %s583 = scalar_lea.vmem %s16, %s582
          %s584 = smul.u32 12, %s33
        $region84: #{tpu_custom_call.1} parent=75 // pred_fallthru
          _
      $region76: #{tpu_custom_call.1} parent=5 // pred_fallthru
        _
      %p585 = scmp.le.s32.totalorder 1, %s33
      %p586 = scmp.lt.s32.totalorder %s33, 3
      %p587 = pnand %p585, %p586
      %p588 = pneg %p587
      // Predicated region
      $region85: #{tpu_custom_call.1} parent=5 // pred_check
        _
      $region86: #{tpu_custom_call.1} parent=5 // pred_check_branch
        %590 = sbr.rel (%p587) target = $region88
      $region87: #{tpu_custom_call.1} parent=5 // pred_region
        %s591 = ssub.s32 %s33, 1
        // Predicated region
        $region89: #{tpu_custom_call.1} parent=87 // pred_check
          %p592 = pneg %p54
        $region90: #{tpu_custom_call.1} parent=87 // pred_check_branch
          %594 = sbr.rel (%p592) target = $region92
        $region91: #{tpu_custom_call.1} parent=87 // pred_region
          %595 = dma.done [#allocation3], 192
        $region92: #{tpu_custom_call.1} parent=87 // pred_fallthru
          _
        // Predicated region
        $region93: #{tpu_custom_call.1} parent=87 // pred_check
          %p596 = pneg %p75
        $region94: #{tpu_custom_call.1} parent=87 // pred_check_branch
          %598 = sbr.rel (%p596) target = $region96
        $region95: #{tpu_custom_call.1} parent=87 // pred_region
          %599 = dma.done [#allocation6], 6144
        $region96: #{tpu_custom_call.1} parent=87 // pred_fallthru
          _
        // Predicated region
        $region97: #{tpu_custom_call.1} parent=87 // pred_check
          %p600 = pneg %p96
        $region98: #{tpu_custom_call.1} parent=87 // pred_check_branch
          %602 = sbr.rel (%p600) target = $region100
        $region99: #{tpu_custom_call.1} parent=87 // pred_region
          %603 = dma.done [#allocation6], 16
        $region100: #{tpu_custom_call.1} parent=87 // pred_fallthru
          _
        // Predicated region
        $region101: #{tpu_custom_call.1} parent=87 // pred_check
          %p604 = pneg %p117
        $region102: #{tpu_custom_call.1} parent=87 // pred_check_branch
          %606 = sbr.rel (%p604) target = $region104
        $region103: #{tpu_custom_call.1} parent=87 // pred_region
          %607 = dma.done [#allocation9], 2048
        $region104: #{tpu_custom_call.1} parent=87 // pred_fallthru
          _
        // Predicated region
        $region105: #{tpu_custom_call.1} parent=87 // pred_check
          %p608 = pneg %p159
        $region106: #{tpu_custom_call.1} parent=87 // pred_check_branch
          %610 = sbr.rel (%p608) target = $region108
        $region107: #{tpu_custom_call.1} parent=87 // pred_region
          %611 = dma.done [#allocation9], 2048
        $region108: #{tpu_custom_call.1} parent=87 // pred_fallthru
          _
        // Predicated region
        $region109: #{tpu_custom_call.1} parent=87 // pred_check
          %p612 = pneg %p243
        $region110: #{tpu_custom_call.1} parent=87 // pred_check_branch
          %614 = sbr.rel (%p612) target = $region112
        $region111: #{tpu_custom_call.1} parent=87 // pred_region
          %615 = dma.done [#allocation12], 8192
        $region112: #{tpu_custom_call.1} parent=87 // pred_fallthru
          _
        // Predicated region
        $region113: #{tpu_custom_call.1} parent=87 // pred_check
          %p616 = pneg %p285
        $region114: #{tpu_custom_call.1} parent=87 // pred_check_branch
          %618 = sbr.rel (%p616) target = $region116
        $region115: #{tpu_custom_call.1} parent=87 // pred_region
          %619 = dma.done [#allocation12], 8192
        $region116: #{tpu_custom_call.1} parent=87 // pred_fallthru
          _
        %s620 = sand.u32 %s361, 1
        %s621 = scalar_lea.sflag [#allocation15], %s620
        %s622 = sand.u32 %s361, 1
        %s623 = smul.addr %s622, 768
        %s624 = scalar_lea.vmem [#allocation14], %s623
        // Predicated region
        $region117: #{tpu_custom_call.1} parent=87 // pred_check
          %p625 = pneg %p374
        $region118: #{tpu_custom_call.1} parent=87 // pred_check_branch
          %627 = sbr.rel (%p625) target = $region120
        $region119: #{tpu_custom_call.1} parent=87 // pred_region
          %628 = dma.done %s621, 12288
        $region120: #{tpu_custom_call.1} parent=87 // pred_fallthru
          _
        %p629 = pneg %p54
        %p630 = pneg %p51
        %p631 = pneg %p75
        %p632 = pneg %p72
        %p633 = pneg %p96
        %p634 = pneg %p93
        %p635 = pneg %p117
        %p636 = pneg %p114
        %p637 = pneg %p138
        %p638 = pneg %p135
        %p639 = pneg %p159
        %p640 = pneg %p156
        %p641 = pneg %p180
        %p642 = pneg %p177
        %p643 = pneg %p201
        %p644 = pneg %p198
        %p645 = pneg %p222
        %p646 = pneg %p219
        %p647 = pneg %p243
        %p648 = pneg %p240
        %p649 = pneg %p264
        %p650 = pneg %p261
        %p651 = pneg %p285
        %p652 = pneg %p282
        %p653 = pneg %p306
        %p654 = pneg %p303
        %p655 = pneg %p327
        %p656 = pneg %p324
        %p657 = pneg %p348
        %p658 = pneg %p345
        %s659 = sand.u32 %s361, 1
        %s660 = scalar_lea.sflag [#allocation15], %s659
        %s661 = sand.u32 %s361, 1
        %s662 = smul.addr %s661, 768
        %s663 = scalar_lea.vmem [#allocation14], %s662
        %p664 = pneg %p374
        %p665 = pneg %p371
        %s666 = smul.u32 12, %s38
        %p667 = scmp.lt.s32.totalorder %s666, 23
        %s668 = scalar_select %p667, %s666, 23
        %s669 = scalar_lea.vmem %s16, %s668
        %p670 = pneg %p400
        %p671 = pneg %p397
        %p672 = pneg %p426
        %p673 = pneg %p423
        %s674 = sand.u32 %s413, 1
        %s675 = scalar_lea.sflag [#allocation4], %s674
        %s676 = sand.u32 %s413, 1
        %s677 = smul.addr %s676, 24
        %s678 = scalar_lea.vmem [#allocation16], %s677
        %s679 = smul.u32 12, %s38
        %s680 = smul.u32 12, %s38
        %p681 = scmp.lt.s32.totalorder %s680, 23
        %s682 = scalar_select %p681, %s680, 23
        %s683 = scalar_lea.vmem %s16, %s682
        %s684 = smul.u32 12, %s38
        %s685 = smul.u32 12, %s38
        %v687 = vld [vmem:[#allocation2] sm:$0xff]
        %v688 = vld [vmem:[#allocation2 + $0x8] sm:$0xf]
        %v691 = vcombine.high %v687, %v687
        %v693 = vunpack.c.l.s4 1983009808
        %v694 = vunpack.c.0.s8 %v693
        %v695 = vlaneseq
        %v696 = vshrl.u32 %v695, 7
        %v697 = vsub.s32 %v694, %v696
        %v698 = vrot.slane %v687, %v697
        %v700 = vunpack.c.l.s4 1983009808
        %v701 = vunpack.c.0.s8 %v700
        %v702 = vlaneseq
        %v703 = vshrl.u32 %v702, 7
        %v704 = vsub.s32 %v701, %v703
        %v705 = vrot.slane %v691, %v704
        %v706 = vcombine.high %v698, %v698
        %v707 = vcombine.high %v705, %v705
        %v709 = vunpack.c.l.s4 1983009808
        %v710 = vunpack.c.0.s8 %v709
        %v711 = vlaneseq
        %v712 = vshrl.u32 %v711, 7
        %v713 = vsub.s32 %v710, %v712
        %v714 = vrot.slane %v688, %v713
        %v715 = vcombine.high %v714, %v714
        %v722 = vpack.c.bf16 %v698, %v698
        %v723 = vpack.c.bf16 %v706, %v706
        %v724 = vpack.c.bf16 %v705, %v705
        %v725 = vpack.c.bf16 %v707, %v707
        %v726 = vpack.c.bf16 %v714, %v714
        %v727 = vpack.c.bf16 %v715, %v715
        %v728 = vld [vmem:[#allocation5] sm:$0xf]
        %v729 = vld [vmem:[#allocation5 + $0x4] sm:$0xf]
        %v730 = vld [vmem:[#allocation5 + $0x8] sm:$0xf]
        %v731 = vld [vmem:[#allocation5 + $0xc] sm:$0xf]
        %v732 = vld [vmem:[#allocation5 + $0x10] sm:$0xf]
        %v733 = vld [vmem:[#allocation5 + $0x14] sm:$0xf]
        %v734 = vld [vmem:[#allocation5 + $0x18] sm:$0xf]
        %v735 = vld [vmem:[#allocation5 + $0x1c] sm:$0xf]
        %v736 = vld [vmem:[#allocation5 + $0x20] sm:$0xf]
        %v737 = vld [vmem:[#allocation5 + $0x24] sm:$0xf]
        %v738 = vld [vmem:[#allocation5 + $0x28] sm:$0xf]
        %v739 = vld [vmem:[#allocation5 + $0x2c] sm:$0xf]
        %v740 = vld [vmem:[#allocation5 + $0x30] sm:$0xf]
        %v741 = vld [vmem:[#allocation5 + $0x34] sm:$0xf]
        %v742 = vld [vmem:[#allocation5 + $0x38] sm:$0xf]
        %v743 = vld [vmem:[#allocation5 + $0x3c] sm:$0xf]
        %v744 = vld [vmem:[#allocation5 + $0x40] sm:$0xf]
        %v745 = vld [vmem:[#allocation5 + $0x44] sm:$0xf]
        %v746 = vld [vmem:[#allocation5 + $0x48] sm:$0xf]
        %v747 = vld [vmem:[#allocation5 + $0x4c] sm:$0xf]
        %v748 = vld [vmem:[#allocation5 + $0x50] sm:$0xf]
        %v749 = vld [vmem:[#allocation5 + $0x54] sm:$0xf]
        %v750 = vld [vmem:[#allocation5 + $0x58] sm:$0xf]
        %v751 = vld [vmem:[#allocation5 + $0x5c] sm:$0xf]
        %v752 = vld [vmem:[#allocation5 + $0x60] sm:$0xf]
        %v753 = vld [vmem:[#allocation5 + $0x64] sm:$0xf]
        %v754 = vld [vmem:[#allocation5 + $0x68] sm:$0xf]
        %v755 = vld [vmem:[#allocation5 + $0x6c] sm:$0xf]
        %v756 = vld [vmem:[#allocation5 + $0x70] sm:$0xf]
        %v757 = vld [vmem:[#allocation5 + $0x74] sm:$0xf]
        %v758 = vld [vmem:[#allocation5 + $0x78] sm:$0xf]
        %v759 = vld [vmem:[#allocation5 + $0x7c] sm:$0xf]
        %v760 = vld [vmem:[#allocation5 + $0x80] sm:$0xf]
        %v761 = vld [vmem:[#allocation5 + $0x84] sm:$0xf]
        %v762 = vld [vmem:[#allocation5 + $0x88] sm:$0xf]
        %v763 = vld [vmem:[#allocation5 + $0x8c] sm:$0xf]
        %v764 = vld [vmem:[#allocation5 + $0x90] sm:$0xf]
        %v765 = vld [vmem:[#allocation5 + $0x94] sm:$0xf]
        %v766 = vld [vmem:[#allocation5 + $0x98] sm:$0xf]
        %v767 = vld [vmem:[#allocation5 + $0x9c] sm:$0xf]
        %v768 = vld [vmem:[#allocation5 + $0xa0] sm:$0xf]
        %v769 = vld [vmem:[#allocation5 + $0xa4] sm:$0xf]
        %v770 = vld [vmem:[#allocation5 + $0xa8] sm:$0xf]
        %v771 = vld [vmem:[#allocation5 + $0xac] sm:$0xf]
        %v772 = vld [vmem:[#allocation5 + $0xb0] sm:$0xf]
        %v773 = vld [vmem:[#allocation5 + $0xb4] sm:$0xf]
        %v774 = vld [vmem:[#allocation5 + $0xb8] sm:$0xf]
        %v775 = vld [vmem:[#allocation5 + $0xbc] sm:$0xf]
        %v776 = vld [vmem:[#allocation5 + $0xc0] sm:$0xf]
        %v777 = vld [vmem:[#allocation5 + $0xc4] sm:$0xf]
        %v778 = vld [vmem:[#allocation5 + $0xc8] sm:$0xf]
        %v779 = vld [vmem:[#allocation5 + $0xcc] sm:$0xf]
        %v780 = vld [vmem:[#allocation5 + $0xd0] sm:$0xf]
        %v781 = vld [vmem:[#allocation5 + $0xd4] sm:$0xf]
        %v782 = vld [vmem:[#allocation5 + $0xd8] sm:$0xf]
        %v783 = vld [vmem:[#allocation5 + $0xdc] sm:$0xf]
        %v784 = vld [vmem:[#allocation5 + $0xe0] sm:$0xf]
        %v785 = vld [vmem:[#allocation5 + $0xe4] sm:$0xf]
        %v786 = vld [vmem:[#allocation5 + $0xe8] sm:$0xf]
        %v787 = vld [vmem:[#allocation5 + $0xec] sm:$0xf]
        %v788 = vld [vmem:[#allocation5 + $0xf0] sm:$0xf]
        %v789 = vld [vmem:[#allocation5 + $0xf4] sm:$0xf]
        %v790 = vld [vmem:[#allocation5 + $0xf8] sm:$0xf]
        %v791 = vld [vmem:[#allocation5 + $0xfc] sm:$0xf]
        %v792 = vld [vmem:[#allocation5 + $0x100] sm:$0xf]
        %v793 = vld [vmem:[#allocation5 + $0x104] sm:$0xf]
        %v794 = vld [vmem:[#allocation5 + $0x108] sm:$0xf]
        %v795 = vld [vmem:[#allocation5 + $0x10c] sm:$0xf]
        %v796 = vld [vmem:[#allocation5 + $0x110] sm:$0xf]
        %v797 = vld [vmem:[#allocation5 + $0x114] sm:$0xf]
        %v798 = vld [vmem:[#allocation5 + $0x118] sm:$0xf]
        %v799 = vld [vmem:[#allocation5 + $0x11c] sm:$0xf]
        %v800 = vld [vmem:[#allocation5 + $0x120] sm:$0xf]
        %v801 = vld [vmem:[#allocation5 + $0x124] sm:$0xf]
        %v802 = vld [vmem:[#allocation5 + $0x128] sm:$0xf]
        %v803 = vld [vmem:[#allocation5 + $0x12c] sm:$0xf]
        %v804 = vld [vmem:[#allocation5 + $0x130] sm:$0xf]
        %v805 = vld [vmem:[#allocation5 + $0x134] sm:$0xf]
        %v806 = vld [vmem:[#allocation5 + $0x138] sm:$0xf]
        %v807 = vld [vmem:[#allocation5 + $0x13c] sm:$0xf]
        %v808 = vld [vmem:[#allocation5 + $0x140] sm:$0xf]
        %v809 = vld [vmem:[#allocation5 + $0x144] sm:$0xf]
        %v810 = vld [vmem:[#allocation5 + $0x148] sm:$0xf]
        %v811 = vld [vmem:[#allocation5 + $0x14c] sm:$0xf]
        %v812 = vld [vmem:[#allocation5 + $0x150] sm:$0xf]
        %v813 = vld [vmem:[#allocation5 + $0x154] sm:$0xf]
        %v814 = vld [vmem:[#allocation5 + $0x158] sm:$0xf]
        %v815 = vld [vmem:[#allocation5 + $0x15c] sm:$0xf]
        %v816 = vld [vmem:[#allocation5 + $0x160] sm:$0xf]
        %v817 = vld [vmem:[#allocation5 + $0x164] sm:$0xf]
        %v818 = vld [vmem:[#allocation5 + $0x168] sm:$0xf]
        %v819 = vld [vmem:[#allocation5 + $0x16c] sm:$0xf]
        %v820 = vld [vmem:[#allocation5 + $0x170] sm:$0xf]
        %v821 = vld [vmem:[#allocation5 + $0x174] sm:$0xf]
        %v822 = vld [vmem:[#allocation5 + $0x178] sm:$0xf]
        %v823 = vld [vmem:[#allocation5 + $0x17c] sm:$0xf]
        %v824 = vld [vmem:[#allocation7] sm:$0x1]
        %v826 = vlaneseq
        %v827 = vshrl.u32 %v826, 7
        %v828 = vsub.s32 0, %v827
        %v829 = vrot.slane %v824, %v828
        %v927 = vunpack.c.l.b16 %v728
        %v928 = vunpack.c.l.b16 %v729
        %v929 = vunpack.c.l.b16 %v730
        %v930 = vunpack.c.l.b16 %v731
        %v931 = vunpack.c.l.b16 %v732
        %v932 = vunpack.c.l.b16 %v733
        %v933 = vunpack.c.l.b16 %v734
        %v934 = vunpack.c.l.b16 %v735
        %v935 = vunpack.c.l.b16 %v736
        %v936 = vunpack.c.l.b16 %v737
        %v937 = vunpack.c.l.b16 %v738
        %v938 = vunpack.c.l.b16 %v739
        %v939 = vunpack.c.l.b16 %v740
        %v940 = vunpack.c.l.b16 %v741
        %v941 = vunpack.c.l.b16 %v742
        %v942 = vunpack.c.l.b16 %v743
        %v943 = vunpack.c.l.b16 %v744
        %v944 = vunpack.c.l.b16 %v745
        %v945 = vunpack.c.l.b16 %v746
        %v946 = vunpack.c.l.b16 %v747
        %v947 = vunpack.c.l.b16 %v748
        %v948 = vunpack.c.l.b16 %v749
        %v949 = vunpack.c.l.b16 %v750
        %v950 = vunpack.c.l.b16 %v751
        %v951 = vunpack.c.l.b16 %v752
        %v952 = vunpack.c.l.b16 %v753
        %v953 = vunpack.c.l.b16 %v754
        %v954 = vunpack.c.l.b16 %v755
        %v955 = vunpack.c.l.b16 %v756
        %v956 = vunpack.c.l.b16 %v757
        %v957 = vunpack.c.l.b16 %v758
        %v958 = vunpack.c.l.b16 %v759
        %v959 = vunpack.c.l.b16 %v760
        %v960 = vunpack.c.l.b16 %v761
        %v961 = vunpack.c.l.b16 %v762
        %v962 = vunpack.c.l.b16 %v763
        %v963 = vunpack.c.l.b16 %v764
        %v964 = vunpack.c.l.b16 %v765
        %v965 = vunpack.c.l.b16 %v766
        %v966 = vunpack.c.l.b16 %v767
        %v967 = vunpack.c.l.b16 %v768
        %v968 = vunpack.c.l.b16 %v769
        %v969 = vunpack.c.l.b16 %v770
        %v970 = vunpack.c.l.b16 %v771
        %v971 = vunpack.c.l.b16 %v772
        %v972 = vunpack.c.l.b16 %v773
        %v973 = vunpack.c.l.b16 %v774
        %v974 = vunpack.c.l.b16 %v775
        %v975 = vunpack.c.l.b16 %v776
        %v976 = vunpack.c.l.b16 %v777
        %v977 = vunpack.c.l.b16 %v778
        %v978 = vunpack.c.l.b16 %v779
        %v979 = vunpack.c.l.b16 %v780
        %v980 = vunpack.c.l.b16 %v781
        %v981 = vunpack.c.l.b16 %v782
        %v982 = vunpack.c.l.b16 %v783
        %v983 = vunpack.c.l.b16 %v784
        %v984 = vunpack.c.l.b16 %v785
        %v985 = vunpack.c.l.b16 %v786
        %v986 = vunpack.c.l.b16 %v787
        %v987 = vunpack.c.l.b16 %v788
        %v988 = vunpack.c.l.b16 %v789
        %v989 = vunpack.c.l.b16 %v790
        %v990 = vunpack.c.l.b16 %v791
        %v991 = vunpack.c.l.b16 %v792
        %v992 = vunpack.c.l.b16 %v793
        %v993 = vunpack.c.l.b16 %v794
        %v994 = vunpack.c.l.b16 %v795
        %v995 = vunpack.c.l.b16 %v796
        %v996 = vunpack.c.l.b16 %v797
        %v997 = vunpack.c.l.b16 %v798
        %v998 = vunpack.c.l.b16 %v799
        %v999 = vunpack.c.l.b16 %v800
        %v1000 = vunpack.c.l.b16 %v801
        %v1001 = vunpack.c.l.b16 %v802
        %v1002 = vunpack.c.l.b16 %v803
        %v1003 = vunpack.c.l.b16 %v804
        %v1004 = vunpack.c.l.b16 %v805
        %v1005 = vunpack.c.l.b16 %v806
        %v1006 = vunpack.c.l.b16 %v807
        %v1007 = vunpack.c.l.b16 %v808
        %v1008 = vunpack.c.l.b16 %v809
        %v1009 = vunpack.c.l.b16 %v810
        %v1010 = vunpack.c.l.b16 %v811
        %v1011 = vunpack.c.l.b16 %v812
        %v1012 = vunpack.c.l.b16 %v813
        %v1013 = vunpack.c.l.b16 %v814
        %v1014 = vunpack.c.l.b16 %v815
        %v1015 = vunpack.c.l.b16 %v816
        %v1016 = vunpack.c.l.b16 %v817
        %v1017 = vunpack.c.l.b16 %v818
        %v1018 = vunpack.c.l.b16 %v819
        %v1019 = vunpack.c.l.b16 %v820
        %v1020 = vunpack.c.l.b16 %v821
        %v1021 = vunpack.c.l.b16 %v822
        %v1022 = vunpack.c.l.b16 %v823
        %v1023 = vpack.c.b16 %v928, %v927
        %v1024 = vpack.c.b16 %v930, %v929
        %v1025 = vpack.c.b16 %v932, %v931
        %v1026 = vpack.c.b16 %v934, %v933
        %v1027 = vpack.c.b16 %v936, %v935
        %v1028 = vpack.c.b16 %v938, %v937
        %v1029 = vpack.c.b16 %v940, %v939
        %v1030 = vpack.c.b16 %v942, %v941
        %v1031 = vpack.c.b16 %v944, %v943
        %v1032 = vpack.c.b16 %v946, %v945
        %v1033 = vpack.c.b16 %v948, %v947
        %v1034 = vpack.c.b16 %v950, %v949
        %v1035 = vpack.c.b16 %v952, %v951
        %v1036 = vpack.c.b16 %v954, %v953
        %v1037 = vpack.c.b16 %v956, %v955
        %v1038 = vpack.c.b16 %v958, %v957
        %v1039 = vpack.c.b16 %v960, %v959
        %v1040 = vpack.c.b16 %v962, %v961
        %v1041 = vpack.c.b16 %v964, %v963
        %v1042 = vpack.c.b16 %v966, %v965
        %v1043 = vpack.c.b16 %v968, %v967
        %v1044 = vpack.c.b16 %v970, %v969
        %v1045 = vpack.c.b16 %v972, %v971
        %v1046 = vpack.c.b16 %v974, %v973
        %v1047 = vpack.c.b16 %v976, %v975
        %v1048 = vpack.c.b16 %v978, %v977
        %v1049 = vpack.c.b16 %v980, %v979
        %v1050 = vpack.c.b16 %v982, %v981
        %v1051 = vpack.c.b16 %v984, %v983
        %v1052 = vpack.c.b16 %v986, %v985
        %v1053 = vpack.c.b16 %v988, %v987
        %v1054 = vpack.c.b16 %v990, %v989
        %v1055 = vpack.c.b16 %v992, %v991
        %v1056 = vpack.c.b16 %v994, %v993
        %v1057 = vpack.c.b16 %v996, %v995
        %v1058 = vpack.c.b16 %v998, %v997
        %v1059 = vpack.c.b16 %v1000, %v999
        %v1060 = vpack.c.b16 %v1002, %v1001
        %v1061 = vpack.c.b16 %v1004, %v1003
        %v1062 = vpack.c.b16 %v1006, %v1005
        %v1063 = vpack.c.b16 %v1008, %v1007
        %v1064 = vpack.c.b16 %v1010, %v1009
        %v1065 = vpack.c.b16 %v1012, %v1011
        %v1066 = vpack.c.b16 %v1014, %v1013
        %v1067 = vpack.c.b16 %v1016, %v1015
        %v1068 = vpack.c.b16 %v1018, %v1017
        %v1069 = vpack.c.b16 %v1020, %v1019
        %v1070 = vpack.c.b16 %v1022, %v1021
        %1119 = vmatprep.subr.bf16.mxu0 0
        %1120 = vmatpush1.bf16.msra.mxu0 %v1023
        %1121 = vmatprep.subr.bf16.mxu0 0
        %1122 = vmatpush1.bf16.msra.mxu0 %v1024
        %1123 = vmatprep.subr.bf16.mxu0 0
        %1124 = vmatpush1.bf16.msra.mxu0 %v1025
        %1125 = vmatprep.subr.bf16.mxu0 0
        %1126 = vmatpush1.bf16.msra.mxu0 %v1026
        %1127 = vmatprep.subr.bf16.mxu0 0
        %1128 = vmatpush1.bf16.msra.mxu0 %v1027
        %1129 = vmatprep.subr.bf16.mxu0 0
        %1130 = vmatpush1.bf16.msra.mxu0 %v1028
        %1131 = vmatprep.subr.bf16.mxu0 0
        %1132 = vmatpush1.bf16.msra.mxu0 %v1029
        %1133 = vmatprep.subr.bf16.mxu0 0
        %1134 = vmatpush1.bf16.msra.mxu0 %v1030
        %1135 = vmatprep.subr.bf16.mxu0 0
        %1136 = vmatpush1.bf16.msra.mxu0 %v1031
        %1137 = vmatprep.subr.bf16.mxu0 0
        %1138 = vmatpush1.bf16.msra.mxu0 %v1032
        %1139 = vmatprep.subr.bf16.mxu0 0
        %1140 = vmatpush1.bf16.msra.mxu0 %v1033
        %1141 = vmatprep.subr.bf16.mxu0 0
        %1142 = vmatpush1.bf16.msra.mxu0 %v1034
        %1143 = vmatprep.subr.bf16.mxu0 0
        %1144 = vmatpush1.bf16.msra.mxu0 %v1035
        %1145 = vmatprep.subr.bf16.mxu0 0
        %1146 = vmatpush1.bf16.msra.mxu0 %v1036
        %1147 = vmatprep.subr.bf16.mxu0 0
        %1148 = vmatpush1.bf16.msra.mxu0 %v1037
        %1149 = vmatprep.subr.bf16.mxu0 0
        %1150 = vmatpush1.bf16.msra.mxu0 %v1038
        %1151 = vmatprep.mubr.bf16.mxu0 %v723
        %1152 = vmatmul.mubr.bf16.gmra.mrb[0].mxu0 %v722
        %v1153 = vpop.f32.mrb[0].mxu0
        %v1154 = vadd.f32 %v829, %v1153
        %v1155 = vpop.f32.mrb[0].mxu0
        %v1156 = vpop.f32.mrb[0].mxu0
        %v1157 = vpop.f32.mrb[0].mxu0
        %1158 = vdwg.mxu0
        %1159 = vmatprep.subr.bf16.mxu0 0
        %1160 = vmatpush1.bf16.msra.mxu0 %v1039
        %1161 = vmatprep.subr.bf16.mxu0 0
        %1162 = vmatpush1.bf16.msra.mxu0 %v1040
        %1163 = vmatprep.subr.bf16.mxu0 0
        %1164 = vmatpush1.bf16.msra.mxu0 %v1041
        %1165 = vmatprep.subr.bf16.mxu0 0
        %1166 = vmatpush1.bf16.msra.mxu0 %v1042
        %1167 = vmatprep.subr.bf16.mxu0 0
        %1168 = vmatpush1.bf16.msra.mxu0 %v1043
        %1169 = vmatprep.subr.bf16.mxu0 0
        %1170 = vmatpush1.bf16.msra.mxu0 %v1044
        %1171 = vmatprep.subr.bf16.mxu0 0
        %1172 = vmatpush1.bf16.msra.mxu0 %v1045
        %1173 = vmatprep.subr.bf16.mxu0 0
        %1174 = vmatpush1.bf16.msra.mxu0 %v1046
        %1175 = vmatprep.subr.bf16.mxu0 0
        %1176 = vmatpush1.bf16.msra.mxu0 %v1047
        %1177 = vmatprep.subr.bf16.mxu0 0
        %1178 = vmatpush1.bf16.msra.mxu0 %v1048
        %1179 = vmatprep.subr.bf16.mxu0 0
        %1180 = vmatpush1.bf16.msra.mxu0 %v1049
        %1181 = vmatprep.subr.bf16.mxu0 0
        %1182 = vmatpush1.bf16.msra.mxu0 %v1050
        %1183 = vmatprep.subr.bf16.mxu0 0
        %1184 = vmatpush1.bf16.msra.mxu0 %v1051
        %1185 = vmatprep.subr.bf16.mxu0 0
        %1186 = vmatpush1.bf16.msra.mxu0 %v1052
        %1187 = vmatprep.subr.bf16.mxu0 0
        %1188 = vmatpush1.bf16.msra.mxu0 %v1053
        %1189 = vmatprep.subr.bf16.mxu0 0
        %1190 = vmatpush1.bf16.msra.mxu0 %v1054
        %1191 = vmatprep.mubr.bf16.mxu0 %v725
        %1192 = vmatmul.mubr.bf16.gmra.mrb[0].mxu0 %v724
        %v1193 = vpop.f32.mrb[0].mxu0
        %v1194 = vadd.f32 %v1154, %v1193
        %v1195 = vpop.f32.mrb[0].mxu0
        %v1196 = vpop.f32.mrb[0].mxu0
        %v1197 = vpop.f32.mrb[0].mxu0
        %1198 = vdwg.mxu0
        %1199 = vmatprep.subr.bf16.mxu0 0
        %1200 = vmatpush1.bf16.msra.mxu0 %v1055
        %1201 = vmatprep.subr.bf16.mxu0 0
        %1202 = vmatpush1.bf16.msra.mxu0 %v1056
        %1203 = vmatprep.subr.bf16.mxu0 0
        %1204 = vmatpush1.bf16.msra.mxu0 %v1057
        %1205 = vmatprep.subr.bf16.mxu0 0
        %1206 = vmatpush1.bf16.msra.mxu0 %v1058
        %1207 = vmatprep.subr.bf16.mxu0 0
        %1208 = vmatpush1.bf16.msra.mxu0 %v1059
        %1209 = vmatprep.subr.bf16.mxu0 0
        %1210 = vmatpush1.bf16.msra.mxu0 %v1060
        %1211 = vmatprep.subr.bf16.mxu0 0
        %1212 = vmatpush1.bf16.msra.mxu0 %v1061
        %1213 = vmatprep.subr.bf16.mxu0 0
        %1214 = vmatpush1.bf16.msra.mxu0 %v1062
        %1215 = vmatprep.subr.bf16.mxu0 0
        %1216 = vmatpush1.bf16.msra.mxu0 %v1063
        %1217 = vmatprep.subr.bf16.mxu0 0
        %1218 = vmatpush1.bf16.msra.mxu0 %v1064
        %1219 = vmatprep.subr.bf16.mxu0 0
        %1220 = vmatpush1.bf16.msra.mxu0 %v1065
        %1221 = vmatprep.subr.bf16.mxu0 0
        %1222 = vmatpush1.bf16.msra.mxu0 %v1066
        %1223 = vmatprep.subr.bf16.mxu0 0
        %1224 = vmatpush1.bf16.msra.mxu0 %v1067
        %1225 = vmatprep.subr.bf16.mxu0 0
        %1226 = vmatpush1.bf16.msra.mxu0 %v1068
        %1227 = vmatprep.subr.bf16.mxu0 0
        %1228 = vmatpush1.bf16.msra.mxu0 %v1069
        %1229 = vmatprep.subr.bf16.mxu0 0
        %1230 = vmatpush1.bf16.msra.mxu0 %v1070
        %1231 = vmatprep.mubr.bf16.mxu0 %v727
        %1232 = vmatmul.mubr.bf16.gmra.mrb[0].mxu0 %v726
        %v1233 = vpop.f32.mrb[0].mxu0
        %v1234 = vadd.f32 %v1194, %v1233
        %v1235 = vpop.f32.mrb[0].mxu0
        %v1236 = vpop.f32.mrb[0].mxu0
        %v1237 = vpop.f32.mrb[0].mxu0
        %1238 = vdwg.mxu0
        %v1239 = vpack.c.bf16 %v1234, %v1234
        %v1240 = vld [vmem:[#allocation8] sm:$0xf]
        %v1241 = vld [vmem:[#allocation8 + $0x4] sm:$0xf]
        %v1242 = vld [vmem:[#allocation8 + $0x8] sm:$0xf]
        %v1243 = vld [vmem:[#allocation8 + $0xc] sm:$0xf]
        %v1244 = vld [vmem:[#allocation8 + $0x10] sm:$0xf]
        %v1245 = vld [vmem:[#allocation8 + $0x14] sm:$0xf]
        %v1246 = vld [vmem:[#allocation8 + $0x18] sm:$0xf]
        %v1247 = vld [vmem:[#allocation8 + $0x1c] sm:$0xf]
        %v1248 = vld [vmem:[#allocation8 + $0x20] sm:$0xf]
        %v1249 = vld [vmem:[#allocation8 + $0x24] sm:$0xf]
        %v1250 = vld [vmem:[#allocation8 + $0x28] sm:$0xf]
        %v1251 = vld [vmem:[#allocation8 + $0x2c] sm:$0xf]
        %v1252 = vld [vmem:[#allocation8 + $0x30] sm:$0xf]
        %v1253 = vld [vmem:[#allocation8 + $0x34] sm:$0xf]
        %v1254 = vld [vmem:[#allocation8 + $0x38] sm:$0xf]
        %v1255 = vld [vmem:[#allocation8 + $0x3c] sm:$0xf]
        %v1256 = vld [vmem:[%s4] sm:$0x1]
        %v1258 = vlaneseq
        %v1259 = vshrl.u32 %v1258, 7
        %v1260 = vsub.s32 0, %v1259
        %v1261 = vrot.slane %v1256, %v1260
        %v1279 = vunpack.c.l.b16 %v1240
        %v1280 = vunpack.c.l.b16 %v1241
        %v1281 = vunpack.c.l.b16 %v1242
        %v1282 = vunpack.c.l.b16 %v1243
        %v1283 = vunpack.c.l.b16 %v1244
        %v1284 = vunpack.c.l.b16 %v1245
        %v1285 = vunpack.c.l.b16 %v1246
        %v1286 = vunpack.c.l.b16 %v1247
        %v1287 = vunpack.c.l.b16 %v1248
        %v1288 = vunpack.c.l.b16 %v1249
        %v1289 = vunpack.c.l.b16 %v1250
        %v1290 = vunpack.c.l.b16 %v1251
        %v1291 = vunpack.c.l.b16 %v1252
        %v1292 = vunpack.c.l.b16 %v1253
        %v1293 = vunpack.c.l.b16 %v1254
        %v1294 = vunpack.c.l.b16 %v1255
        %v1295 = vpack.c.b16 %v1280, %v1279
        %v1296 = vpack.c.b16 %v1282, %v1281
        %v1297 = vpack.c.b16 %v1284, %v1283
        %v1298 = vpack.c.b16 %v1286, %v1285
        %v1299 = vpack.c.b16 %v1288, %v1287
        %v1300 = vpack.c.b16 %v1290, %v1289
        %v1301 = vpack.c.b16 %v1292, %v1291
        %v1302 = vpack.c.b16 %v1294, %v1293
        %1311 = vmatprep.subr.bf16.mxu0 0
        %1312 = vmatpush1.bf16.msra.mxu0 %v1295
        %1313 = vmatprep.subr.bf16.mxu0 0
        %1314 = vmatpush1.bf16.msra.mxu0 %v1296
        %1315 = vmatprep.subr.bf16.mxu0 0
        %1316 = vmatpush1.bf16.msra.mxu0 %v1297
        %1317 = vmatprep.subr.bf16.mxu0 0
        %1318 = vmatpush1.bf16.msra.mxu0 %v1298
        %1319 = vmatprep.subr.bf16.mxu0 0
        %1320 = vmatpush1.bf16.msra.mxu0 %v1299
        %1321 = vmatprep.subr.bf16.mxu0 0
        %1322 = vmatpush1.bf16.msra.mxu0 %v1300
        %1323 = vmatprep.subr.bf16.mxu0 0
        %1324 = vmatpush1.bf16.msra.mxu0 %v1301
        %1325 = vmatprep.subr.bf16.mxu0 0
        %1326 = vmatpush1.bf16.msra.mxu0 %v1302
        %1327 = vmatprep.subr.bf16.mxu0 0
        %1328 = vmatpush1.bf16.msra.mxu0 0
        %1329 = vmatprep.subr.bf16.mxu0 0
        %1330 = vmatpush1.bf16.msra.mxu0 0
        %1331 = vmatprep.subr.bf16.mxu0 0
        %1332 = vmatpush1.bf16.msra.mxu0 0
        %1333 = vmatprep.subr.bf16.mxu0 0
        %1334 = vmatpush1.bf16.msra.mxu0 0
        %1335 = vmatprep.subr.bf16.mxu0 0
        %1336 = vmatpush1.bf16.msra.mxu0 0
        %1337 = vmatprep.subr.bf16.mxu0 0
        %1338 = vmatpush1.bf16.msra.mxu0 0
        %1339 = vmatprep.subr.bf16.mxu0 0
        %1340 = vmatpush1.bf16.msra.mxu0 0
        %1341 = vmatprep.subr.bf16.mxu0 0
        %1342 = vmatpush1.bf16.msra.mxu0 0
        %1343 = vmatprep.mubr.bf16.mxu0 0
        %1344 = vmatmul.mubr.bf16.gmra.mrb[0].mxu0 %v1239
        %v1345 = vpop.f32.mrb[0].mxu0
        %v1346 = vadd.f32 %v1261, %v1345
        %v1347 = vpop.f32.mrb[0].mxu0
        %v1348 = vpop.f32.mrb[0].mxu0
        %v1349 = vpop.f32.mrb[0].mxu0
        %1350 = vdwg.mxu0
        %v1351 = vpack.c.bf16 %v1346, %v1346
        %v1352 = vld [vmem:[#allocation10] sm:$0xf]
        %v1353 = vld [vmem:[#allocation10 + $0x4] sm:$0xf]
        %v1354 = vld [vmem:[#allocation10 + $0x8] sm:$0xf]
        %v1355 = vld [vmem:[#allocation10 + $0xc] sm:$0xf]
        %v1356 = vld [vmem:[#allocation10 + $0x10] sm:$0xf]
        %v1357 = vld [vmem:[#allocation10 + $0x14] sm:$0xf]
        %v1358 = vld [vmem:[#allocation10 + $0x18] sm:$0xf]
        %v1359 = vld [vmem:[#allocation10 + $0x1c] sm:$0xf]
        %v1360 = vld [vmem:[#allocation10 + $0x20] sm:$0xf]
        %v1361 = vld [vmem:[#allocation10 + $0x24] sm:$0xf]
        %v1362 = vld [vmem:[#allocation10 + $0x28] sm:$0xf]
        %v1363 = vld [vmem:[#allocation10 + $0x2c] sm:$0xf]
        %v1364 = vld [vmem:[#allocation10 + $0x30] sm:$0xf]
        %v1365 = vld [vmem:[#allocation10 + $0x34] sm:$0xf]
        %v1366 = vld [vmem:[#allocation10 + $0x38] sm:$0xf]
        %v1367 = vld [vmem:[#allocation10 + $0x3c] sm:$0xf]
        %v1368 = vld [vmem:[%s6] sm:$0x1]
        %v1370 = vlaneseq
        %v1371 = vshrl.u32 %v1370, 7
        %v1372 = vsub.s32 0, %v1371
        %v1373 = vrot.slane %v1368, %v1372
        %v1391 = vunpack.c.l.b16 %v1352
        %v1392 = vunpack.c.l.b16 %v1353
        %v1393 = vunpack.c.l.b16 %v1354
        %v1394 = vunpack.c.l.b16 %v1355
        %v1395 = vunpack.c.l.b16 %v1356
        %v1396 = vunpack.c.l.b16 %v1357
        %v1397 = vunpack.c.l.b16 %v1358
        %v1398 = vunpack.c.l.b16 %v1359
        %v1399 = vunpack.c.l.b16 %v1360
        %v1400 = vunpack.c.l.b16 %v1361
        %v1401 = vunpack.c.l.b16 %v1362
        %v1402 = vunpack.c.l.b16 %v1363
        %v1403 = vunpack.c.l.b16 %v1364
        %v1404 = vunpack.c.l.b16 %v1365
        %v1405 = vunpack.c.l.b16 %v1366
        %v1406 = vunpack.c.l.b16 %v1367
        %v1407 = vpack.c.b16 %v1392, %v1391
        %v1408 = vpack.c.b16 %v1394, %v1393
        %v1409 = vpack.c.b16 %v1396, %v1395
        %v1410 = vpack.c.b16 %v1398, %v1397
        %v1411 = vpack.c.b16 %v1400, %v1399
        %v1412 = vpack.c.b16 %v1402, %v1401
        %v1413 = vpack.c.b16 %v1404, %v1403
        %v1414 = vpack.c.b16 %v1406, %v1405
        %1423 = vmatprep.subr.bf16.mxu0 0
        %1424 = vmatpush1.bf16.msra.mxu0 %v1407
        %1425 = vmatprep.subr.bf16.mxu0 0
        %1426 = vmatpush1.bf16.msra.mxu0 %v1408
        %1427 = vmatprep.subr.bf16.mxu0 0
        %1428 = vmatpush1.bf16.msra.mxu0 %v1409
        %1429 = vmatprep.subr.bf16.mxu0 0
        %1430 = vmatpush1.bf16.msra.mxu0 %v1410
        %1431 = vmatprep.subr.bf16.mxu0 0
        %1432 = vmatpush1.bf16.msra.mxu0 %v1411
        %1433 = vmatprep.subr.bf16.mxu0 0
        %1434 = vmatpush1.bf16.msra.mxu0 %v1412
        %1435 = vmatprep.subr.bf16.mxu0 0
        %1436 = vmatpush1.bf16.msra.mxu0 %v1413
        %1437 = vmatprep.subr.bf16.mxu0 0
        %1438 = vmatpush1.bf16.msra.mxu0 %v1414
        %1439 = vmatprep.subr.bf16.mxu0 0
        %1440 = vmatpush1.bf16.msra.mxu0 0
        %1441 = vmatprep.subr.bf16.mxu0 0
        %1442 = vmatpush1.bf16.msra.mxu0 0
        %1443 = vmatprep.subr.bf16.mxu0 0
        %1444 = vmatpush1.bf16.msra.mxu0 0
        %1445 = vmatprep.subr.bf16.mxu0 0
        %1446 = vmatpush1.bf16.msra.mxu0 0
        %1447 = vmatprep.subr.bf16.mxu0 0
        %1448 = vmatpush1.bf16.msra.mxu0 0
        %1449 = vmatprep.subr.bf16.mxu0 0
        %1450 = vmatpush1.bf16.msra.mxu0 0
        %1451 = vmatprep.subr.bf16.mxu0 0
        %1452 = vmatpush1.bf16.msra.mxu0 0
        %1453 = vmatprep.subr.bf16.mxu0 0
        %1454 = vmatpush1.bf16.msra.mxu0 0
        %1455 = vmatprep.mubr.bf16.mxu0 0
        %1456 = vmatmul.mubr.bf16.gmra.mrb[0].mxu0 %v1351
        %v1457 = vpop.f32.mrb[0].mxu0
        %v1458 = vadd.f32 %v1373, %v1457
        %v1459 = vpop.f32.mrb[0].mxu0
        %v1460 = vpop.f32.mrb[0].mxu0
        %v1461 = vpop.f32.mrb[0].mxu0
        %1462 = vdwg.mxu0
        %v1463 = vadd.f32 %v1234, %v1458
        %v1464 = vld [vmem:[%s7] sm:$0x1]
        %v1465 = vld [vmem:[%s8] sm:$0x1]
        %vm1466 = vcmask 1041408
        %v1467 = vsel %vm1466, %v1463, 0.0
        %1468 = vadd.xlane.f32.xlu0 %v1467
        %v1469 = vpop.xlane.xlu0 %1468
        %v1470 = vrcp.pop 128.0
        %v1471 = vmul.f32 %v1469, %v1470
        %v1472 = vsub.f32 %v1463, %v1471
        %v1473 = vmul.f32 %v1472, %v1472
        %v1474 = vsel %vm1466, %v1473, 0.0
        %1475 = vadd.xlane.f32.xlu0 %v1474
        %v1476 = vpop.xlane.xlu0 %1475
        %v1477 = vmul.f32 %v1476, %v1470
        %v1478 = vadd.f32 %v1477, 1e-05
        %v1479 = vrsqrt.pop %v1478
        %v1480 = vmul.f32 %v1472, %v1479
        %v1482 = vlaneseq
        %v1483 = vshrl.u32 %v1482, 7
        %v1484 = vsub.s32 0, %v1483
        %v1485 = vrot.slane %v1464, %v1484
        %v1487 = vmul.f32 %v1480, %v1485
        %v1489 = vlaneseq
        %v1490 = vshrl.u32 %v1489, 7
        %v1491 = vsub.s32 0, %v1490
        %v1492 = vrot.slane %v1465, %v1491
        %v1494 = vadd.f32 %v1487, %v1492
        %v1495 = vpack.c.bf16 %v1494, %v1494
        %v1496 = vld [vmem:[#allocation11] sm:$0xff]
        %v1497 = vld [vmem:[#allocation11 + $0x8] sm:$0xff]
        %v1498 = vld [vmem:[#allocation11 + $0x10] sm:$0xff]
        %v1499 = vld [vmem:[#allocation11 + $0x18] sm:$0xff]
        %v1500 = vld [vmem:[#allocation11 + $0x20] sm:$0xff]
        %v1501 = vld [vmem:[#allocation11 + $0x28] sm:$0xff]
        %v1502 = vld [vmem:[#allocation11 + $0x30] sm:$0xff]
        %v1503 = vld [vmem:[#allocation11 + $0x38] sm:$0xff]
        %v1504 = vld [vmem:[#allocation11 + $0x40] sm:$0xff]
        %v1505 = vld [vmem:[#allocation11 + $0x48] sm:$0xff]
        %v1506 = vld [vmem:[#allocation11 + $0x50] sm:$0xff]
        %v1507 = vld [vmem:[#allocation11 + $0x58] sm:$0xff]
        %v1508 = vld [vmem:[#allocation11 + $0x60] sm:$0xff]
        %v1509 = vld [vmem:[#allocation11 + $0x68] sm:$0xff]
        %v1510 = vld [vmem:[#allocation11 + $0x70] sm:$0xff]
        %v1511 = vld [vmem:[#allocation11 + $0x78] sm:$0xff]
        %v1512 = vld [vmem:[#allocation11 + $0x80] sm:$0xff]
        %v1513 = vld [vmem:[#allocation11 + $0x88] sm:$0xff]
        %v1514 = vld [vmem:[#allocation11 + $0x90] sm:$0xff]
        %v1515 = vld [vmem:[#allocation11 + $0x98] sm:$0xff]
        %v1516 = vld [vmem:[#allocation11 + $0xa0] sm:$0xff]
        %v1517 = vld [vmem:[#allocation11 + $0xa8] sm:$0xff]
        %v1518 = vld [vmem:[#allocation11 + $0xb0] sm:$0xff]
        %v1519 = vld [vmem:[#allocation11 + $0xb8] sm:$0xff]
        %v1520 = vld [vmem:[#allocation11 + $0xc0] sm:$0xff]
        %v1521 = vld [vmem:[#allocation11 + $0xc8] sm:$0xff]
        %v1522 = vld [vmem:[#allocation11 + $0xd0] sm:$0xff]
        %v1523 = vld [vmem:[#allocation11 + $0xd8] sm:$0xff]
        %v1524 = vld [vmem:[#allocation11 + $0xe0] sm:$0xff]
        %v1525 = vld [vmem:[#allocation11 + $0xe8] sm:$0xff]
        %v1526 = vld [vmem:[#allocation11 + $0xf0] sm:$0xff]
        %v1527 = vld [vmem:[#allocation11 + $0xf8] sm:$0xff]
        %v1528 = vld [vmem:[%s10] sm:$0xf]
        %v1530 = vlaneseq
        %v1531 = vshrl.u32 %v1530, 7
        %v1532 = vsub.s32 0, %v1531
        %v1533 = vrot.slane %v1528, %v1532
        %v1534 = vlaneseq
        %v1535 = vshrl.u32 %v1534, 7
        %v1536 = vsub.s32 1, %v1535
        %v1537 = vrot.slane %v1528, %v1536
        %v1538 = vlaneseq
        %v1539 = vshrl.u32 %v1538, 7
        %v1540 = vsub.s32 2, %v1539
        %v1541 = vrot.slane %v1528, %v1540
        %v1542 = vlaneseq
        %v1543 = vshrl.u32 %v1542, 7
        %v1544 = vsub.s32 3, %v1543
        %v1545 = vrot.slane %v1528, %v1544
        %v1582 = vunpack.c.l.b16 %v1496
        %v1583 = vunpack.c.h.b16 %v1496
        %v1584 = vunpack.c.l.b16 %v1497
        %v1585 = vunpack.c.h.b16 %v1497
        %v1586 = vunpack.c.l.b16 %v1498
        %v1587 = vunpack.c.h.b16 %v1498
        %v1588 = vunpack.c.l.b16 %v1499
        %v1589 = vunpack.c.h.b16 %v1499
        %v1590 = vunpack.c.l.b16 %v1500
        %v1591 = vunpack.c.h.b16 %v1500
        %v1592 = vunpack.c.l.b16 %v1501
        %v1593 = vunpack.c.h.b16 %v1501
        %v1594 = vunpack.c.l.b16 %v1502
        %v1595 = vunpack.c.h.b16 %v1502
        %v1596 = vunpack.c.l.b16 %v1503
        %v1597 = vunpack.c.h.b16 %v1503
        %v1598 = vunpack.c.l.b16 %v1504
        %v1599 = vunpack.c.h.b16 %v1504
        %v1600 = vunpack.c.l.b16 %v1505
        %v1601 = vunpack.c.h.b16 %v1505
        %v1602 = vunpack.c.l.b16 %v1506
        %v1603 = vunpack.c.h.b16 %v1506
        %v1604 = vunpack.c.l.b16 %v1507
        %v1605 = vunpack.c.h.b16 %v1507
        %v1606 = vunpack.c.l.b16 %v1508
        %v1607 = vunpack.c.h.b16 %v1508
        %v1608 = vunpack.c.l.b16 %v1509
        %v1609 = vunpack.c.h.b16 %v1509
        %v1610 = vunpack.c.l.b16 %v1510
        %v1611 = vunpack.c.h.b16 %v1510
        %v1612 = vunpack.c.l.b16 %v1511
        %v1613 = vunpack.c.h.b16 %v1511
        %v1614 = vunpack.c.l.b16 %v1512
        %v1615 = vunpack.c.h.b16 %v1512
        %v1616 = vunpack.c.l.b16 %v1513
        %v1617 = vunpack.c.h.b16 %v1513
        %v1618 = vunpack.c.l.b16 %v1514
        %v1619 = vunpack.c.h.b16 %v1514
        %v1620 = vunpack.c.l.b16 %v1515
        %v1621 = vunpack.c.h.b16 %v1515
        %v1622 = vunpack.c.l.b16 %v1516
        %v1623 = vunpack.c.h.b16 %v1516
        %v1624 = vunpack.c.l.b16 %v1517
        %v1625 = vunpack.c.h.b16 %v1517
        %v1626 = vunpack.c.l.b16 %v1518
        %v1627 = vunpack.c.h.b16 %v1518
        %v1628 = vunpack.c.l.b16 %v1519
        %v1629 = vunpack.c.h.b16 %v1519
        %v1630 = vunpack.c.l.b16 %v1520
        %v1631 = vunpack.c.h.b16 %v1520
        %v1632 = vunpack.c.l.b16 %v1521
        %v1633 = vunpack.c.h.b16 %v1521
        %v1634 = vunpack.c.l.b16 %v1522
        %v1635 = vunpack.c.h.b16 %v1522
        %v1636 = vunpack.c.l.b16 %v1523
        %v1637 = vunpack.c.h.b16 %v1523
        %v1638 = vunpack.c.l.b16 %v1524
        %v1639 = vunpack.c.h.b16 %v1524
        %v1640 = vunpack.c.l.b16 %v1525
        %v1641 = vunpack.c.h.b16 %v1525
        %v1642 = vunpack.c.l.b16 %v1526
        %v1643 = vunpack.c.h.b16 %v1526
        %v1644 = vunpack.c.l.b16 %v1527
        %v1645 = vunpack.c.h.b16 %v1527
        %v1646 = vpack.c.b16 %v1586, %v1582
        %v1647 = vpack.c.b16 %v1587, %v1583
        %v1648 = vpack.c.b16 %v1588, %v1584
        %v1649 = vpack.c.b16 %v1589, %v1585
        %v1650 = vpack.c.b16 %v1594, %v1590
        %v1651 = vpack.c.b16 %v1595, %v1591
        %v1652 = vpack.c.b16 %v1596, %v1592
        %v1653 = vpack.c.b16 %v1597, %v1593
        %v1654 = vpack.c.b16 %v1602, %v1598
        %v1655 = vpack.c.b16 %v1603, %v1599
        %v1656 = vpack.c.b16 %v1604, %v1600
        %v1657 = vpack.c.b16 %v1605, %v1601
        %v1658 = vpack.c.b16 %v1610, %v1606
        %v1659 = vpack.c.b16 %v1611, %v1607
        %v1660 = vpack.c.b16 %v1612, %v1608
        %v1661 = vpack.c.b16 %v1613, %v1609
        %v1662 = vpack.c.b16 %v1618, %v1614
        %v1663 = vpack.c.b16 %v1619, %v1615
        %v1664 = vpack.c.b16 %v1620, %v1616
        %v1665 = vpack.c.b16 %v1621, %v1617
        %v1666 = vpack.c.b16 %v1626, %v1622
        %v1667 = vpack.c.b16 %v1627, %v1623
        %v1668 = vpack.c.b16 %v1628, %v1624
        %v1669 = vpack.c.b16 %v1629, %v1625
        %v1670 = vpack.c.b16 %v1634, %v1630
        %v1671 = vpack.c.b16 %v1635, %v1631
        %v1672 = vpack.c.b16 %v1636, %v1632
        %v1673 = vpack.c.b16 %v1637, %v1633
        %v1674 = vpack.c.b16 %v1642, %v1638
        %v1675 = vpack.c.b16 %v1643, %v1639
        %v1676 = vpack.c.b16 %v1644, %v1640
        %v1677 = vpack.c.b16 %v1645, %v1641
        %1710 = vmatprep.subr.bf16.mxu0 %v1647
        %1711 = vmatpush1.bf16.msra.mxu0 %v1646
        %1712 = vmatprep.subr.bf16.mxu0 %v1651
        %1713 = vmatpush1.bf16.msra.mxu0 %v1650
        %1714 = vmatprep.subr.bf16.mxu0 %v1655
        %1715 = vmatpush1.bf16.msra.mxu0 %v1654
        %1716 = vmatprep.subr.bf16.mxu0 %v1659
        %1717 = vmatpush1.bf16.msra.mxu0 %v1658
        %1718 = vmatprep.subr.bf16.mxu0 %v1663
        %1719 = vmatpush1.bf16.msra.mxu0 %v1662
        %1720 = vmatprep.subr.bf16.mxu0 %v1667
        %1721 = vmatpush1.bf16.msra.mxu0 %v1666
        %1722 = vmatprep.subr.bf16.mxu0 %v1671
        %1723 = vmatpush1.bf16.msra.mxu0 %v1670
        %1724 = vmatprep.subr.bf16.mxu0 %v1675
        %1725 = vmatpush1.bf16.msra.mxu0 %v1674
        %1726 = vmatprep.subr.bf16.mxu0 0
        %1727 = vmatpush1.bf16.msra.mxu0 0
        %1728 = vmatprep.subr.bf16.mxu0 0
        %1729 = vmatpush1.bf16.msra.mxu0 0
        %1730 = vmatprep.subr.bf16.mxu0 0
        %1731 = vmatpush1.bf16.msra.mxu0 0
        %1732 = vmatprep.subr.bf16.mxu0 0
        %1733 = vmatpush1.bf16.msra.mxu0 0
        %1734 = vmatprep.subr.bf16.mxu0 0
        %1735 = vmatpush1.bf16.msra.mxu0 0
        %1736 = vmatprep.subr.bf16.mxu0 0
        %1737 = vmatpush1.bf16.msra.mxu0 0
        %1738 = vmatprep.subr.bf16.mxu0 0
        %1739 = vmatpush1.bf16.msra.mxu0 0
        %1740 = vmatprep.subr.bf16.mxu0 0
        %1741 = vmatpush1.bf16.msra.mxu0 0
        %1742 = vmatprep.mubr.bf16.mxu0 0
        %1743 = vmatmul.mubr.bf16.gmra.mrb[0].mxu0 %v1495
        %v1744 = vpop.f32.mrb[0].mxu0
        %v1745 = vadd.f32 %v1533, %v1744
        %v1746 = vpop.f32.mrb[0].mxu0
        %v1747 = vadd.f32 %v1537, %v1746
        %v1748 = vpop.f32.mrb[0].mxu0
        %v1749 = vpop.f32.mrb[0].mxu0
        %1750 = vdwg.mxu0
        %1751 = vmatprep.subr.bf16.mxu0 %v1649
        %1752 = vmatpush1.bf16.msra.mxu0 %v1648
        %1753 = vmatprep.subr.bf16.mxu0 %v1653
        %1754 = vmatpush1.bf16.msra.mxu0 %v1652
        %1755 = vmatprep.subr.bf16.mxu0 %v1657
        %1756 = vmatpush1.bf16.msra.mxu0 %v1656
        %1757 = vmatprep.subr.bf16.mxu0 %v1661
        %1758 = vmatpush1.bf16.msra.mxu0 %v1660
        %1759 = vmatprep.subr.bf16.mxu0 %v1665
        %1760 = vmatpush1.bf16.msra.mxu0 %v1664
        %1761 = vmatprep.subr.bf16.mxu0 %v1669
        %1762 = vmatpush1.bf16.msra.mxu0 %v1668
        %1763 = vmatprep.subr.bf16.mxu0 %v1673
        %1764 = vmatpush1.bf16.msra.mxu0 %v1672
        %1765 = vmatprep.subr.bf16.mxu0 %v1677
        %1766 = vmatpush1.bf16.msra.mxu0 %v1676
        %1767 = vmatprep.subr.bf16.mxu0 0
        %1768 = vmatpush1.bf16.msra.mxu0 0
        %1769 = vmatprep.subr.bf16.mxu0 0
        %1770 = vmatpush1.bf16.msra.mxu0 0
        %1771 = vmatprep.subr.bf16.mxu0 0
        %1772 = vmatpush1.bf16.msra.mxu0 0
        %1773 = vmatprep.subr.bf16.mxu0 0
        %1774 = vmatpush1.bf16.msra.mxu0 0
        %1775 = vmatprep.subr.bf16.mxu0 0
        %1776 = vmatpush1.bf16.msra.mxu0 0
        %1777 = vmatprep.subr.bf16.mxu0 0
        %1778 = vmatpush1.bf16.msra.mxu0 0
        %1779 = vmatprep.subr.bf16.mxu0 0
        %1780 = vmatpush1.bf16.msra.mxu0 0
        %1781 = vmatprep.subr.bf16.mxu0 0
        %1782 = vmatpush1.bf16.msra.mxu0 0
        %1783 = vmatprep.mubr.bf16.mxu0 0
        %1784 = vmatmul.mubr.bf16.gmra.mrb[0].mxu0 %v1495
        %v1785 = vpop.f32.mrb[0].mxu0
        %v1786 = vadd.f32 %v1541, %v1785
        %v1787 = vpop.f32.mrb[0].mxu0
        %v1788 = vadd.f32 %v1545, %v1787
        %v1789 = vpop.f32.mrb[0].mxu0
        %v1790 = vpop.f32.mrb[0].mxu0
        %1791 = vdwg.mxu0
        %v1792 = vmul.f32 %v1745, 0.5
        %v1793 = vmul.f32 %v1747, 0.5
        %v1794 = vmul.f32 %v1786, 0.5
        %v1795 = vmul.f32 %v1788, 0.5
        %v1796 = vmul.f32 %v1745, 0.044715
        %v1797 = vmul.f32 %v1747, 0.044715
        %v1798 = vmul.f32 %v1786, 0.044715
        %v1799 = vmul.f32 %v1788, 0.044715
        %v1800 = vmul.f32 %v1796, %v1745
        %v1801 = vmul.f32 %v1797, %v1747
        %v1802 = vmul.f32 %v1798, %v1786
        %v1803 = vmul.f32 %v1799, %v1788
        %v1804 = vmul.f32 %v1800, %v1745
        %v1805 = vmul.f32 %v1801, %v1747
        %v1806 = vmul.f32 %v1802, %v1786
        %v1807 = vmul.f32 %v1803, %v1788
        %v1808 = vadd.f32 %v1745, %v1804
        %v1809 = vadd.f32 %v1747, %v1805
        %v1810 = vadd.f32 %v1786, %v1806
        %v1811 = vadd.f32 %v1788, %v1807
        %v1812 = vmul.f32 %v1808, 0.7978846
        %v1813 = vmul.f32 %v1809, 0.7978846
        %v1814 = vmul.f32 %v1810, 0.7978846
        %v1815 = vmul.f32 %v1811, 0.7978846
        %v1816 = vtanh.pop %v1812
        %v1817 = vtanh.pop %v1813
        %v1818 = vtanh.pop %v1814
        %v1819 = vtanh.pop %v1815
        %v1820 = vadd.f32 %v1816, 1.0
        %v1821 = vadd.f32 %v1817, 1.0
        %v1822 = vadd.f32 %v1818, 1.0
        %v1823 = vadd.f32 %v1819, 1.0
        %v1824 = vmul.f32 %v1792, %v1820
        %v1825 = vmul.f32 %v1793, %v1821
        %v1826 = vmul.f32 %v1794, %v1822
        %v1827 = vmul.f32 %v1795, %v1823
        %v1828 = vpack.c.bf16 %v1824, %v1824
        %v1829 = vpack.c.bf16 %v1825, %v1825
        %v1830 = vpack.c.bf16 %v1826, %v1826
        %v1831 = vpack.c.bf16 %v1827, %v1827
        %v1832 = vld [vmem:[#allocation13] sm:$0xf]
        %v1833 = vld [vmem:[#allocation13 + $0x4] sm:$0xf]
        %v1834 = vld [vmem:[#allocation13 + $0x8] sm:$0xf]
        %v1835 = vld [vmem:[#allocation13 + $0xc] sm:$0xf]
        %v1836 = vld [vmem:[#allocation13 + $0x10] sm:$0xf]
        %v1837 = vld [vmem:[#allocation13 + $0x14] sm:$0xf]
        %v1838 = vld [vmem:[#allocation13 + $0x18] sm:$0xf]
        %v1839 = vld [vmem:[#allocation13 + $0x1c] sm:$0xf]
        %v1840 = vld [vmem:[#allocation13 + $0x20] sm:$0xf]
        %v1841 = vld [vmem:[#allocation13 + $0x24] sm:$0xf]
        %v1842 = vld [vmem:[#allocation13 + $0x28] sm:$0xf]
        %v1843 = vld [vmem:[#allocation13 + $0x2c] sm:$0xf]
        %v1844 = vld [vmem:[#allocation13 + $0x30] sm:$0xf]
        %v1845 = vld [vmem:[#allocation13 + $0x34] sm:$0xf]
        %v1846 = vld [vmem:[#allocation13 + $0x38] sm:$0xf]
        %v1847 = vld [vmem:[#allocation13 + $0x3c] sm:$0xf]
        %v1848 = vld [vmem:[#allocation13 + $0x40] sm:$0xf]
        %v1849 = vld [vmem:[#allocation13 + $0x44] sm:$0xf]
        %v1850 = vld [vmem:[#allocation13 + $0x48] sm:$0xf]
        %v1851 = vld [vmem:[#allocation13 + $0x4c] sm:$0xf]
        %v1852 = vld [vmem:[#allocation13 + $0x50] sm:$0xf]
        %v1853 = vld [vmem:[#allocation13 + $0x54] sm:$0xf]
        %v1854 = vld [vmem:[#allocation13 + $0x58] sm:$0xf]
        %v1855 = vld [vmem:[#allocation13 + $0x5c] sm:$0xf]
        %v1856 = vld [vmem:[#allocation13 + $0x60] sm:$0xf]
        %v1857 = vld [vmem:[#allocation13 + $0x64] sm:$0xf]
        %v1858 = vld [vmem:[#allocation13 + $0x68] sm:$0xf]
        %v1859 = vld [vmem:[#allocation13 + $0x6c] sm:$0xf]
        %v1860 = vld [vmem:[#allocation13 + $0x70] sm:$0xf]
        %v1861 = vld [vmem:[#allocation13 + $0x74] sm:$0xf]
        %v1862 = vld [vmem:[#allocation13 + $0x78] sm:$0xf]
        %v1863 = vld [vmem:[#allocation13 + $0x7c] sm:$0xf]
        %v1864 = vld [vmem:[#allocation13 + $0x80] sm:$0xf]
        %v1865 = vld [vmem:[#allocation13 + $0x84] sm:$0xf]
        %v1866 = vld [vmem:[#allocation13 + $0x88] sm:$0xf]
        %v1867 = vld [vmem:[#allocation13 + $0x8c] sm:$0xf]
        %v1868 = vld [vmem:[#allocation13 + $0x90] sm:$0xf]
        %v1869 = vld [vmem:[#allocation13 + $0x94] sm:$0xf]
        %v1870 = vld [vmem:[#allocation13 + $0x98] sm:$0xf]
        %v1871 = vld [vmem:[#allocation13 + $0x9c] sm:$0xf]
        %v1872 = vld [vmem:[#allocation13 + $0xa0] sm:$0xf]
        %v1873 = vld [vmem:[#allocation13 + $0xa4] sm:$0xf]
        %v1874 = vld [vmem:[#allocation13 + $0xa8] sm:$0xf]
        %v1875 = vld [vmem:[#allocation13 + $0xac] sm:$0xf]
        %v1876 = vld [vmem:[#allocation13 + $0xb0] sm:$0xf]
        %v1877 = vld [vmem:[#allocation13 + $0xb4] sm:$0xf]
        %v1878 = vld [vmem:[#allocation13 + $0xb8] sm:$0xf]
        %v1879 = vld [vmem:[#allocation13 + $0xbc] sm:$0xf]
        %v1880 = vld [vmem:[#allocation13 + $0xc0] sm:$0xf]
        %v1881 = vld [vmem:[#allocation13 + $0xc4] sm:$0xf]
        %v1882 = vld [vmem:[#allocation13 + $0xc8] sm:$0xf]
        %v1883 = vld [vmem:[#allocation13 + $0xcc] sm:$0xf]
        %v1884 = vld [vmem:[#allocation13 + $0xd0] sm:$0xf]
        %v1885 = vld [vmem:[#allocation13 + $0xd4] sm:$0xf]
        %v1886 = vld [vmem:[#allocation13 + $0xd8] sm:$0xf]
        %v1887 = vld [vmem:[#allocation13 + $0xdc] sm:$0xf]
        %v1888 = vld [vmem:[#allocation13 + $0xe0] sm:$0xf]
        %v1889 = vld [vmem:[#allocation13 + $0xe4] sm:$0xf]
        %v1890 = vld [vmem:[#allocation13 + $0xe8] sm:$0xf]
        %v1891 = vld [vmem:[#allocation13 + $0xec] sm:$0xf]
        %v1892 = vld [vmem:[#allocation13 + $0xf0] sm:$0xf]
        %v1893 = vld [vmem:[#allocation13 + $0xf4] sm:$0xf]
        %v1894 = vld [vmem:[#allocation13 + $0xf8] sm:$0xf]
        %v1895 = vld [vmem:[#allocation13 + $0xfc] sm:$0xf]
        %v1896 = vld [vmem:[%s12] sm:$0x1]
        %v1898 = vlaneseq
        %v1899 = vshrl.u32 %v1898, 7
        %v1900 = vsub.s32 0, %v1899
        %v1901 = vrot.slane %v1896, %v1900
        %v1967 = vunpack.c.l.b16 %v1832
        %v1968 = vunpack.c.l.b16 %v1833
        %v1969 = vunpack.c.l.b16 %v1834
        %v1970 = vunpack.c.l.b16 %v1835
        %v1971 = vunpack.c.l.b16 %v1836
        %v1972 = vunpack.c.l.b16 %v1837
        %v1973 = vunpack.c.l.b16 %v1838
        %v1974 = vunpack.c.l.b16 %v1839
        %v1975 = vunpack.c.l.b16 %v1840
        %v1976 = vunpack.c.l.b16 %v1841
        %v1977 = vunpack.c.l.b16 %v1842
        %v1978 = vunpack.c.l.b16 %v1843
        %v1979 = vunpack.c.l.b16 %v1844
        %v1980 = vunpack.c.l.b16 %v1845
        %v1981 = vunpack.c.l.b16 %v1846
        %v1982 = vunpack.c.l.b16 %v1847
        %v1983 = vunpack.c.l.b16 %v1848
        %v1984 = vunpack.c.l.b16 %v1849
        %v1985 = vunpack.c.l.b16 %v1850
        %v1986 = vunpack.c.l.b16 %v1851
        %v1987 = vunpack.c.l.b16 %v1852
        %v1988 = vunpack.c.l.b16 %v1853
        %v1989 = vunpack.c.l.b16 %v1854
        %v1990 = vunpack.c.l.b16 %v1855
        %v1991 = vunpack.c.l.b16 %v1856
        %v1992 = vunpack.c.l.b16 %v1857
        %v1993 = vunpack.c.l.b16 %v1858
        %v1994 = vunpack.c.l.b16 %v1859
        %v1995 = vunpack.c.l.b16 %v1860
        %v1996 = vunpack.c.l.b16 %v1861
        %v1997 = vunpack.c.l.b16 %v1862
        %v1998 = vunpack.c.l.b16 %v1863
        %v1999 = vunpack.c.l.b16 %v1864
        %v2000 = vunpack.c.l.b16 %v1865
        %v2001 = vunpack.c.l.b16 %v1866
        %v2002 = vunpack.c.l.b16 %v1867
        %v2003 = vunpack.c.l.b16 %v1868
        %v2004 = vunpack.c.l.b16 %v1869
        %v2005 = vunpack.c.l.b16 %v1870
        %v2006 = vunpack.c.l.b16 %v1871
        %v2007 = vunpack.c.l.b16 %v1872
        %v2008 = vunpack.c.l.b16 %v1873
        %v2009 = vunpack.c.l.b16 %v1874
        %v2010 = vunpack.c.l.b16 %v1875
        %v2011 = vunpack.c.l.b16 %v1876
        %v2012 = vunpack.c.l.b16 %v1877
        %v2013 = vunpack.c.l.b16 %v1878
        %v2014 = vunpack.c.l.b16 %v1879
        %v2015 = vunpack.c.l.b16 %v1880
        %v2016 = vunpack.c.l.b16 %v1881
        %v2017 = vunpack.c.l.b16 %v1882
        %v2018 = vunpack.c.l.b16 %v1883
        %v2019 = vunpack.c.l.b16 %v1884
        %v2020 = vunpack.c.l.b16 %v1885
        %v2021 = vunpack.c.l.b16 %v1886
        %v2022 = vunpack.c.l.b16 %v1887
        %v2023 = vunpack.c.l.b16 %v1888
        %v2024 = vunpack.c.l.b16 %v1889
        %v2025 = vunpack.c.l.b16 %v1890
        %v2026 = vunpack.c.l.b16 %v1891
        %v2027 = vunpack.c.l.b16 %v1892
        %v2028 = vunpack.c.l.b16 %v1893
        %v2029 = vunpack.c.l.b16 %v1894
        %v2030 = vunpack.c.l.b16 %v1895
        %v2031 = vpack.c.b16 %v1968, %v1967
        %v2032 = vpack.c.b16 %v1970, %v1969
        %v2033 = vpack.c.b16 %v1972, %v1971
        %v2034 = vpack.c.b16 %v1974, %v1973
        %v2035 = vpack.c.b16 %v1976, %v1975
        %v2036 = vpack.c.b16 %v1978, %v1977
        %v2037 = vpack.c.b16 %v1980, %v1979
        %v2038 = vpack.c.b16 %v1982, %v1981
        %v2039 = vpack.c.b16 %v1984, %v1983
        %v2040 = vpack.c.b16 %v1986, %v1985
        %v2041 = vpack.c.b16 %v1988, %v1987
        %v2042 = vpack.c.b16 %v1990, %v1989
        %v2043 = vpack.c.b16 %v1992, %v1991
        %v2044 = vpack.c.b16 %v1994, %v1993
        %v2045 = vpack.c.b16 %v1996, %v1995
        %v2046 = vpack.c.b16 %v1998, %v1997
        %v2047 = vpack.c.b16 %v2000, %v1999
        %v2048 = vpack.c.b16 %v2002, %v2001
        %v2049 = vpack.c.b16 %v2004, %v2003
        %v2050 = vpack.c.b16 %v2006, %v2005
        %v2051 = vpack.c.b16 %v2008, %v2007
        %v2052 = vpack.c.b16 %v2010, %v2009
        %v2053 = vpack.c.b16 %v2012, %v2011
        %v2054 = vpack.c.b16 %v2014, %v2013
        %v2055 = vpack.c.b16 %v2016, %v2015
        %v2056 = vpack.c.b16 %v2018, %v2017
        %v2057 = vpack.c.b16 %v2020, %v2019
        %v2058 = vpack.c.b16 %v2022, %v2021
        %v2059 = vpack.c.b16 %v2024, %v2023
        %v2060 = vpack.c.b16 %v2026, %v2025
        %v2061 = vpack.c.b16 %v2028, %v2027
        %v2062 = vpack.c.b16 %v2030, %v2029
        %2095 = vmatprep.subr.bf16.mxu0 0
        %2096 = vmatpush1.bf16.msra.mxu0 %v2031
        %2097 = vmatprep.subr.bf16.mxu0 0
        %2098 = vmatpush1.bf16.msra.mxu0 %v2032
        %2099 = vmatprep.subr.bf16.mxu0 0
        %2100 = vmatpush1.bf16.msra.mxu0 %v2033
        %2101 = vmatprep.subr.bf16.mxu0 0
        %2102 = vmatpush1.bf16.msra.mxu0 %v2034
        %2103 = vmatprep.subr.bf16.mxu0 0
        %2104 = vmatpush1.bf16.msra.mxu0 %v2035
        %2105 = vmatprep.subr.bf16.mxu0 0
        %2106 = vmatpush1.bf16.msra.mxu0 %v2036
        %2107 = vmatprep.subr.bf16.mxu0 0
        %2108 = vmatpush1.bf16.msra.mxu0 %v2037
        %2109 = vmatprep.subr.bf16.mxu0 0
        %2110 = vmatpush1.bf16.msra.mxu0 %v2038
        %2111 = vmatprep.subr.bf16.mxu0 0
        %2112 = vmatpush1.bf16.msra.mxu0 %v2039
        %2113 = vmatprep.subr.bf16.mxu0 0
        %2114 = vmatpush1.bf16.msra.mxu0 %v2040
        %2115 = vmatprep.subr.bf16.mxu0 0
        %2116 = vmatpush1.bf16.msra.mxu0 %v2041
        %2117 = vmatprep.subr.bf16.mxu0 0
        %2118 = vmatpush1.bf16.msra.mxu0 %v2042
        %2119 = vmatprep.subr.bf16.mxu0 0
        %2120 = vmatpush1.bf16.msra.mxu0 %v2043
        %2121 = vmatprep.subr.bf16.mxu0 0
        %2122 = vmatpush1.bf16.msra.mxu0 %v2044
        %2123 = vmatprep.subr.bf16.mxu0 0
        %2124 = vmatpush1.bf16.msra.mxu0 %v2045
        %2125 = vmatprep.subr.bf16.mxu0 0
        %2126 = vmatpush1.bf16.msra.mxu0 %v2046
        %2127 = vmatprep.mubr.bf16.mxu0 %v1829
        %2128 = vmatmul.mubr.bf16.gmra.mrb[0].mxu0 %v1828
        %v2129 = vpop.f32.mrb[0].mxu0
        %v2130 = vadd.f32 %v1901, %v2129
        %v2131 = vpop.f32.mrb[0].mxu0
        %v2132 = vpop.f32.mrb[0].mxu0
        %v2133 = vpop.f32.mrb[0].mxu0
        %2134 = vdwg.mxu0
        %2135 = vmatprep.subr.bf16.mxu0 0
        %2136 = vmatpush1.bf16.msra.mxu0 %v2047
        %2137 = vmatprep.subr.bf16.mxu0 0
        %2138 = vmatpush1.bf16.msra.mxu0 %v2048
        %2139 = vmatprep.subr.bf16.mxu0 0
        %2140 = vmatpush1.bf16.msra.mxu0 %v2049
        %2141 = vmatprep.subr.bf16.mxu0 0
        %2142 = vmatpush1.bf16.msra.mxu0 %v2050
        %2143 = vmatprep.subr.bf16.mxu0 0
        %2144 = vmatpush1.bf16.msra.mxu0 %v2051
        %2145 = vmatprep.subr.bf16.mxu0 0
        %2146 = vmatpush1.bf16.msra.mxu0 %v2052
        %2147 = vmatprep.subr.bf16.mxu0 0
        %2148 = vmatpush1.bf16.msra.mxu0 %v2053
        %2149 = vmatprep.subr.bf16.mxu0 0
        %2150 = vmatpush1.bf16.msra.mxu0 %v2054
        %2151 = vmatprep.subr.bf16.mxu0 0
        %2152 = vmatpush1.bf16.msra.mxu0 %v2055
        %2153 = vmatprep.subr.bf16.mxu0 0
        %2154 = vmatpush1.bf16.msra.mxu0 %v2056
        %2155 = vmatprep.subr.bf16.mxu0 0
        %2156 = vmatpush1.bf16.msra.mxu0 %v2057
        %2157 = vmatprep.subr.bf16.mxu0 0
        %2158 = vmatpush1.bf16.msra.mxu0 %v2058
        %2159 = vmatprep.subr.bf16.mxu0 0
        %2160 = vmatpush1.bf16.msra.mxu0 %v2059
        %2161 = vmatprep.subr.bf16.mxu0 0
        %2162 = vmatpush1.bf16.msra.mxu0 %v2060
        %2163 = vmatprep.subr.bf16.mxu0 0
        %2164 = vmatpush1.bf16.msra.mxu0 %v2061
        %2165 = vmatprep.subr.bf16.mxu0 0
        %2166 = vmatpush1.bf16.msra.mxu0 %v2062
        %2167 = vmatprep.mubr.bf16.mxu0 %v1831
        %2168 = vmatmul.mubr.bf16.gmra.mrb[0].mxu0 %v1830
        %v2169 = vpop.f32.mrb[0].mxu0
        %v2170 = vadd.f32 %v2130, %v2169
        %v2171 = vpop.f32.mrb[0].mxu0
        %v2172 = vpop.f32.mrb[0].mxu0
        %v2173 = vpop.f32.mrb[0].mxu0
        %2174 = vdwg.mxu0
        %v2175 = vadd.f32 %v1494, %v2170
        %v2176 = vld [vmem:[%s13] sm:$0x1]
        %v2177 = vld [vmem:[%s14] sm:$0x1]
        %v2178 = vsel %vm1466, %v2175, 0.0
        %2179 = vadd.xlane.f32.xlu0 %v2178
        %v2180 = vpop.xlane.xlu0 %2179
        %v2181 = vmul.f32 %v2180, %v1470
        %v2182 = vsub.f32 %v2175, %v2181
        %v2183 = vmul.f32 %v2182, %v2182
        %v2184 = vsel %vm1466, %v2183, 0.0
        %2185 = vadd.xlane.f32.xlu0 %v2184
        %v2186 = vpop.xlane.xlu0 %2185
        %v2187 = vmul.f32 %v2186, %v1470
        %v2188 = vadd.f32 %v2187, 1e-05
        %v2189 = vrsqrt.pop %v2188
        %v2190 = vmul.f32 %v2182, %v2189
        %v2192 = vlaneseq
        %v2193 = vshrl.u32 %v2192, 7
        %v2194 = vsub.s32 0, %v2193
        %v2195 = vrot.slane %v2176, %v2194
        %v2197 = vmul.f32 %v2190, %v2195
        %v2199 = vlaneseq
        %v2200 = vshrl.u32 %v2199, 7
        %v2201 = vsub.s32 0, %v2200
        %v2202 = vrot.slane %v2177, %v2201
        %v2204 = vadd.f32 %v2197, %v2202
        %v2205 = vpack.c.bf16 %v2204, %v2204
        %s2206 = scalar_lea.vmem [#allocation8], 64
        %v2207 = vld [vmem:[%s2206] sm:$0xf]
        %v2208 = vld [vmem:[%s2206 + $0x4] sm:$0xf]
        %v2209 = vld [vmem:[%s2206 + $0x8] sm:$0xf]
        %v2210 = vld [vmem:[%s2206 + $0xc] sm:$0xf]
        %v2211 = vld [vmem:[%s2206 + $0x10] sm:$0xf]
        %v2212 = vld [vmem:[%s2206 + $0x14] sm:$0xf]
        %v2213 = vld [vmem:[%s2206 + $0x18] sm:$0xf]
        %v2214 = vld [vmem:[%s2206 + $0x1c] sm:$0xf]
        %v2215 = vld [vmem:[%s2206 + $0x20] sm:$0xf]
        %v2216 = vld [vmem:[%s2206 + $0x24] sm:$0xf]
        %v2217 = vld [vmem:[%s2206 + $0x28] sm:$0xf]
        %v2218 = vld [vmem:[%s2206 + $0x2c] sm:$0xf]
        %v2219 = vld [vmem:[%s2206 + $0x30] sm:$0xf]
        %v2220 = vld [vmem:[%s2206 + $0x34] sm:$0xf]
        %v2221 = vld [vmem:[%s2206 + $0x38] sm:$0xf]
        %v2222 = vld [vmem:[%s2206 + $0x3c] sm:$0xf]
        %s2223 = scalar_lea.vmem %s4, 1
        %v2224 = vld [vmem:[%s2223] sm:$0x1]
        %v2226 = vlaneseq
        %v2227 = vshrl.u32 %v2226, 7
        %v2228 = vsub.s32 0, %v2227
        %v2229 = vrot.slane %v2224, %v2228
        %v2247 = vunpack.c.l.b16 %v2207
        %v2248 = vunpack.c.l.b16 %v2208
        %v2249 = vunpack.c.l.b16 %v2209
        %v2250 = vunpack.c.l.b16 %v2210
        %v2251 = vunpack.c.l.b16 %v2211
        %v2252 = vunpack.c.l.b16 %v2212
        %v2253 = vunpack.c.l.b16 %v2213
        %v2254 = vunpack.c.l.b16 %v2214
        %v2255 = vunpack.c.l.b16 %v2215
        %v2256 = vunpack.c.l.b16 %v2216
        %v2257 = vunpack.c.l.b16 %v2217
        %v2258 = vunpack.c.l.b16 %v2218
        %v2259 = vunpack.c.l.b16 %v2219
        %v2260 = vunpack.c.l.b16 %v2220
        %v2261 = vunpack.c.l.b16 %v2221
        %v2262 = vunpack.c.l.b16 %v2222
        %v2263 = vpack.c.b16 %v2248, %v2247
        %v2264 = vpack.c.b16 %v2250, %v2249
        %v2265 = vpack.c.b16 %v2252, %v2251
        %v2266 = vpack.c.b16 %v2254, %v2253
        %v2267 = vpack.c.b16 %v2256, %v2255
        %v2268 = vpack.c.b16 %v2258, %v2257
        %v2269 = vpack.c.b16 %v2260, %v2259
        %v2270 = vpack.c.b16 %v2262, %v2261
        %2279 = vmatprep.subr.bf16.mxu0 0
        %2280 = vmatpush1.bf16.msra.mxu0 %v2263
        %2281 = vmatprep.subr.bf16.mxu0 0
        %2282 = vmatpush1.bf16.msra.mxu0 %v2264
        %2283 = vmatprep.subr.bf16.mxu0 0
        %2284 = vmatpush1.bf16.msra.mxu0 %v2265
        %2285 = vmatprep.subr.bf16.mxu0 0
        %2286 = vmatpush1.bf16.msra.mxu0 %v2266
        %2287 = vmatprep.subr.bf16.mxu0 0
        %2288 = vmatpush1.bf16.msra.mxu0 %v2267
        %2289 = vmatprep.subr.bf16.mxu0 0
        %2290 = vmatpush1.bf16.msra.mxu0 %v2268
        %2291 = vmatprep.subr.bf16.mxu0 0
        %2292 = vmatpush1.bf16.msra.mxu0 %v2269
        %2293 = vmatprep.subr.bf16.mxu0 0
        %2294 = vmatpush1.bf16.msra.mxu0 %v2270
        %2295 = vmatprep.subr.bf16.mxu0 0
        %2296 = vmatpush1.bf16.msra.mxu0 0
        %2297 = vmatprep.subr.bf16.mxu0 0
        %2298 = vmatpush1.bf16.msra.mxu0 0
        %2299 = vmatprep.subr.bf16.mxu0 0
        %2300 = vmatpush1.bf16.msra.mxu0 0
        %2301 = vmatprep.subr.bf16.mxu0 0
        %2302 = vmatpush1.bf16.msra.mxu0 0
        %2303 = vmatprep.subr.bf16.mxu0 0
        %2304 = vmatpush1.bf16.msra.mxu0 0
        %2305 = vmatprep.subr.bf16.mxu0 0
        %2306 = vmatpush1.bf16.msra.mxu0 0
        %2307 = vmatprep.subr.bf16.mxu0 0
        %2308 = vmatpush1.bf16.msra.mxu0 0
        %2309 = vmatprep.subr.bf16.mxu0 0
        %2310 = vmatpush1.bf16.msra.mxu0 0
        %2311 = vmatprep.mubr.bf16.mxu0 0
        %2312 = vmatmul.mubr.bf16.gmra.mrb[0].mxu0 %v2205
        %v2313 = vpop.f32.mrb[0].mxu0
        %v2314 = vadd.f32 %v2229, %v2313
        %v2315 = vpop.f32.mrb[0].mxu0
        %v2316 = vpop.f32.mrb[0].mxu0
        %v2317 = vpop.f32.mrb[0].mxu0
        %2318 = vdwg.mxu0
        %v2319 = vpack.c.bf16 %v2314, %v2314
        %s2320 = scalar_lea.vmem [#allocation10], 64
        %v2321 = vld [vmem:[%s2320] sm:$0xf]
        %v2322 = vld [vmem:[%s2320 + $0x4] sm:$0xf]
        %v2323 = vld [vmem:[%s2320 + $0x8] sm:$0xf]
        %v2324 = vld [vmem:[%s2320 + $0xc] sm:$0xf]
        %v2325 = vld [vmem:[%s2320 + $0x10] sm:$0xf]
        %v2326 = vld [vmem:[%s2320 + $0x14] sm:$0xf]
        %v2327 = vld [vmem:[%s2320 + $0x18] sm:$0xf]
        %v2328 = vld [vmem:[%s2320 + $0x1c] sm:$0xf]
        %v2329 = vld [vmem:[%s2320 + $0x20] sm:$0xf]
        %v2330 = vld [vmem:[%s2320 + $0x24] sm:$0xf]
        %v2331 = vld [vmem:[%s2320 + $0x28] sm:$0xf]
        %v2332 = vld [vmem:[%s2320 + $0x2c] sm:$0xf]
        %v2333 = vld [vmem:[%s2320 + $0x30] sm:$0xf]
        %v2334 = vld [vmem:[%s2320 + $0x34] sm:$0xf]
        %v2335 = vld [vmem:[%s2320 + $0x38] sm:$0xf]
        %v2336 = vld [vmem:[%s2320 + $0x3c] sm:$0xf]
        %s2337 = scalar_lea.vmem %s6, 1
        %v2338 = vld [vmem:[%s2337] sm:$0x1]
        %v2340 = vlaneseq
        %v2341 = vshrl.u32 %v2340, 7
        %v2342 = vsub.s32 0, %v2341
        %v2343 = vrot.slane %v2338, %v2342
        %v2361 = vunpack.c.l.b16 %v2321
        %v2362 = vunpack.c.l.b16 %v2322
        %v2363 = vunpack.c.l.b16 %v2323
        %v2364 = vunpack.c.l.b16 %v2324
        %v2365 = vunpack.c.l.b16 %v2325
        %v2366 = vunpack.c.l.b16 %v2326
        %v2367 = vunpack.c.l.b16 %v2327
        %v2368 = vunpack.c.l.b16 %v2328
        %v2369 = vunpack.c.l.b16 %v2329
        %v2370 = vunpack.c.l.b16 %v2330
        %v2371 = vunpack.c.l.b16 %v2331
        %v2372 = vunpack.c.l.b16 %v2332
        %v2373 = vunpack.c.l.b16 %v2333
        %v2374 = vunpack.c.l.b16 %v2334
        %v2375 = vunpack.c.l.b16 %v2335
        %v2376 = vunpack.c.l.b16 %v2336
        %v2377 = vpack.c.b16 %v2362, %v2361
        %v2378 = vpack.c.b16 %v2364, %v2363
        %v2379 = vpack.c.b16 %v2366, %v2365
        %v2380 = vpack.c.b16 %v2368, %v2367
        %v2381 = vpack.c.b16 %v2370, %v2369
        %v2382 = vpack.c.b16 %v2372, %v2371
        %v2383 = vpack.c.b16 %v2374, %v2373
        %v2384 = vpack.c.b16 %v2376, %v2375
        %2393 = vmatprep.subr.bf16.mxu0 0
        %2394 = vmatpush1.bf16.msra.mxu0 %v2377
        %2395 = vmatprep.subr.bf16.mxu0 0
        %2396 = vmatpush1.bf16.msra.mxu0 %v2378
        %2397 = vmatprep.subr.bf16.mxu0 0
        %2398 = vmatpush1.bf16.msra.mxu0 %v2379
        %2399 = vmatprep.subr.bf16.mxu0 0
        %2400 = vmatpush1.bf16.msra.mxu0 %v2380
        %2401 = vmatprep.subr.bf16.mxu0 0
        %2402 = vmatpush1.bf16.msra.mxu0 %v2381
        %2403 = vmatprep.subr.bf16.mxu0 0
        %2404 = vmatpush1.bf16.msra.mxu0 %v2382
        %2405 = vmatprep.subr.bf16.mxu0 0
        %2406 = vmatpush1.bf16.msra.mxu0 %v2383
        %2407 = vmatprep.subr.bf16.mxu0 0
        %2408 = vmatpush1.bf16.msra.mxu0 %v2384
        %2409 = vmatprep.subr.bf16.mxu0 0
        %2410 = vmatpush1.bf16.msra.mxu0 0
        %2411 = vmatprep.subr.bf16.mxu0 0
        %2412 = vmatpush1.bf16.msra.mxu0 0
        %2413 = vmatprep.subr.bf16.mxu0 0
        %2414 = vmatpush1.bf16.msra.mxu0 0
        %2415 = vmatprep.subr.bf16.mxu0 0
        %2416 = vmatpush1.bf16.msra.mxu0 0
        %2417 = vmatprep.subr.bf16.mxu0 0
        %2418 = vmatpush1.bf16.msra.mxu0 0
        %2419 = vmatprep.subr.bf16.mxu0 0
        %2420 = vmatpush1.bf16.msra.mxu0 0
        %2421 = vmatprep.subr.bf16.mxu0 0
        %2422 = vmatpush1.bf16.msra.mxu0 0
        %2423 = vmatprep.subr.bf16.mxu0 0
        %2424 = vmatpush1.bf16.msra.mxu0 0
        %2425 = vmatprep.mubr.bf16.mxu0 0
        %2426 = vmatmul.mubr.bf16.gmra.mrb[0].mxu0 %v2319
        %v2427 = vpop.f32.mrb[0].mxu0
        %v2428 = vadd.f32 %v2343, %v2427
        %v2429 = vpop.f32.mrb[0].mxu0
        %v2430 = vpop.f32.mrb[0].mxu0
        %v2431 = vpop.f32.mrb[0].mxu0
        %2432 = vdwg.mxu0
        %v2433 = vadd.f32 %v2204, %v2428
        %s2434 = scalar_lea.vmem %s7, 1
        %v2435 = vld [vmem:[%s2434] sm:$0x1]
        %s2436 = scalar_lea.vmem %s8, 1
        %v2437 = vld [vmem:[%s2436] sm:$0x1]
        %v2438 = vsel %vm1466, %v2433, 0.0
        %2439 = vadd.xlane.f32.xlu0 %v2438
        %v2440 = vpop.xlane.xlu0 %2439
        %v2441 = vmul.f32 %v2440, %v1470
        %v2442 = vsub.f32 %v2433, %v2441
        %v2443 = vmul.f32 %v2442, %v2442
        %v2444 = vsel %vm1466, %v2443, 0.0
        %2445 = vadd.xlane.f32.xlu0 %v2444
        %v2446 = vpop.xlane.xlu0 %2445
        %v2447 = vmul.f32 %v2446, %v1470
        %v2448 = vadd.f32 %v2447, 1e-05
        %v2449 = vrsqrt.pop %v2448
        %v2450 = vmul.f32 %v2442, %v2449
        %v2452 = vlaneseq
        %v2453 = vshrl.u32 %v2452, 7
        %v2454 = vsub.s32 0, %v2453
        %v2455 = vrot.slane %v2435, %v2454
        %v2457 = vmul.f32 %v2450, %v2455
        %v2459 = vlaneseq
        %v2460 = vshrl.u32 %v2459, 7
        %v2461 = vsub.s32 0, %v2460
        %v2462 = vrot.slane %v2437, %v2461
        %v2464 = vadd.f32 %v2457, %v2462
        %v2465 = vpack.c.bf16 %v2464, %v2464
        %s2466 = scalar_lea.vmem [#allocation11], 256
        %v2467 = vld [vmem:[%s2466] sm:$0xff]
        %v2468 = vld [vmem:[%s2466 + $0x8] sm:$0xff]
        %v2469 = vld [vmem:[%s2466 + $0x10] sm:$0xff]
        %v2470 = vld [vmem:[%s2466 + $0x18] sm:$0xff]
        %v2471 = vld [vmem:[%s2466 + $0x20] sm:$0xff]
        %v2472 = vld [vmem:[%s2466 + $0x28] sm:$0xff]
        %v2473 = vld [vmem:[%s2466 + $0x30] sm:$0xff]
        %v2474 = vld [vmem:[%s2466 + $0x38] sm:$0xff]
        %v2475 = vld [vmem:[%s2466 + $0x40] sm:$0xff]
        %v2476 = vld [vmem:[%s2466 + $0x48] sm:$0xff]
        %v2477 = vld [vmem:[%s2466 + $0x50] sm:$0xff]
        %v2478 = vld [vmem:[%s2466 + $0x58] sm:$0xff]
        %v2479 = vld [vmem:[%s2466 + $0x60] sm:$0xff]
        %v2480 = vld [vmem:[%s2466 + $0x68] sm:$0xff]
        %v2481 = vld [vmem:[%s2466 + $0x70] sm:$0xff]
        %v2482 = vld [vmem:[%s2466 + $0x78] sm:$0xff]
        %v2483 = vld [vmem:[%s2466 + $0x80] sm:$0xff]
        %v2484 = vld [vmem:[%s2466 + $0x88] sm:$0xff]
        %v2485 = vld [vmem:[%s2466 + $0x90] sm:$0xff]
        %v2486 = vld [vmem:[%s2466 + $0x98] sm:$0xff]
        %v2487 = vld [vmem:[%s2466 + $0xa0] sm:$0xff]
        %v2488 = vld [vmem:[%s2466 + $0xa8] sm:$0xff]
        %v2489 = vld [vmem:[%s2466 + $0xb0] sm:$0xff]
        %v2490 = vld [vmem:[%s2466 + $0xb8] sm:$0xff]
        %v2491 = vld [vmem:[%s2466 + $0xc0] sm:$0xff]
        %v2492 = vld [vmem:[%s2466 + $0xc8] sm:$0xff]
        %v2493 = vld [vmem:[%s2466 + $0xd0] sm:$0xff]
        %v2494 = vld [vmem:[%s2466 + $0xd8] sm:$0xff]
        %v2495 = vld [vmem:[%s2466 + $0xe0] sm:$0xff]
        %v2496 = vld [vmem:[%s2466 + $0xe8] sm:$0xff]
        %v2497 = vld [vmem:[%s2466 + $0xf0] sm:$0xff]
        %v2498 = vld [vmem:[%s2466 + $0xf8] sm:$0xff]
        %s2499 = scalar_lea.vmem %s10, 4
        %v2500 = vld [vmem:[%s2499] sm:$0xf]
        %v2502 = vlaneseq
        %v2503 = vshrl.u32 %v2502, 7
        %v2504 = vsub.s32 0, %v2503
        %v2505 = vrot.slane %v2500, %v2504
        %v2506 = vlaneseq
        %v2507 = vshrl.u32 %v2506, 7
        %v2508 = vsub.s32 1, %v2507
        %v2509 = vrot.slane %v2500, %v2508
        %v2510 = vlaneseq
        %v2511 = vshrl.u32 %v2510, 7
        %v2512 = vsub.s32 2, %v2511
        %v2513 = vrot.slane %v2500, %v2512
        %v2514 = vlaneseq
        %v2515 = vshrl.u32 %v2514, 7
        %v2516 = vsub.s32 3, %v2515
        %v2517 = vrot.slane %v2500, %v2516
        %v2554 = vunpack.c.l.b16 %v2467
        %v2555 = vunpack.c.h.b16 %v2467
        %v2556 = vunpack.c.l.b16 %v2468
        %v2557 = vunpack.c.h.b16 %v2468
        %v2558 = vunpack.c.l.b16 %v2469
        %v2559 = vunpack.c.h.b16 %v2469
        %v2560 = vunpack.c.l.b16 %v2470
        %v2561 = vunpack.c.h.b16 %v2470
        %v2562 = vunpack.c.l.b16 %v2471
        %v2563 = vunpack.c.h.b16 %v2471
        %v2564 = vunpack.c.l.b16 %v2472
        %v2565 = vunpack.c.h.b16 %v2472
        %v2566 = vunpack.c.l.b16 %v2473
        %v2567 = vunpack.c.h.b16 %v2473
        %v2568 = vunpack.c.l.b16 %v2474
        %v2569 = vunpack.c.h.b16 %v2474
        %v2570 = vunpack.c.l.b16 %v2475
        %v2571 = vunpack.c.h.b16 %v2475
        %v2572 = vunpack.c.l.b16 %v2476
        %v2573 = vunpack.c.h.b16 %v2476
        %v2574 = vunpack.c.l.b16 %v2477
        %v2575 = vunpack.c.h.b16 %v2477
        %v2576 = vunpack.c.l.b16 %v2478
        %v2577 = vunpack.c.h.b16 %v2478
        %v2578 = vunpack.c.l.b16 %v2479
        %v2579 = vunpack.c.h.b16 %v2479
        %v2580 = vunpack.c.l.b16 %v2480
        %v2581 = vunpack.c.h.b16 %v2480
        %v2582 = vunpack.c.l.b16 %v2481
        %v2583 = vunpack.c.h.b16 %v2481
        %v2584 = vunpack.c.l.b16 %v2482
        %v2585 = vunpack.c.h.b16 %v2482
        %v2586 = vunpack.c.l.b16 %v2483
        %v2587 = vunpack.c.h.b16 %v2483
        %v2588 = vunpack.c.l.b16 %v2484
        %v2589 = vunpack.c.h.b16 %v2484
        %v2590 = vunpack.c.l.b16 %v2485
        %v2591 = vunpack.c.h.b16 %v2485
        %v2592 = vunpack.c.l.b16 %v2486
        %v2593 = vunpack.c.h.b16 %v2486
        %v2594 = vunpack.c.l.b16 %v2487
        %v2595 = vunpack.c.h.b16 %v2487
        %v2596 = vunpack.c.l.b16 %v2488
        %v2597 = vunpack.c.h.b16 %v2488
        %v2598 = vunpack.c.l.b16 %v2489
        %v2599 = vunpack.c.h.b16 %v2489
        %v2600 = vunpack.c.l.b16 %v2490
        %v2601 = vunpack.c.h.b16 %v2490
        %v2602 = vunpack.c.l.b16 %v2491
        %v2603 = vunpack.c.h.b16 %v2491
        %v2604 = vunpack.c.l.b16 %v2492
        %v2605 = vunpack.c.h.b16 %v2492
        %v2606 = vunpack.c.l.b16 %v2493
        %v2607 = vunpack.c.h.b16 %v2493
        %v2608 = vunpack.c.l.b16 %v2494
        %v2609 = vunpack.c.h.b16 %v2494
        %v2610 = vunpack.c.l.b16 %v2495
        %v2611 = vunpack.c.h.b16 %v2495
        %v2612 = vunpack.c.l.b16 %v2496
        %v2613 = vunpack.c.h.b16 %v2496
        %v2614 = vunpack.c.l.b16 %v2497
        %v2615 = vunpack.c.h.b16 %v2497
        %v2616 = vunpack.c.l.b16 %v2498
        %v2617 = vunpack.c.h.b16 %v2498
        %v2618 = vpack.c.b16 %v2558, %v2554
        %v2619 = vpack.c.b16 %v2559, %v2555
        %v2620 = vpack.c.b16 %v2560, %v2556
        %v2621 = vpack.c.b16 %v2561, %v2557
        %v2622 = vpack.c.b16 %v2566, %v2562
        %v2623 = vpack.c.b16 %v2567, %v2563
        %v2624 = vpack.c.b16 %v2568, %v2564
        %v2625 = vpack.c.b16 %v2569, %v2565
        %v2626 = vpack.c.b16 %v2574, %v2570
        %v2627 = vpack.c.b16 %v2575, %v2571
        %v2628 = vpack.c.b16 %v2576, %v2572
        %v2629 = vpack.c.b16 %v2577, %v2573
        %v2630 = vpack.c.b16 %v2582, %v2578
        %v2631 = vpack.c.b16 %v2583, %v2579
        %v2632 = vpack.c.b16 %v2584, %v2580
        %v2633 = vpack.c.b16 %v2585, %v2581
        %v2634 = vpack.c.b16 %v2590, %v2586
        %v2635 = vpack.c.b16 %v2591, %v2587
        %v2636 = vpack.c.b16 %v2592, %v2588
        %v2637 = vpack.c.b16 %v2593, %v2589
        %v2638 = vpack.c.b16 %v2598, %v2594
        %v2639 = vpack.c.b16 %v2599, %v2595
        %v2640 = vpack.c.b16 %v2600, %v2596
        %v2641 = vpack.c.b16 %v2601, %v2597
        %v2642 = vpack.c.b16 %v2606, %v2602
        %v2643 = vpack.c.b16 %v2607, %v2603
        %v2644 = vpack.c.b16 %v2608, %v2604
        %v2645 = vpack.c.b16 %v2609, %v2605
        %v2646 = vpack.c.b16 %v2614, %v2610
        %v2647 = vpack.c.b16 %v2615, %v2611
        %v2648 = vpack.c.b16 %v2616, %v2612
        %v2649 = vpack.c.b16 %v2617, %v2613
        %2682 = vmatprep.subr.bf16.mxu0 %v2619
        %2683 = vmatpush1.bf16.msra.mxu0 %v2618
        %2684 = vmatprep.subr.bf16.mxu0 %v2623
        %2685 = vmatpush1.bf16.msra.mxu0 %v2622
        %2686 = vmatprep.subr.bf16.mxu0 %v2627
        %2687 = vmatpush1.bf16.msra.mxu0 %v2626
        %2688 = vmatprep.subr.bf16.mxu0 %v2631
        %2689 = vmatpush1.bf16.msra.mxu0 %v2630
        %2690 = vmatprep.subr.bf16.mxu0 %v2635
        %2691 = vmatpush1.bf16.msra.mxu0 %v2634
        %2692 = vmatprep.subr.bf16.mxu0 %v2639
        %2693 = vmatpush1.bf16.msra.mxu0 %v2638
        %2694 = vmatprep.subr.bf16.mxu0 %v2643
        %2695 = vmatpush1.bf16.msra.mxu0 %v2642
        %2696 = vmatprep.subr.bf16.mxu0 %v2647
        %2697 = vmatpush1.bf16.msra.mxu0 %v2646
        %2698 = vmatprep.subr.bf16.mxu0 0
        %2699 = vmatpush1.bf16.msra.mxu0 0
        %2700 = vmatprep.subr.bf16.mxu0 0
        %2701 = vmatpush1.bf16.msra.mxu0 0
        %2702 = vmatprep.subr.bf16.mxu0 0
        %2703 = vmatpush1.bf16.msra.mxu0 0
        %2704 = vmatprep.subr.bf16.mxu0 0
        %2705 = vmatpush1.bf16.msra.mxu0 0
        %2706 = vmatprep.subr.bf16.mxu0 0
        %2707 = vmatpush1.bf16.msra.mxu0 0
        %2708 = vmatprep.subr.bf16.mxu0 0
        %2709 = vmatpush1.bf16.msra.mxu0 0
        %2710 = vmatprep.subr.bf16.mxu0 0
        %2711 = vmatpush1.bf16.msra.mxu0 0
        %2712 = vmatprep.subr.bf16.mxu0 0
        %2713 = vmatpush1.bf16.msra.mxu0 0
        %2714 = vmatprep.mubr.bf16.mxu0 0
        %2715 = vmatmul.mubr.bf16.gmra.mrb[0].mxu0 %v2465
        %v2716 = vpop.f32.mrb[0].mxu0
        %v2717 = vadd.f32 %v2505, %v2716
        %v2718 = vpop.f32.mrb[0].mxu0
        %v2719 = vadd.f32 %v2509, %v2718
        %v2720 = vpop.f32.mrb[0].mxu0
        %v2721 = vpop.f32.mrb[0].mxu0
        %2722 = vdwg.mxu0
        %2723 = vmatprep.subr.bf16.mxu0 %v2621
        %2724 = vmatpush1.bf16.msra.mxu0 %v2620
        %2725 = vmatprep.subr.bf16.mxu0 %v2625
        %2726 = vmatpush1.bf16.msra.mxu0 %v2624
        %2727 = vmatprep.subr.bf16.mxu0 %v2629
        %2728 = vmatpush1.bf16.msra.mxu0 %v2628
        %2729 = vmatprep.subr.bf16.mxu0 %v2633
        %2730 = vmatpush1.bf16.msra.mxu0 %v2632
        %2731 = vmatprep.subr.bf16.mxu0 %v2637
        %2732 = vmatpush1.bf16.msra.mxu0 %v2636
        %2733 = vmatprep.subr.bf16.mxu0 %v2641
        %2734 = vmatpush1.bf16.msra.mxu0 %v2640
        %2735 = vmatprep.subr.bf16.mxu0 %v2645
        %2736 = vmatpush1.bf16.msra.mxu0 %v2644
        %2737 = vmatprep.subr.bf16.mxu0 %v2649
        %2738 = vmatpush1.bf16.msra.mxu0 %v2648
        %2739 = vmatprep.subr.bf16.mxu0 0
        %2740 = vmatpush1.bf16.msra.mxu0 0
        %2741 = vmatprep.subr.bf16.mxu0 0
        %2742 = vmatpush1.bf16.msra.mxu0 0
        %2743 = vmatprep.subr.bf16.mxu0 0
        %2744 = vmatpush1.bf16.msra.mxu0 0
        %2745 = vmatprep.subr.bf16.mxu0 0
        %2746 = vmatpush1.bf16.msra.mxu0 0
        %2747 = vmatprep.subr.bf16.mxu0 0
        %2748 = vmatpush1.bf16.msra.mxu0 0
        %2749 = vmatprep.subr.bf16.mxu0 0
        %2750 = vmatpush1.bf16.msra.mxu0 0
        %2751 = vmatprep.subr.bf16.mxu0 0
        %2752 = vmatpush1.bf16.msra.mxu0 0
        %2753 = vmatprep.subr.bf16.mxu0 0
        %2754 = vmatpush1.bf16.msra.mxu0 0
        %2755 = vmatprep.mubr.bf16.mxu0 0
        %2756 = vmatmul.mubr.bf16.gmra.mrb[0].mxu0 %v2465
        %v2757 = vpop.f32.mrb[0].mxu0
        %v2758 = vadd.f32 %v2513, %v2757
        %v2759 = vpop.f32.mrb[0].mxu0
        %v2760 = vadd.f32 %v2517, %v2759
        %v2761 = vpop.f32.mrb[0].mxu0
        %v2762 = vpop.f32.mrb[0].mxu0
        %2763 = vdwg.mxu0
        %v2764 = vmul.f32 %v2717, 0.5
        %v2765 = vmul.f32 %v2719, 0.5
        %v2766 = vmul.f32 %v2758, 0.5
        %v2767 = vmul.f32 %v2760, 0.5
        %v2768 = vmul.f32 %v2717, 0.044715
        %v2769 = vmul.f32 %v2719, 0.044715
        %v2770 = vmul.f32 %v2758, 0.044715
        %v2771 = vmul.f32 %v2760, 0.044715
        %v2772 = vmul.f32 %v2768, %v2717
        %v2773 = vmul.f32 %v2769, %v2719
        %v2774 = vmul.f32 %v2770, %v2758
        %v2775 = vmul.f32 %v2771, %v2760
        %v2776 = vmul.f32 %v2772, %v2717
        %v2777 = vmul.f32 %v2773, %v2719
        %v2778 = vmul.f32 %v2774, %v2758
        %v2779 = vmul.f32 %v2775, %v2760
        %v2780 = vadd.f32 %v2717, %v2776
        %v2781 = vadd.f32 %v2719, %v2777
        %v2782 = vadd.f32 %v2758, %v2778
        %v2783 = vadd.f32 %v2760, %v2779
        %v2784 = vmul.f32 %v2780, 0.7978846
        %v2785 = vmul.f32 %v2781, 0.7978846
        %v2786 = vmul.f32 %v2782, 0.7978846
        %v2787 = vmul.f32 %v2783, 0.7978846
        %v2788 = vtanh.pop %v2784
        %v2789 = vtanh.pop %v2785
        %v2790 = vtanh.pop %v2786
        %v2791 = vtanh.pop %v2787
        %v2792 = vadd.f32 %v2788, 1.0
        %v2793 = vadd.f32 %v2789, 1.0
        %v2794 = vadd.f32 %v2790, 1.0
        %v2795 = vadd.f32 %v2791, 1.0
        %v2796 = vmul.f32 %v2764, %v2792
        %v2797 = vmul.f32 %v2765, %v2793
        %v2798 = vmul.f32 %v2766, %v2794
        %v2799 = vmul.f32 %v2767, %v2795
        %v2800 = vpack.c.bf16 %v2796, %v2796
        %v2801 = vpack.c.bf16 %v2797, %v2797
        %v2802 = vpack.c.bf16 %v2798, %v2798
        %v2803 = vpack.c.bf16 %v2799, %v2799
        %s2804 = scalar_lea.vmem [#allocation13], 256
        %v2805 = vld [vmem:[%s2804] sm:$0xf]
        %v2806 = vld [vmem:[%s2804 + $0x4] sm:$0xf]
        %v2807 = vld [vmem:[%s2804 + $0x8] sm:$0xf]
        %v2808 = vld [vmem:[%s2804 + $0xc] sm:$0xf]
        %v2809 = vld [vmem:[%s2804 + $0x10] sm:$0xf]
        %v2810 = vld [vmem:[%s2804 + $0x14] sm:$0xf]
        %v2811 = vld [vmem:[%s2804 + $0x18] sm:$0xf]
        %v2812 = vld [vmem:[%s2804 + $0x1c] sm:$0xf]
        %v2813 = vld [vmem:[%s2804 + $0x20] sm:$0xf]
        %v2814 = vld [vmem:[%s2804 + $0x24] sm:$0xf]
        %v2815 = vld [vmem:[%s2804 + $0x28] sm:$0xf]
        %v2816 = vld [vmem:[%s2804 + $0x2c] sm:$0xf]
        %v2817 = vld [vmem:[%s2804 + $0x30] sm:$0xf]
        %v2818 = vld [vmem:[%s2804 + $0x34] sm:$0xf]
        %v2819 = vld [vmem:[%s2804 + $0x38] sm:$0xf]
        %v2820 = vld [vmem:[%s2804 + $0x3c] sm:$0xf]
        %v2821 = vld [vmem:[%s2804 + $0x40] sm:$0xf]
        %v2822 = vld [vmem:[%s2804 + $0x44] sm:$0xf]
        %v2823 = vld [vmem:[%s2804 + $0x48] sm:$0xf]
        %v2824 = vld [vmem:[%s2804 + $0x4c] sm:$0xf]
        %v2825 = vld [vmem:[%s2804 + $0x50] sm:$0xf]
        %v2826 = vld [vmem:[%s2804 + $0x54] sm:$0xf]
        %v2827 = vld [vmem:[%s2804 + $0x58] sm:$0xf]
        %v2828 = vld [vmem:[%s2804 + $0x5c] sm:$0xf]
        %v2829 = vld [vmem:[%s2804 + $0x60] sm:$0xf]
        %v2830 = vld [vmem:[%s2804 + $0x64] sm:$0xf]
        %v2831 = vld [vmem:[%s2804 + $0x68] sm:$0xf]
        %v2832 = vld [vmem:[%s2804 + $0x6c] sm:$0xf]
        %v2833 = vld [vmem:[%s2804 + $0x70] sm:$0xf]
        %v2834 = vld [vmem:[%s2804 + $0x74] sm:$0xf]
        %v2835 = vld [vmem:[%s2804 + $0x78] sm:$0xf]
        %v2836 = vld [vmem:[%s2804 + $0x7c] sm:$0xf]
        %v2837 = vld [vmem:[%s2804 + $0x80] sm:$0xf]
        %v2838 = vld [vmem:[%s2804 + $0x84] sm:$0xf]
        %v2839 = vld [vmem:[%s2804 + $0x88] sm:$0xf]
        %v2840 = vld [vmem:[%s2804 + $0x8c] sm:$0xf]
        %v2841 = vld [vmem:[%s2804 + $0x90] sm:$0xf]
        %v2842 = vld [vmem:[%s2804 + $0x94] sm:$0xf]
        %v2843 = vld [vmem:[%s2804 + $0x98] sm:$0xf]
        %v2844 = vld [vmem:[%s2804 + $0x9c] sm:$0xf]
        %v2845 = vld [vmem:[%s2804 + $0xa0] sm:$0xf]
        %v2846 = vld [vmem:[%s2804 + $0xa4] sm:$0xf]
        %v2847 = vld [vmem:[%s2804 + $0xa8] sm:$0xf]
        %v2848 = vld [vmem:[%s2804 + $0xac] sm:$0xf]
        %v2849 = vld [vmem:[%s2804 + $0xb0] sm:$0xf]
        %v2850 = vld [vmem:[%s2804 + $0xb4] sm:$0xf]
        %v2851 = vld [vmem:[%s2804 + $0xb8] sm:$0xf]
        %v2852 = vld [vmem:[%s2804 + $0xbc] sm:$0xf]
        %v2853 = vld [vmem:[%s2804 + $0xc0] sm:$0xf]
        %v2854 = vld [vmem:[%s2804 + $0xc4] sm:$0xf]
        %v2855 = vld [vmem:[%s2804 + $0xc8] sm:$0xf]
        %v2856 = vld [vmem:[%s2804 + $0xcc] sm:$0xf]
        %v2857 = vld [vmem:[%s2804 + $0xd0] sm:$0xf]
        %v2858 = vld [vmem:[%s2804 + $0xd4] sm:$0xf]
        %v2859 = vld [vmem:[%s2804 + $0xd8] sm:$0xf]
        %v2860 = vld [vmem:[%s2804 + $0xdc] sm:$0xf]
        %v2861 = vld [vmem:[%s2804 + $0xe0] sm:$0xf]
        %v2862 = vld [vmem:[%s2804 + $0xe4] sm:$0xf]
        %v2863 = vld [vmem:[%s2804 + $0xe8] sm:$0xf]
        %v2864 = vld [vmem:[%s2804 + $0xec] sm:$0xf]
        %v2865 = vld [vmem:[%s2804 + $0xf0] sm:$0xf]
        %v2866 = vld [vmem:[%s2804 + $0xf4] sm:$0xf]
        %v2867 = vld [vmem:[%s2804 + $0xf8] sm:$0xf]
        %v2868 = vld [vmem:[%s2804 + $0xfc] sm:$0xf]
        %s2869 = scalar_lea.vmem %s12, 1
        %v2870 = vld [vmem:[%s2869] sm:$0x1]
        %v2872 = vlaneseq
        %v2873 = vshrl.u32 %v2872, 7
        %v2874 = vsub.s32 0, %v2873
        %v2875 = vrot.slane %v2870, %v2874
        %v2941 = vunpack.c.l.b16 %v2805
        %v2942 = vunpack.c.l.b16 %v2806
        %v2943 = vunpack.c.l.b16 %v2807
        %v2944 = vunpack.c.l.b16 %v2808
        %v2945 = vunpack.c.l.b16 %v2809
        %v2946 = vunpack.c.l.b16 %v2810
        %v2947 = vunpack.c.l.b16 %v2811
        %v2948 = vunpack.c.l.b16 %v2812
        %v2949 = vunpack.c.l.b16 %v2813
        %v2950 = vunpack.c.l.b16 %v2814
        %v2951 = vunpack.c.l.b16 %v2815
        %v2952 = vunpack.c.l.b16 %v2816
        %v2953 = vunpack.c.l.b16 %v2817
        %v2954 = vunpack.c.l.b16 %v2818
        %v2955 = vunpack.c.l.b16 %v2819
        %v2956 = vunpack.c.l.b16 %v2820
        %v2957 = vunpack.c.l.b16 %v2821
        %v2958 = vunpack.c.l.b16 %v2822
        %v2959 = vunpack.c.l.b16 %v2823
        %v2960 = vunpack.c.l.b16 %v2824
        %v2961 = vunpack.c.l.b16 %v2825
        %v2962 = vunpack.c.l.b16 %v2826
        %v2963 = vunpack.c.l.b16 %v2827
        %v2964 = vunpack.c.l.b16 %v2828
        %v2965 = vunpack.c.l.b16 %v2829
        %v2966 = vunpack.c.l.b16 %v2830
        %v2967 = vunpack.c.l.b16 %v2831
        %v2968 = vunpack.c.l.b16 %v2832
        %v2969 = vunpack.c.l.b16 %v2833
        %v2970 = vunpack.c.l.b16 %v2834
        %v2971 = vunpack.c.l.b16 %v2835
        %v2972 = vunpack.c.l.b16 %v2836
        %v2973 = vunpack.c.l.b16 %v2837
        %v2974 = vunpack.c.l.b16 %v2838
        %v2975 = vunpack.c.l.b16 %v2839
        %v2976 = vunpack.c.l.b16 %v2840
        %v2977 = vunpack.c.l.b16 %v2841
        %v2978 = vunpack.c.l.b16 %v2842
        %v2979 = vunpack.c.l.b16 %v2843
        %v2980 = vunpack.c.l.b16 %v2844
        %v2981 = vunpack.c.l.b16 %v2845
        %v2982 = vunpack.c.l.b16 %v2846
        %v2983 = vunpack.c.l.b16 %v2847
        %v2984 = vunpack.c.l.b16 %v2848
        %v2985 = vunpack.c.l.b16 %v2849
        %v2986 = vunpack.c.l.b16 %v2850
        %v2987 = vunpack.c.l.b16 %v2851
        %v2988 = vunpack.c.l.b16 %v2852
        %v2989 = vunpack.c.l.b16 %v2853
        %v2990 = vunpack.c.l.b16 %v2854
        %v2991 = vunpack.c.l.b16 %v2855
        %v2992 = vunpack.c.l.b16 %v2856
        %v2993 = vunpack.c.l.b16 %v2857
        %v2994 = vunpack.c.l.b16 %v2858
        %v2995 = vunpack.c.l.b16 %v2859
        %v2996 = vunpack.c.l.b16 %v2860
        %v2997 = vunpack.c.l.b16 %v2861
        %v2998 = vunpack.c.l.b16 %v2862
        %v2999 = vunpack.c.l.b16 %v2863
        %v3000 = vunpack.c.l.b16 %v2864
        %v3001 = vunpack.c.l.b16 %v2865
        %v3002 = vunpack.c.l.b16 %v2866
        %v3003 = vunpack.c.l.b16 %v2867
        %v3004 = vunpack.c.l.b16 %v2868
        %v3005 = vpack.c.b16 %v2942, %v2941
        %v3006 = vpack.c.b16 %v2944, %v2943
        %v3007 = vpack.c.b16 %v2946, %v2945
        %v3008 = vpack.c.b16 %v2948, %v2947
        %v3009 = vpack.c.b16 %v2950, %v2949
        %v3010 = vpack.c.b16 %v2952, %v2951
        %v3011 = vpack.c.b16 %v2954, %v2953
        %v3012 = vpack.c.b16 %v2956, %v2955
        %v3013 = vpack.c.b16 %v2958, %v2957
        %v3014 = vpack.c.b16 %v2960, %v2959
        %v3015 = vpack.c.b16 %v2962, %v2961
        %v3016 = vpack.c.b16 %v2964, %v2963
        %v3017 = vpack.c.b16 %v2966, %v2965
        %v3018 = vpack.c.b16 %v2968, %v2967
        %v3019 = vpack.c.b16 %v2970, %v2969
        %v3020 = vpack.c.b16 %v2972, %v2971
        %v3021 = vpack.c.b16 %v2974, %v2973
        %v3022 = vpack.c.b16 %v2976, %v2975
        %v3023 = vpack.c.b16 %v2978, %v2977
        %v3024 = vpack.c.b16 %v2980, %v2979
        %v3025 = vpack.c.b16 %v2982, %v2981
        %v3026 = vpack.c.b16 %v2984, %v2983
        %v3027 = vpack.c.b16 %v2986, %v2985
        %v3028 = vpack.c.b16 %v2988, %v2987
        %v3029 = vpack.c.b16 %v2990, %v2989
        %v3030 = vpack.c.b16 %v2992, %v2991
        %v3031 = vpack.c.b16 %v2994, %v2993
        %v3032 = vpack.c.b16 %v2996, %v2995
        %v3033 = vpack.c.b16 %v2998, %v2997
        %v3034 = vpack.c.b16 %v3000, %v2999
        %v3035 = vpack.c.b16 %v3002, %v3001
        %v3036 = vpack.c.b16 %v3004, %v3003
        %3069 = vmatprep.subr.bf16.mxu0 0
        %3070 = vmatpush1.bf16.msra.mxu0 %v3005
        %3071 = vmatprep.subr.bf16.mxu0 0
        %3072 = vmatpush1.bf16.msra.mxu0 %v3006
        %3073 = vmatprep.subr.bf16.mxu0 0
        %3074 = vmatpush1.bf16.msra.mxu0 %v3007
        %3075 = vmatprep.subr.bf16.mxu0 0
        %3076 = vmatpush1.bf16.msra.mxu0 %v3008
        %3077 = vmatprep.subr.bf16.mxu0 0
        %3078 = vmatpush1.bf16.msra.mxu0 %v3009
        %3079 = vmatprep.subr.bf16.mxu0 0
        %3080 = vmatpush1.bf16.msra.mxu0 %v3010
        %3081 = vmatprep.subr.bf16.mxu0 0
        %3082 = vmatpush1.bf16.msra.mxu0 %v3011
        %3083 = vmatprep.subr.bf16.mxu0 0
        %3084 = vmatpush1.bf16.msra.mxu0 %v3012
        %3085 = vmatprep.subr.bf16.mxu0 0
        %3086 = vmatpush1.bf16.msra.mxu0 %v3013
        %3087 = vmatprep.subr.bf16.mxu0 0
        %3088 = vmatpush1.bf16.msra.mxu0 %v3014
        %3089 = vmatprep.subr.bf16.mxu0 0
        %3090 = vmatpush1.bf16.msra.mxu0 %v3015
        %3091 = vmatprep.subr.bf16.mxu0 0
        %3092 = vmatpush1.bf16.msra.mxu0 %v3016
        %3093 = vmatprep.subr.bf16.mxu0 0
        %3094 = vmatpush1.bf16.msra.mxu0 %v3017
        %3095 = vmatprep.subr.bf16.mxu0 0
        %3096 = vmatpush1.bf16.msra.mxu0 %v3018
        %3097 = vmatprep.subr.bf16.mxu0 0
        %3098 = vmatpush1.bf16.msra.mxu0 %v3019
        %3099 = vmatprep.subr.bf16.mxu0 0
        %3100 = vmatpush1.bf16.msra.mxu0 %v3020
        %3101 = vmatprep.mubr.bf16.mxu0 %v2801
        %3102 = vmatmul.mubr.bf16.gmra.mrb[0].mxu0 %v2800
        %v3103 = vpop.f32.mrb[0].mxu0
        %v3104 = vadd.f32 %v2875, %v3103
        %v3105 = vpop.f32.mrb[0].mxu0
        %v3106 = vpop.f32.mrb[0].mxu0
        %v3107 = vpop.f32.mrb[0].mxu0
        %3108 = vdwg.mxu0
        %3109 = vmatprep.subr.bf16.mxu0 0
        %3110 = vmatpush1.bf16.msra.mxu0 %v3021
        %3111 = vmatprep.subr.bf16.mxu0 0
        %3112 = vmatpush1.bf16.msra.mxu0 %v3022
        %3113 = vmatprep.subr.bf16.mxu0 0
        %3114 = vmatpush1.bf16.msra.mxu0 %v3023
        %3115 = vmatprep.subr.bf16.mxu0 0
        %3116 = vmatpush1.bf16.msra.mxu0 %v3024
        %3117 = vmatprep.subr.bf16.mxu0 0
        %3118 = vmatpush1.bf16.msra.mxu0 %v3025
        %3119 = vmatprep.subr.bf16.mxu0 0
        %3120 = vmatpush1.bf16.msra.mxu0 %v3026
        %3121 = vmatprep.subr.bf16.mxu0 0
        %3122 = vmatpush1.bf16.msra.mxu0 %v3027
        %3123 = vmatprep.subr.bf16.mxu0 0
        %3124 = vmatpush1.bf16.msra.mxu0 %v3028
        %3125 = vmatprep.subr.bf16.mxu0 0
        %3126 = vmatpush1.bf16.msra.mxu0 %v3029
        %3127 = vmatprep.subr.bf16.mxu0 0
        %3128 = vmatpush1.bf16.msra.mxu0 %v3030
        %3129 = vmatprep.subr.bf16.mxu0 0
        %3130 = vmatpush1.bf16.msra.mxu0 %v3031
        %3131 = vmatprep.subr.bf16.mxu0 0
        %3132 = vmatpush1.bf16.msra.mxu0 %v3032
        %3133 = vmatprep.subr.bf16.mxu0 0
        %3134 = vmatpush1.bf16.msra.mxu0 %v3033
        %3135 = vmatprep.subr.bf16.mxu0 0
        %3136 = vmatpush1.bf16.msra.mxu0 %v3034
        %3137 = vmatprep.subr.bf16.mxu0 0
        %3138 = vmatpush1.bf16.msra.mxu0 %v3035
        %3139 = vmatprep.subr.bf16.mxu0 0
        %3140 = vmatpush1.bf16.msra.mxu0 %v3036
        %3141 = vmatprep.mubr.bf16.mxu0 %v2803
        %3142 = vmatmul.mubr.bf16.gmra.mrb[0].mxu0 %v2802
        %v3143 = vpop.f32.mrb[0].mxu0
        %v3144 = vadd.f32 %v3104, %v3143
        %v3145 = vpop.f32.mrb[0].mxu0
        %v3146 = vpop.f32.mrb[0].mxu0
        %v3147 = vpop.f32.mrb[0].mxu0
        %3148 = vdwg.mxu0
        %v3149 = vadd.f32 %v2464, %v3144
        %s3150 = scalar_lea.vmem %s13, 1
        %v3151 = vld [vmem:[%s3150] sm:$0x1]
        %s3152 = scalar_lea.vmem %s14, 1
        %v3153 = vld [vmem:[%s3152] sm:$0x1]
        %v3154 = vsel %vm1466, %v3149, 0.0
        %3155 = vadd.xlane.f32.xlu0 %v3154
        %v3156 = vpop.xlane.xlu0 %3155
        %v3157 = vmul.f32 %v3156, %v1470
        %v3158 = vsub.f32 %v3149, %v3157
        %v3159 = vmul.f32 %v3158, %v3158
        %v3160 = vsel %vm1466, %v3159, 0.0
        %3161 = vadd.xlane.f32.xlu0 %v3160
        %v3162 = vpop.xlane.xlu0 %3161
        %v3163 = vmul.f32 %v3162, %v1470
        %v3164 = vadd.f32 %v3163, 1e-05
        %v3165 = vrsqrt.pop %v3164
        %v3166 = vmul.f32 %v3158, %v3165
        %v3168 = vlaneseq
        %v3169 = vshrl.u32 %v3168, 7
        %v3170 = vsub.s32 0, %v3169
        %v3171 = vrot.slane %v3151, %v3170
        %v3173 = vmul.f32 %v3166, %v3171
        %v3175 = vlaneseq
        %v3176 = vshrl.u32 %v3175, 7
        %v3177 = vsub.s32 0, %v3176
        %v3178 = vrot.slane %v3153, %v3177
        %v3180 = vadd.f32 %v3173, %v3178
        %v3181 = vpack.c.bf16 %v3180, %v3180
        %v3182 = vld [vmem:[%s624] sm:$0xff]
        %v3183 = vld [vmem:[%s624 + $0x8] sm:$0xff]
        %v3184 = vld [vmem:[%s624 + $0x10] sm:$0xff]
        %v3185 = vld [vmem:[%s624 + $0x18] sm:$0xff]
        %v3186 = vld [vmem:[%s624 + $0x20] sm:$0xff]
        %v3187 = vld [vmem:[%s624 + $0x28] sm:$0xff]
        %v3188 = vld [vmem:[%s624 + $0x30] sm:$0xff]
        %v3189 = vld [vmem:[%s624 + $0x38] sm:$0xff]
        %v3190 = vld [vmem:[%s624 + $0x40] sm:$0xff]
        %v3191 = vld [vmem:[%s624 + $0x48] sm:$0xff]
        %v3192 = vld [vmem:[%s624 + $0x50] sm:$0xff]
        %v3193 = vld [vmem:[%s624 + $0x58] sm:$0xff]
        %v3194 = vld [vmem:[%s624 + $0x60] sm:$0xff]
        %v3195 = vld [vmem:[%s624 + $0x68] sm:$0xff]
        %v3196 = vld [vmem:[%s624 + $0x70] sm:$0xff]
        %v3197 = vld [vmem:[%s624 + $0x78] sm:$0xff]
        %v3198 = vld [vmem:[%s624 + $0x80] sm:$0xff]
        %v3199 = vld [vmem:[%s624 + $0x88] sm:$0xff]
        %v3200 = vld [vmem:[%s624 + $0x90] sm:$0xff]
        %v3201 = vld [vmem:[%s624 + $0x98] sm:$0xff]
        %v3202 = vld [vmem:[%s624 + $0xa0] sm:$0xff]
        %v3203 = vld [vmem:[%s624 + $0xa8] sm:$0xff]
        %v3204 = vld [vmem:[%s624 + $0xb0] sm:$0xff]
        %v3205 = vld [vmem:[%s624 + $0xb8] sm:$0xff]
        %v3206 = vld [vmem:[%s624 + $0xc0] sm:$0xff]
        %v3207 = vld [vmem:[%s624 + $0xc8] sm:$0xff]
        %v3208 = vld [vmem:[%s624 + $0xd0] sm:$0xff]
        %v3209 = vld [vmem:[%s624 + $0xd8] sm:$0xff]
        %v3210 = vld [vmem:[%s624 + $0xe0] sm:$0xff]
        %v3211 = vld [vmem:[%s624 + $0xe8] sm:$0xff]
        %v3212 = vld [vmem:[%s624 + $0xf0] sm:$0xff]
        %v3213 = vld [vmem:[%s624 + $0xf8] sm:$0xff]
        %v3214 = vld [vmem:[%s624 + $0x100] sm:$0xff]
        %v3215 = vld [vmem:[%s624 + $0x108] sm:$0xff]
        %v3216 = vld [vmem:[%s624 + $0x110] sm:$0xff]
        %v3217 = vld [vmem:[%s624 + $0x118] sm:$0xff]
        %v3218 = vld [vmem:[%s624 + $0x120] sm:$0xff]
        %v3219 = vld [vmem:[%s624 + $0x128] sm:$0xff]
        %v3220 = vld [vmem:[%s624 + $0x130] sm:$0xff]
        %v3221 = vld [vmem:[%s624 + $0x138] sm:$0xff]
        %v3222 = vld [vmem:[%s624 + $0x140] sm:$0xff]
        %v3223 = vld [vmem:[%s624 + $0x148] sm:$0xff]
        %v3224 = vld [vmem:[%s624 + $0x150] sm:$0xff]
        %v3225 = vld [vmem:[%s624 + $0x158] sm:$0xff]
        %v3226 = vld [vmem:[%s624 + $0x160] sm:$0xff]
        %v3227 = vld [vmem:[%s624 + $0x168] sm:$0xff]
        %v3228 = vld [vmem:[%s624 + $0x170] sm:$0xff]
        %v3229 = vld [vmem:[%s624 + $0x178] sm:$0xff]
        %v3230 = vld [vmem:[%s624 + $0x180] sm:$0xff]
        %v3231 = vld [vmem:[%s624 + $0x188] sm:$0xff]
        %v3232 = vld [vmem:[%s624 + $0x190] sm:$0xff]
        %v3233 = vld [vmem:[%s624 + $0x198] sm:$0xff]
        %v3234 = vld [vmem:[%s624 + $0x1a0] sm:$0xff]
        %v3235 = vld [vmem:[%s624 + $0x1a8] sm:$0xff]
        %v3236 = vld [vmem:[%s624 + $0x1b0] sm:$0xff]
        %v3237 = vld [vmem:[%s624 + $0x1b8] sm:$0xff]
        %v3238 = vld [vmem:[%s624 + $0x1c0] sm:$0xff]
        %v3239 = vld [vmem:[%s624 + $0x1c8] sm:$0xff]
        %v3240 = vld [vmem:[%s624 + $0x1d0] sm:$0xff]
        %v3241 = vld [vmem:[%s624 + $0x1d8] sm:$0xff]
        %v3242 = vld [vmem:[%s624 + $0x1e0] sm:$0xff]
        %v3243 = vld [vmem:[%s624 + $0x1e8] sm:$0xff]
        %v3244 = vld [vmem:[%s624 + $0x1f0] sm:$0xff]
        %v3245 = vld [vmem:[%s624 + $0x1f8] sm:$0xff]
        %v3246 = vld [vmem:[%s624 + $0x200] sm:$0xff]
        %v3247 = vld [vmem:[%s624 + $0x208] sm:$0xff]
        %v3248 = vld [vmem:[%s624 + $0x210] sm:$0xff]
        %v3249 = vld [vmem:[%s624 + $0x218] sm:$0xff]
        %v3250 = vld [vmem:[%s624 + $0x220] sm:$0xff]
        %v3251 = vld [vmem:[%s624 + $0x228] sm:$0xff]
        %v3252 = vld [vmem:[%s624 + $0x230] sm:$0xff]
        %v3253 = vld [vmem:[%s624 + $0x238] sm:$0xff]
        %v3254 = vld [vmem:[%s624 + $0x240] sm:$0xff]
        %v3255 = vld [vmem:[%s624 + $0x248] sm:$0xff]
        %v3256 = vld [vmem:[%s624 + $0x250] sm:$0xff]
        %v3257 = vld [vmem:[%s624 + $0x258] sm:$0xff]
        %v3258 = vld [vmem:[%s624 + $0x260] sm:$0xff]
        %v3259 = vld [vmem:[%s624 + $0x268] sm:$0xff]
        %v3260 = vld [vmem:[%s624 + $0x270] sm:$0xff]
        %v3261 = vld [vmem:[%s624 + $0x278] sm:$0xff]
        %v3262 = vld [vmem:[%s624 + $0x280] sm:$0xff]
        %v3263 = vld [vmem:[%s624 + $0x288] sm:$0xff]
        %v3264 = vld [vmem:[%s624 + $0x290] sm:$0xff]
        %v3265 = vld [vmem:[%s624 + $0x298] sm:$0xff]
        %v3266 = vld [vmem:[%s624 + $0x2a0] sm:$0xff]
        %v3267 = vld [vmem:[%s624 + $0x2a8] sm:$0xff]
        %v3268 = vld [vmem:[%s624 + $0x2b0] sm:$0xff]
        %v3269 = vld [vmem:[%s624 + $0x2b8] sm:$0xff]
        %v3270 = vld [vmem:[%s624 + $0x2c0] sm:$0xff]
        %v3271 = vld [vmem:[%s624 + $0x2c8] sm:$0xff]
        %v3272 = vld [vmem:[%s624 + $0x2d0] sm:$0xff]
        %v3273 = vld [vmem:[%s624 + $0x2d8] sm:$0xff]
        %v3274 = vld [vmem:[%s624 + $0x2e0] sm:$0xff]
        %v3275 = vld [vmem:[%s624 + $0x2e8] sm:$0xff]
        %v3276 = vld [vmem:[%s624 + $0x2f0] sm:$0xff]
        %v3277 = vld [vmem:[%s624 + $0x2f8] sm:$0xff]
        %v3278 = vld [vmem:[%s683] sm:$0xff]
        %v3279 = vld [vmem:[%s683 + $0x8] sm:$0xf]
        %v3282 = vlaneseq
        %v3283 = vshrl.u32 %v3282, 7
        %v3284 = vsub.s32 0, %v3283
        %v3285 = vrot.slane %v3278, %v3284
        %v3286 = vlaneseq
        %v3287 = vshrl.u32 %v3286, 7
        %v3288 = vsub.s32 1, %v3287
        %v3289 = vrot.slane %v3278, %v3288
        %v3290 = vlaneseq
        %v3291 = vshrl.u32 %v3290, 7
        %v3292 = vsub.s32 2, %v3291
        %v3293 = vrot.slane %v3278, %v3292
        %v3294 = vlaneseq
        %v3295 = vshrl.u32 %v3294, 7
        %v3296 = vsub.s32 3, %v3295
        %v3297 = vrot.slane %v3278, %v3296
        %v3298 = vlaneseq
        %v3299 = vshrl.u32 %v3298, 7
        %v3300 = vsub.s32 4, %v3299
        %v3301 = vrot.slane %v3278, %v3300
        %v3302 = vlaneseq
        %v3303 = vshrl.u32 %v3302, 7
        %v3304 = vsub.s32 5, %v3303
        %v3305 = vrot.slane %v3278, %v3304
        %v3306 = vlaneseq
        %v3307 = vshrl.u32 %v3306, 7
        %v3308 = vsub.s32 6, %v3307
        %v3309 = vrot.slane %v3278, %v3308
        %v3310 = vlaneseq
        %v3311 = vshrl.u32 %v3310, 7
        %v3312 = vsub.s32 7, %v3311
        %v3313 = vrot.slane %v3278, %v3312
        %v3314 = vlaneseq
        %v3315 = vshrl.u32 %v3314, 7
        %v3316 = vsub.s32 0, %v3315
        %v3317 = vrot.slane %v3279, %v3316
        %v3318 = vlaneseq
        %v3319 = vshrl.u32 %v3318, 7
        %v3320 = vsub.s32 1, %v3319
        %v3321 = vrot.slane %v3279, %v3320
        %v3322 = vlaneseq
        %v3323 = vshrl.u32 %v3322, 7
        %v3324 = vsub.s32 2, %v3323
        %v3325 = vrot.slane %v3279, %v3324
        %v3326 = vlaneseq
        %v3327 = vshrl.u32 %v3326, 7
        %v3328 = vsub.s32 3, %v3327
        %v3329 = vrot.slane %v3279, %v3328
        %v3438 = vunpack.c.l.b16 %v3182
        %v3439 = vunpack.c.h.b16 %v3182
        %v3440 = vunpack.c.l.b16 %v3183
        %v3441 = vunpack.c.h.b16 %v3183
        %v3442 = vunpack.c.l.b16 %v3184
        %v3443 = vunpack.c.h.b16 %v3184
        %v3444 = vunpack.c.l.b16 %v3185
        %v3445 = vunpack.c.h.b16 %v3185
        %v3446 = vunpack.c.l.b16 %v3186
        %v3447 = vunpack.c.h.b16 %v3186
        %v3448 = vunpack.c.l.b16 %v3187
        %v3449 = vunpack.c.h.b16 %v3187
        %v3450 = vunpack.c.l.b16 %v3188
        %v3451 = vunpack.c.h.b16 %v3188
        %v3452 = vunpack.c.l.b16 %v3189
        %v3453 = vunpack.c.h.b16 %v3189
        %v3454 = vunpack.c.l.b16 %v3190
        %v3455 = vunpack.c.h.b16 %v3190
        %v3456 = vunpack.c.l.b16 %v3191
        %v3457 = vunpack.c.h.b16 %v3191
        %v3458 = vunpack.c.l.b16 %v3192
        %v3459 = vunpack.c.h.b16 %v3192
        %v3460 = vunpack.c.l.b16 %v3193
        %v3461 = vunpack.c.h.b16 %v3193
        %v3462 = vunpack.c.l.b16 %v3194
        %v3463 = vunpack.c.h.b16 %v3194
        %v3464 = vunpack.c.l.b16 %v3195
        %v3465 = vunpack.c.h.b16 %v3195
        %v3466 = vunpack.c.l.b16 %v3196
        %v3467 = vunpack.c.h.b16 %v3196
        %v3468 = vunpack.c.l.b16 %v3197
        %v3469 = vunpack.c.h.b16 %v3197
        %v3470 = vunpack.c.l.b16 %v3198
        %v3471 = vunpack.c.h.b16 %v3198
        %v3472 = vunpack.c.l.b16 %v3199
        %v3473 = vunpack.c.h.b16 %v3199
        %v3474 = vunpack.c.l.b16 %v3200
        %v3475 = vunpack.c.h.b16 %v3200
        %v3476 = vunpack.c.l.b16 %v3201
        %v3477 = vunpack.c.h.b16 %v3201
        %v3478 = vunpack.c.l.b16 %v3202
        %v3479 = vunpack.c.h.b16 %v3202
        %v3480 = vunpack.c.l.b16 %v3203
        %v3481 = vunpack.c.h.b16 %v3203
        %v3482 = vunpack.c.l.b16 %v3204
        %v3483 = vunpack.c.h.b16 %v3204
        %v3484 = vunpack.c.l.b16 %v3205
        %v3485 = vunpack.c.h.b16 %v3205
        %v3486 = vunpack.c.l.b16 %v3206
        %v3487 = vunpack.c.h.b16 %v3206
        %v3488 = vunpack.c.l.b16 %v3207
        %v3489 = vunpack.c.h.b16 %v3207
        %v3490 = vunpack.c.l.b16 %v3208
        %v3491 = vunpack.c.h.b16 %v3208
        %v3492 = vunpack.c.l.b16 %v3209
        %v3493 = vunpack.c.h.b16 %v3209
        %v3494 = vunpack.c.l.b16 %v3210
        %v3495 = vunpack.c.h.b16 %v3210
        %v3496 = vunpack.c.l.b16 %v3211
        %v3497 = vunpack.c.h.b16 %v3211
        %v3498 = vunpack.c.l.b16 %v3212
        %v3499 = vunpack.c.h.b16 %v3212
        %v3500 = vunpack.c.l.b16 %v3213
        %v3501 = vunpack.c.h.b16 %v3213
        %v3502 = vunpack.c.l.b16 %v3214
        %v3503 = vunpack.c.h.b16 %v3214
        %v3504 = vunpack.c.l.b16 %v3215
        %v3505 = vunpack.c.h.b16 %v3215
        %v3506 = vunpack.c.l.b16 %v3216
        %v3507 = vunpack.c.h.b16 %v3216
        %v3508 = vunpack.c.l.b16 %v3217
        %v3509 = vunpack.c.h.b16 %v3217
        %v3510 = vunpack.c.l.b16 %v3218
        %v3511 = vunpack.c.h.b16 %v3218
        %v3512 = vunpack.c.l.b16 %v3219
        %v3513 = vunpack.c.h.b16 %v3219
        %v3514 = vunpack.c.l.b16 %v3220
        %v3515 = vunpack.c.h.b16 %v3220
        %v3516 = vunpack.c.l.b16 %v3221
        %v3517 = vunpack.c.h.b16 %v3221
        %v3518 = vunpack.c.l.b16 %v3222
        %v3519 = vunpack.c.h.b16 %v3222
        %v3520 = vunpack.c.l.b16 %v3223
        %v3521 = vunpack.c.h.b16 %v3223
        %v3522 = vunpack.c.l.b16 %v3224
        %v3523 = vunpack.c.h.b16 %v3224
        %v3524 = vunpack.c.l.b16 %v3225
        %v3525 = vunpack.c.h.b16 %v3225
        %v3526 = vunpack.c.l.b16 %v3226
        %v3527 = vunpack.c.h.b16 %v3226
        %v3528 = vunpack.c.l.b16 %v3227
        %v3529 = vunpack.c.h.b16 %v3227
        %v3530 = vunpack.c.l.b16 %v3228
        %v3531 = vunpack.c.h.b16 %v3228
        %v3532 = vunpack.c.l.b16 %v3229
        %v3533 = vunpack.c.h.b16 %v3229
        %v3534 = vunpack.c.l.b16 %v3230
        %v3535 = vunpack.c.h.b16 %v3230
        %v3536 = vunpack.c.l.b16 %v3231
        %v3537 = vunpack.c.h.b16 %v3231
        %v3538 = vunpack.c.l.b16 %v3232
        %v3539 = vunpack.c.h.b16 %v3232
        %v3540 = vunpack.c.l.b16 %v3233
        %v3541 = vunpack.c.h.b16 %v3233
        %v3542 = vunpack.c.l.b16 %v3234
        %v3543 = vunpack.c.h.b16 %v3234
        %v3544 = vunpack.c.l.b16 %v3235
        %v3545 = vunpack.c.h.b16 %v3235
        %v3546 = vunpack.c.l.b16 %v3236
        %v3547 = vunpack.c.h.b16 %v3236
        %v3548 = vunpack.c.l.b16 %v3237
        %v3549 = vunpack.c.h.b16 %v3237
        %v3550 = vunpack.c.l.b16 %v3238
        %v3551 = vunpack.c.h.b16 %v3238
        %v3552 = vunpack.c.l.b16 %v3239
        %v3553 = vunpack.c.h.b16 %v3239
        %v3554 = vunpack.c.l.b16 %v3240
        %v3555 = vunpack.c.h.b16 %v3240
        %v3556 = vunpack.c.l.b16 %v3241
        %v3557 = vunpack.c.h.b16 %v3241
        %v3558 = vunpack.c.l.b16 %v3242
        %v3559 = vunpack.c.h.b16 %v3242
        %v3560 = vunpack.c.l.b16 %v3243
        %v3561 = vunpack.c.h.b16 %v3243
        %v3562 = vunpack.c.l.b16 %v3244
        %v3563 = vunpack.c.h.b16 %v3244
        %v3564 = vunpack.c.l.b16 %v3245
        %v3565 = vunpack.c.h.b16 %v3245
        %v3566 = vunpack.c.l.b16 %v3246
        %v3567 = vunpack.c.h.b16 %v3246
        %v3568 = vunpack.c.l.b16 %v3247
        %v3569 = vunpack.c.h.b16 %v3247
        %v3570 = vunpack.c.l.b16 %v3248
        %v3571 = vunpack.c.h.b16 %v3248
        %v3572 = vunpack.c.l.b16 %v3249
        %v3573 = vunpack.c.h.b16 %v3249
        %v3574 = vunpack.c.l.b16 %v3250
        %v3575 = vunpack.c.h.b16 %v3250
        %v3576 = vunpack.c.l.b16 %v3251
        %v3577 = vunpack.c.h.b16 %v3251
        %v3578 = vunpack.c.l.b16 %v3252
        %v3579 = vunpack.c.h.b16 %v3252
        %v3580 = vunpack.c.l.b16 %v3253
        %v3581 = vunpack.c.h.b16 %v3253
        %v3582 = vunpack.c.l.b16 %v3254
        %v3583 = vunpack.c.h.b16 %v3254
        %v3584 = vunpack.c.l.b16 %v3255
        %v3585 = vunpack.c.h.b16 %v3255
        %v3586 = vunpack.c.l.b16 %v3256
        %v3587 = vunpack.c.h.b16 %v3256
        %v3588 = vunpack.c.l.b16 %v3257
        %v3589 = vunpack.c.h.b16 %v3257
        %v3590 = vunpack.c.l.b16 %v3258
        %v3591 = vunpack.c.h.b16 %v3258
        %v3592 = vunpack.c.l.b16 %v3259
        %v3593 = vunpack.c.h.b16 %v3259
        %v3594 = vunpack.c.l.b16 %v3260
        %v3595 = vunpack.c.h.b16 %v3260
        %v3596 = vunpack.c.l.b16 %v3261
        %v3597 = vunpack.c.h.b16 %v3261
        %v3598 = vunpack.c.l.b16 %v3262
        %v3599 = vunpack.c.h.b16 %v3262
        %v3600 = vunpack.c.l.b16 %v3263
        %v3601 = vunpack.c.h.b16 %v3263
        %v3602 = vunpack.c.l.b16 %v3264
        %v3603 = vunpack.c.h.b16 %v3264
        %v3604 = vunpack.c.l.b16 %v3265
        %v3605 = vunpack.c.h.b16 %v3265
        %v3606 = vunpack.c.l.b16 %v3266
        %v3607 = vunpack.c.h.b16 %v3266
        %v3608 = vunpack.c.l.b16 %v3267
        %v3609 = vunpack.c.h.b16 %v3267
        %v3610 = vunpack.c.l.b16 %v3268
        %v3611 = vunpack.c.h.b16 %v3268
        %v3612 = vunpack.c.l.b16 %v3269
        %v3613 = vunpack.c.h.b16 %v3269
        %v3614 = vunpack.c.l.b16 %v3270
        %v3615 = vunpack.c.h.b16 %v3270
        %v3616 = vunpack.c.l.b16 %v3271
        %v3617 = vunpack.c.h.b16 %v3271
        %v3618 = vunpack.c.l.b16 %v3272
        %v3619 = vunpack.c.h.b16 %v3272
        %v3620 = vunpack.c.l.b16 %v3273
        %v3621 = vunpack.c.h.b16 %v3273
        %v3622 = vunpack.c.l.b16 %v3274
        %v3623 = vunpack.c.h.b16 %v3274
        %v3624 = vunpack.c.l.b16 %v3275
        %v3625 = vunpack.c.h.b16 %v3275
        %v3626 = vunpack.c.l.b16 %v3276
        %v3627 = vunpack.c.h.b16 %v3276
        %v3628 = vunpack.c.l.b16 %v3277
        %v3629 = vunpack.c.h.b16 %v3277
        %v3630 = vpack.c.b16 %v3450, %v3438
        %v3631 = vpack.c.b16 %v3451, %v3439
        %v3632 = vpack.c.b16 %v3452, %v3440
        %v3633 = vpack.c.b16 %v3453, %v3441
        %v3634 = vpack.c.b16 %v3454, %v3442
        %v3635 = vpack.c.b16 %v3455, %v3443
        %v3636 = vpack.c.b16 %v3456, %v3444
        %v3637 = vpack.c.b16 %v3457, %v3445
        %v3638 = vpack.c.b16 %v3458, %v3446
        %v3639 = vpack.c.b16 %v3459, %v3447
        %v3640 = vpack.c.b16 %v3460, %v3448
        %v3641 = vpack.c.b16 %v3461, %v3449
        %v3642 = vpack.c.b16 %v3474, %v3462
        %v3643 = vpack.c.b16 %v3475, %v3463
        %v3644 = vpack.c.b16 %v3476, %v3464
        %v3645 = vpack.c.b16 %v3477, %v3465
        %v3646 = vpack.c.b16 %v3478, %v3466
        %v3647 = vpack.c.b16 %v3479, %v3467
        %v3648 = vpack.c.b16 %v3480, %v3468
        %v3649 = vpack.c.b16 %v3481, %v3469
        %v3650 = vpack.c.b16 %v3482, %v3470
        %v3651 = vpack.c.b16 %v3483, %v3471
        %v3652 = vpack.c.b16 %v3484, %v3472
        %v3653 = vpack.c.b16 %v3485, %v3473
        %v3654 = vpack.c.b16 %v3498, %v3486
        %v3655 = vpack.c.b16 %v3499, %v3487
        %v3656 = vpack.c.b16 %v3500, %v3488
        %v3657 = vpack.c.b16 %v3501, %v3489
        %v3658 = vpack.c.b16 %v3502, %v3490
        %v3659 = vpack.c.b16 %v3503, %v3491
        %v3660 = vpack.c.b16 %v3504, %v3492
        %v3661 = vpack.c.b16 %v3505, %v3493
        %v3662 = vpack.c.b16 %v3506, %v3494
        %v3663 = vpack.c.b16 %v3507, %v3495
        %v3664 = vpack.c.b16 %v3508, %v3496
        %v3665 = vpack.c.b16 %v3509, %v3497
        %v3666 = vpack.c.b16 %v3522, %v3510
        %v3667 = vpack.c.b16 %v3523, %v3511
        %v3668 = vpack.c.b16 %v3524, %v3512
        %v3669 = vpack.c.b16 %v3525, %v3513
        %v3670 = vpack.c.b16 %v3526, %v3514
        %v3671 = vpack.c.b16 %v3527, %v3515
        %v3672 = vpack.c.b16 %v3528, %v3516
        %v3673 = vpack.c.b16 %v3529, %v3517
        %v3674 = vpack.c.b16 %v3530, %v3518
        %v3675 = vpack.c.b16 %v3531, %v3519
        %v3676 = vpack.c.b16 %v3532, %v3520
        %v3677 = vpack.c.b16 %v3533, %v3521
        %v3678 = vpack.c.b16 %v3546, %v3534
        %v3679 = vpack.c.b16 %v3547, %v3535
        %v3680 = vpack.c.b16 %v3548, %v3536
        %v3681 = vpack.c.b16 %v3549, %v3537
        %v3682 = vpack.c.b16 %v3550, %v3538
        %v3683 = vpack.c.b16 %v3551, %v3539
        %v3684 = vpack.c.b16 %v3552, %v3540
        %v3685 = vpack.c.b16 %v3553, %v3541
        %v3686 = vpack.c.b16 %v3554, %v3542
        %v3687 = vpack.c.b16 %v3555, %v3543
        %v3688 = vpack.c.b16 %v3556, %v3544
        %v3689 = vpack.c.b16 %v3557, %v3545
        %v3690 = vpack.c.b16 %v3570, %v3558
        %v3691 = vpack.c.b16 %v3571, %v3559
        %v3692 = vpack.c.b16 %v3572, %v3560
        %v3693 = vpack.c.b16 %v3573, %v3561
        %v3694 = vpack.c.b16 %v3574, %v3562
        %v3695 = vpack.c.b16 %v3575, %v3563
        %v3696 = vpack.c.b16 %v3576, %v3564
        %v3697 = vpack.c.b16 %v3577, %v3565
        %v3698 = vpack.c.b16 %v3578, %v3566
        %v3699 = vpack.c.b16 %v3579, %v3567
        %v3700 = vpack.c.b16 %v3580, %v3568
        %v3701 = vpack.c.b16 %v3581, %v3569
        %v3702 = vpack.c.b16 %v3594, %v3582
        %v3703 = vpack.c.b16 %v3595, %v3583
        %v3704 = vpack.c.b16 %v3596, %v3584
        %v3705 = vpack.c.b16 %v3597, %v3585
        %v3706 = vpack.c.b16 %v3598, %v3586
        %v3707 = vpack.c.b16 %v3599, %v3587
        %v3708 = vpack.c.b16 %v3600, %v3588
        %v3709 = vpack.c.b16 %v3601, %v3589
        %v3710 = vpack.c.b16 %v3602, %v3590
        %v3711 = vpack.c.b16 %v3603, %v3591
        %v3712 = vpack.c.b16 %v3604, %v3592
        %v3713 = vpack.c.b16 %v3605, %v3593
        %v3714 = vpack.c.b16 %v3618, %v3606
        %v3715 = vpack.c.b16 %v3619, %v3607
        %v3716 = vpack.c.b16 %v3620, %v3608
        %v3717 = vpack.c.b16 %v3621, %v3609
        %v3718 = vpack.c.b16 %v3622, %v3610
        %v3719 = vpack.c.b16 %v3623, %v3611
        %v3720 = vpack.c.b16 %v3624, %v3612
        %v3721 = vpack.c.b16 %v3625, %v3613
        %v3722 = vpack.c.b16 %v3626, %v3614
        %v3723 = vpack.c.b16 %v3627, %v3615
        %v3724 = vpack.c.b16 %v3628, %v3616
        %v3725 = vpack.c.b16 %v3629, %v3617
        %3822 = vmatprep.subr.bf16.mxu0 %v3631
        %3823 = vmatpush1.bf16.msra.mxu0 %v3630
        %3824 = vmatprep.subr.bf16.mxu0 %v3643
        %3825 = vmatpush1.bf16.msra.mxu0 %v3642
        %3826 = vmatprep.subr.bf16.mxu0 %v3655
        %3827 = vmatpush1.bf16.msra.mxu0 %v3654
        %3828 = vmatprep.subr.bf16.mxu0 %v3667
        %3829 = vmatpush1.bf16.msra.mxu0 %v3666
        %3830 = vmatprep.subr.bf16.mxu0 %v3679
        %3831 = vmatpush1.bf16.msra.mxu0 %v3678
        %3832 = vmatprep.subr.bf16.mxu0 %v3691
        %3833 = vmatpush1.bf16.msra.mxu0 %v3690
        %3834 = vmatprep.subr.bf16.mxu0 %v3703
        %3835 = vmatpush1.bf16.msra.mxu0 %v3702
        %3836 = vmatprep.subr.bf16.mxu0 %v3715
        %3837 = vmatpush1.bf16.msra.mxu0 %v3714
        %3838 = vmatprep.subr.bf16.mxu0 0
        %3839 = vmatpush1.bf16.msra.mxu0 0
        %3840 = vmatprep.subr.bf16.mxu0 0
        %3841 = vmatpush1.bf16.msra.mxu0 0
        %3842 = vmatprep.subr.bf16.mxu0 0
        %3843 = vmatpush1.bf16.msra.mxu0 0
        %3844 = vmatprep.subr.bf16.mxu0 0
        %3845 = vmatpush1.bf16.msra.mxu0 0
        %3846 = vmatprep.subr.bf16.mxu0 0
        %3847 = vmatpush1.bf16.msra.mxu0 0
        %3848 = vmatprep.subr.bf16.mxu0 0
        %3849 = vmatpush1.bf16.msra.mxu0 0
        %3850 = vmatprep.subr.bf16.mxu0 0
        %3851 = vmatpush1.bf16.msra.mxu0 0
        %3852 = vmatprep.subr.bf16.mxu0 0
        %3853 = vmatpush1.bf16.msra.mxu0 0
        %3854 = vmatprep.mubr.bf16.mxu0 0
        %3855 = vmatmul.mubr.bf16.gmra.mrb[0].mxu0 %v3181
        %v3856 = vpop.f32.mrb[0].mxu0
        %v3857 = vadd.f32 %v3285, %v3856
        %v3858 = vpop.f32.mrb[0].mxu0
        %v3859 = vadd.f32 %v3289, %v3858
        %v3860 = vpop.f32.mrb[0].mxu0
        %v3861 = vpop.f32.mrb[0].mxu0
        %3862 = vdwg.mxu0
        %3863 = vmatprep.subr.bf16.mxu0 %v3633
        %3864 = vmatpush1.bf16.msra.mxu0 %v3632
        %3865 = vmatprep.subr.bf16.mxu0 %v3645
        %3866 = vmatpush1.bf16.msra.mxu0 %v3644
        %3867 = vmatprep.subr.bf16.mxu0 %v3657
        %3868 = vmatpush1.bf16.msra.mxu0 %v3656
        %3869 = vmatprep.subr.bf16.mxu0 %v3669
        %3870 = vmatpush1.bf16.msra.mxu0 %v3668
        %3871 = vmatprep.subr.bf16.mxu0 %v3681
        %3872 = vmatpush1.bf16.msra.mxu0 %v3680
        %3873 = vmatprep.subr.bf16.mxu0 %v3693
        %3874 = vmatpush1.bf16.msra.mxu0 %v3692
        %3875 = vmatprep.subr.bf16.mxu0 %v3705
        %3876 = vmatpush1.bf16.msra.mxu0 %v3704
        %3877 = vmatprep.subr.bf16.mxu0 %v3717
        %3878 = vmatpush1.bf16.msra.mxu0 %v3716
        %3879 = vmatprep.subr.bf16.mxu0 0
        %3880 = vmatpush1.bf16.msra.mxu0 0
        %3881 = vmatprep.subr.bf16.mxu0 0
        %3882 = vmatpush1.bf16.msra.mxu0 0
        %3883 = vmatprep.subr.bf16.mxu0 0
        %3884 = vmatpush1.bf16.msra.mxu0 0
        %3885 = vmatprep.subr.bf16.mxu0 0
        %3886 = vmatpush1.bf16.msra.mxu0 0
        %3887 = vmatprep.subr.bf16.mxu0 0
        %3888 = vmatpush1.bf16.msra.mxu0 0
        %3889 = vmatprep.subr.bf16.mxu0 0
        %3890 = vmatpush1.bf16.msra.mxu0 0
        %3891 = vmatprep.subr.bf16.mxu0 0
        %3892 = vmatpush1.bf16.msra.mxu0 0
        %3893 = vmatprep.subr.bf16.mxu0 0
        %3894 = vmatpush1.bf16.msra.mxu0 0
        %3895 = vmatprep.mubr.bf16.mxu0 0
        %3896 = vmatmul.mubr.bf16.gmra.mrb[0].mxu0 %v3181
        %v3897 = vpop.f32.mrb[0].mxu0
        %v3898 = vadd.f32 %v3293, %v3897
        %v3899 = vpop.f32.mrb[0].mxu0
        %v3900 = vadd.f32 %v3297, %v3899
        %v3901 = vpop.f32.mrb[0].mxu0
        %v3902 = vpop.f32.mrb[0].mxu0
        %3903 = vdwg.mxu0
        %3904 = vmatprep.subr.bf16.mxu0 %v3635
        %3905 = vmatpush1.bf16.msra.mxu0 %v3634
        %3906 = vmatprep.subr.bf16.mxu0 %v3647
        %3907 = vmatpush1.bf16.msra.mxu0 %v3646
        %3908 = vmatprep.subr.bf16.mxu0 %v3659
        %3909 = vmatpush1.bf16.msra.mxu0 %v3658
        %3910 = vmatprep.subr.bf16.mxu0 %v3671
        %3911 = vmatpush1.bf16.msra.mxu0 %v3670
        %3912 = vmatprep.subr.bf16.mxu0 %v3683
        %3913 = vmatpush1.bf16.msra.mxu0 %v3682
        %3914 = vmatprep.subr.bf16.mxu0 %v3695
        %3915 = vmatpush1.bf16.msra.mxu0 %v3694
        %3916 = vmatprep.subr.bf16.mxu0 %v3707
        %3917 = vmatpush1.bf16.msra.mxu0 %v3706
        %3918 = vmatprep.subr.bf16.mxu0 %v3719
        %3919 = vmatpush1.bf16.msra.mxu0 %v3718
        %3920 = vmatprep.subr.bf16.mxu0 0
        %3921 = vmatpush1.bf16.msra.mxu0 0
        %3922 = vmatprep.subr.bf16.mxu0 0
        %3923 = vmatpush1.bf16.msra.mxu0 0
        %3924 = vmatprep.subr.bf16.mxu0 0
        %3925 = vmatpush1.bf16.msra.mxu0 0
        %3926 = vmatprep.subr.bf16.mxu0 0
        %3927 = vmatpush1.bf16.msra.mxu0 0
        %3928 = vmatprep.subr.bf16.mxu0 0
        %3929 = vmatpush1.bf16.msra.mxu0 0
        %3930 = vmatprep.subr.bf16.mxu0 0
        %3931 = vmatpush1.bf16.msra.mxu0 0
        %3932 = vmatprep.subr.bf16.mxu0 0
        %3933 = vmatpush1.bf16.msra.mxu0 0
        %3934 = vmatprep.subr.bf16.mxu0 0
        %3935 = vmatpush1.bf16.msra.mxu0 0
        %3936 = vmatprep.mubr.bf16.mxu0 0
        %3937 = vmatmul.mubr.bf16.gmra.mrb[0].mxu0 %v3181
        %v3938 = vpop.f32.mrb[0].mxu0
        %v3939 = vadd.f32 %v3301, %v3938
        %v3940 = vpop.f32.mrb[0].mxu0
        %v3941 = vadd.f32 %v3305, %v3940
        %v3942 = vpop.f32.mrb[0].mxu0
        %v3943 = vpop.f32.mrb[0].mxu0
        %3944 = vdwg.mxu0
        %3945 = vmatprep.subr.bf16.mxu0 %v3637
        %3946 = vmatpush1.bf16.msra.mxu0 %v3636
        %3947 = vmatprep.subr.bf16.mxu0 %v3649
        %3948 = vmatpush1.bf16.msra.mxu0 %v3648
        %3949 = vmatprep.subr.bf16.mxu0 %v3661
        %3950 = vmatpush1.bf16.msra.mxu0 %v3660
        %3951 = vmatprep.subr.bf16.mxu0 %v3673
        %3952 = vmatpush1.bf16.msra.mxu0 %v3672
        %3953 = vmatprep.subr.bf16.mxu0 %v3685
        %3954 = vmatpush1.bf16.msra.mxu0 %v3684
        %3955 = vmatprep.subr.bf16.mxu0 %v3697
        %3956 = vmatpush1.bf16.msra.mxu0 %v3696
        %3957 = vmatprep.subr.bf16.mxu0 %v3709
        %3958 = vmatpush1.bf16.msra.mxu0 %v3708
        %3959 = vmatprep.subr.bf16.mxu0 %v3721
        %3960 = vmatpush1.bf16.msra.mxu0 %v3720
        %3961 = vmatprep.subr.bf16.mxu0 0
        %3962 = vmatpush1.bf16.msra.mxu0 0
        %3963 = vmatprep.subr.bf16.mxu0 0
        %3964 = vmatpush1.bf16.msra.mxu0 0
        %3965 = vmatprep.subr.bf16.mxu0 0
        %3966 = vmatpush1.bf16.msra.mxu0 0
        %3967 = vmatprep.subr.bf16.mxu0 0
        %3968 = vmatpush1.bf16.msra.mxu0 0
        %3969 = vmatprep.subr.bf16.mxu0 0
        %3970 = vmatpush1.bf16.msra.mxu0 0
        %3971 = vmatprep.subr.bf16.mxu0 0
        %3972 = vmatpush1.bf16.msra.mxu0 0
        %3973 = vmatprep.subr.bf16.mxu0 0
        %3974 = vmatpush1.bf16.msra.mxu0 0
        %3975 = vmatprep.subr.bf16.mxu0 0
        %3976 = vmatpush1.bf16.msra.mxu0 0
        %3977 = vmatprep.mubr.bf16.mxu0 0
        %3978 = vmatmul.mubr.bf16.gmra.mrb[0].mxu0 %v3181
        %v3979 = vpop.f32.mrb[0].mxu0
        %v3980 = vadd.f32 %v3309, %v3979
        %v3981 = vpop.f32.mrb[0].mxu0
        %v3982 = vadd.f32 %v3313, %v3981
        %v3983 = vpop.f32.mrb[0].mxu0
        %v3984 = vpop.f32.mrb[0].mxu0
        %3985 = vdwg.mxu0
        %3986 = vmatprep.subr.bf16.mxu0 %v3639
        %3987 = vmatpush1.bf16.msra.mxu0 %v3638
        %3988 = vmatprep.subr.bf16.mxu0 %v3651
        %3989 = vmatpush1.bf16.msra.mxu0 %v3650
        %3990 = vmatprep.subr.bf16.mxu0 %v3663
        %3991 = vmatpush1.bf16.msra.mxu0 %v3662
        %3992 = vmatprep.subr.bf16.mxu0 %v3675
        %3993 = vmatpush1.bf16.msra.mxu0 %v3674
        %3994 = vmatprep.subr.bf16.mxu0 %v3687
        %3995 = vmatpush1.bf16.msra.mxu0 %v3686
        %3996 = vmatprep.subr.bf16.mxu0 %v3699
        %3997 = vmatpush1.bf16.msra.mxu0 %v3698
        %3998 = vmatprep.subr.bf16.mxu0 %v3711
        %3999 = vmatpush1.bf16.msra.mxu0 %v3710
        %4000 = vmatprep.subr.bf16.mxu0 %v3723
        %4001 = vmatpush1.bf16.msra.mxu0 %v3722
        %4002 = vmatprep.subr.bf16.mxu0 0
        %4003 = vmatpush1.bf16.msra.mxu0 0
        %4004 = vmatprep.subr.bf16.mxu0 0
        %4005 = vmatpush1.bf16.msra.mxu0 0
        %4006 = vmatprep.subr.bf16.mxu0 0
        %4007 = vmatpush1.bf16.msra.mxu0 0
        %4008 = vmatprep.subr.bf16.mxu0 0
        %4009 = vmatpush1.bf16.msra.mxu0 0
        %4010 = vmatprep.subr.bf16.mxu0 0
        %4011 = vmatpush1.bf16.msra.mxu0 0
        %4012 = vmatprep.subr.bf16.mxu0 0
        %4013 = vmatpush1.bf16.msra.mxu0 0
        %4014 = vmatprep.subr.bf16.mxu0 0
        %4015 = vmatpush1.bf16.msra.mxu0 0
        %4016 = vmatprep.subr.bf16.mxu0 0
        %4017 = vmatpush1.bf16.msra.mxu0 0
        %4018 = vmatprep.mubr.bf16.mxu0 0
        %4019 = vmatmul.mubr.bf16.gmra.mrb[0].mxu0 %v3181
        %v4020 = vpop.f32.mrb[0].mxu0
        %v4021 = vadd.f32 %v3317, %v4020
        %v4022 = vpop.f32.mrb[0].mxu0
        %v4023 = vadd.f32 %v3321, %v4022
        %v4024 = vpop.f32.mrb[0].mxu0
        %v4025 = vpop.f32.mrb[0].mxu0
        %4026 = vdwg.mxu0
        %4027 = vmatprep.subr.bf16.mxu0 %v3641
        %4028 = vmatpush1.bf16.msra.mxu0 %v3640
        %4029 = vmatprep.subr.bf16.mxu0 %v3653
        %4030 = vmatpush1.bf16.msra.mxu0 %v3652
        %4031 = vmatprep.subr.bf16.mxu0 %v3665
        %4032 = vmatpush1.bf16.msra.mxu0 %v3664
        %4033 = vmatprep.subr.bf16.mxu0 %v3677
        %4034 = vmatpush1.bf16.msra.mxu0 %v3676
        %4035 = vmatprep.subr.bf16.mxu0 %v3689
        %4036 = vmatpush1.bf16.msra.mxu0 %v3688
        %4037 = vmatprep.subr.bf16.mxu0 %v3701
        %4038 = vmatpush1.bf16.msra.mxu0 %v3700
        %4039 = vmatprep.subr.bf16.mxu0 %v3713
        %4040 = vmatpush1.bf16.msra.mxu0 %v3712
        %4041 = vmatprep.subr.bf16.mxu0 %v3725
        %4042 = vmatpush1.bf16.msra.mxu0 %v3724
        %4043 = vmatprep.subr.bf16.mxu0 0
        %4044 = vmatpush1.bf16.msra.mxu0 0
        %4045 = vmatprep.subr.bf16.mxu0 0
        %4046 = vmatpush1.bf16.msra.mxu0 0
        %4047 = vmatprep.subr.bf16.mxu0 0
        %4048 = vmatpush1.bf16.msra.mxu0 0
        %4049 = vmatprep.subr.bf16.mxu0 0
        %4050 = vmatpush1.bf16.msra.mxu0 0
        %4051 = vmatprep.subr.bf16.mxu0 0
        %4052 = vmatpush1.bf16.msra.mxu0 0
        %4053 = vmatprep.subr.bf16.mxu0 0
        %4054 = vmatpush1.bf16.msra.mxu0 0
        %4055 = vmatprep.subr.bf16.mxu0 0
        %4056 = vmatpush1.bf16.msra.mxu0 0
        %4057 = vmatprep.subr.bf16.mxu0 0
        %4058 = vmatpush1.bf16.msra.mxu0 0
        %4059 = vmatprep.mubr.bf16.mxu0 0
        %4060 = vmatmul.mubr.bf16.gmra.mrb[0].mxu0 %v3181
        %v4061 = vpop.f32.mrb[0].mxu0
        %v4062 = vadd.f32 %v3325, %v4061
        %v4063 = vpop.f32.mrb[0].mxu0
        %v4064 = vadd.f32 %v3329, %v4063
        %v4065 = vpop.f32.mrb[0].mxu0
        %v4066 = vpop.f32.mrb[0].mxu0
        %4067 = vdwg.mxu0
        %v4068 = vtanh.pop %v3857
        %v4069 = vtanh.pop %v3859
        %v4070 = vtanh.pop %v3898
        %v4071 = vtanh.pop %v3900
        %v4072 = vtanh.pop %v3939
        %v4073 = vtanh.pop %v3941
        %v4074 = vtanh.pop %v3980
        %v4075 = vtanh.pop %v3982
        %v4076 = vtanh.pop %v4021
        %v4077 = vtanh.pop %v4023
        %v4078 = vtanh.pop %v4062
        %v4079 = vtanh.pop %v4064
        %v4080 = vmul.f32 %v4068, 0.03137255
        %v4081 = vmul.f32 %v4069, 0.03137255
        %v4082 = vmul.f32 %v4070, 0.03137255
        %v4083 = vmul.f32 %v4071, 0.03137255
        %v4084 = vmul.f32 %v4072, 0.03137255
        %v4085 = vmul.f32 %v4073, 0.03137255
        %v4086 = vmul.f32 %v4074, 0.03137255
        %v4087 = vmul.f32 %v4075, 0.03137255
        %v4088 = vmul.f32 %v4076, 0.03137255
        %v4089 = vmul.f32 %v4077, 0.03137255
        %v4090 = vmul.f32 %v4078, 0.03137255
        %v4091 = vmul.f32 %v4079, 0.03137255
        %v4104 = vcombine.low %v4080, %v4081
        %v4105 = vcombine.low %v4082, %v4083
        %v4107 = vunpack.c.l.s4 1983009808
        %v4108 = vunpack.c.0.s8 %v4107
        %v4109 = vlaneseq
        %v4110 = vshrl.u32 %v4109, 7
        %v4111 = vsub.s32 %v4108, %v4110
        %v4112 = vrot.slane %v4104, %v4111
        %v4114 = vunpack.c.l.s4 1983009808
        %v4115 = vunpack.c.0.s8 %v4114
        %v4116 = vlaneseq
        %v4117 = vshrl.u32 %v4116, 7
        %v4118 = vsub.s32 %v4115, %v4117
        %v4119 = vrot.slane %v4105, %v4118
        %v4120 = vcombine.low %v4112, %v4119
        %v4121 = vcombine.low %v4084, %v4085
        %v4122 = vcombine.low %v4086, %v4087
        %v4124 = vunpack.c.l.s4 1983009808
        %v4125 = vunpack.c.0.s8 %v4124
        %v4126 = vlaneseq
        %v4127 = vshrl.u32 %v4126, 7
        %v4128 = vsub.s32 %v4125, %v4127
        %v4129 = vrot.slane %v4121, %v4128
        %v4131 = vunpack.c.l.s4 1983009808
        %v4132 = vunpack.c.0.s8 %v4131
        %v4133 = vlaneseq
        %v4134 = vshrl.u32 %v4133, 7
        %v4135 = vsub.s32 %v4132, %v4134
        %v4136 = vrot.slane %v4122, %v4135
        %v4137 = vcombine.low %v4129, %v4136
        %v4138 = vcombine.low %v4088, %v4089
        %v4139 = vcombine.low %v4090, %v4091
        %v4141 = vunpack.c.l.s4 1983009808
        %v4142 = vunpack.c.0.s8 %v4141
        %v4143 = vlaneseq
        %v4144 = vshrl.u32 %v4143, 7
        %v4145 = vsub.s32 %v4142, %v4144
        %v4146 = vrot.slane %v4138, %v4145
        %v4148 = vunpack.c.l.s4 1983009808
        %v4149 = vunpack.c.0.s8 %v4148
        %v4150 = vlaneseq
        %v4151 = vshrl.u32 %v4150, 7
        %v4152 = vsub.s32 %v4149, %v4151
        %v4153 = vrot.slane %v4139, %v4152
        %v4154 = vcombine.low %v4146, %v4153
        %4158 = vst [vmem:[%s678] sm:$0xff] %v4120
        %4159 = vst [vmem:[%s678 + $0x8] sm:$0xff] %v4137
        %4160 = vst [vmem:[%s678 + $0x10] sm:$0xff] %v4154
        %s4161 = sand.u32 %s413, 1
        %s4162 = scalar_lea.sflag [#allocation4], %s4161
        %s4163 = sand.u32 %s413, 1
        %s4164 = smul.addr %s4163, 24
        %s4165 = scalar_lea.vmem [#allocation16], %s4164
        // Predicated region
        $region121: #{tpu_custom_call.1} parent=87 // pred_check
          %p4166 = pneg %p423
        $region122: #{tpu_custom_call.1} parent=87 // pred_check_branch
          %4168 = sbr.rel (%p4166) target = $region124
        $region123: #{tpu_custom_call.1} parent=87 // pred_region
          %s4169 = smul.u32 12, %s38
          %s4171 = ssub.s32 384, 384
          %4172 = vsyncadd %s4162, %s4171
          %s4173 = smul.addr %s4169, 32
          %s4174 = scalar_lea.hbm %s17, %s4173
          %s4176 = sshll.u32 %s4165, 4
          %s4177 = int_to_ptr.vmem [resolvable:$true] %s4176
          %4179 = dma.vmem_to_hbm [thread:$0]  %s4177, 384, %s4174, %s4162
        $region124: #{tpu_custom_call.1} parent=87 // pred_fallthru
          _
      $region88: #{tpu_custom_call.1} parent=5 // pred_fallthru
        _
      %p4180 = scmp.le.s32.totalorder 2, %s33
      // Predicated region
      $region125: #{tpu_custom_call.1} parent=5 // pred_check
        %p4181 = pneg %p4180
      $region126: #{tpu_custom_call.1} parent=5 // pred_check_branch
        %4183 = sbr.rel (%p4181) target = $region128
      $region127: #{tpu_custom_call.1} parent=5 // pred_region
        %s4184 = ssub.s32 %s33, 2
        // Predicated region
        $region129: #{tpu_custom_call.1} parent=127 // pred_check
          %p4185 = pneg %p429
        $region130: #{tpu_custom_call.1} parent=127 // pred_check_branch
          %4187 = sbr.rel (%p4185) target = $region132
        $region131: #{tpu_custom_call.1} parent=127 // pred_region
          %s4188 = sand.u32 %s414, 1
          %s4189 = scalar_lea.sflag [#allocation4], %s4188
          %s4190 = sand.u32 %s414, 1
          %s4191 = smul.addr %s4190, 24
          %s4192 = scalar_lea.vmem [#allocation16], %s4191
          %4193 = dma.done %s4189, 384
        $region132: #{tpu_custom_call.1} parent=127 // pred_fallthru
          _
      $region128: #{tpu_custom_call.1} parent=5 // pred_fallthru
        _
    $region6: #{tpu_custom_call.1} parent=1 // loop_footer
      %s37 = sadd.s32 1, %s33
    $region7: #{tpu_custom_call.1} parent=1 // loop_footer_branch
      %32 = sbr.rel target = $region3
    $region8: #{tpu_custom_call.1} parent=1 // loop_exit
      _
    %4194 = vsyncpa [#allocation3], 1
    %s4195 = scalar_lea.sflag [#allocation3], 1
    %4196 = vsyncpa %s4195, 1
    %4197 = vsyncpa [#allocation6], 1
    %4198 = vsyncpa [#allocation9], 1
    %4199 = vsyncpa [#allocation12], 1
    %4200 = vsyncpa [#allocation15], 1
    %s4201 = scalar_lea.sflag [#allocation15], 1
    %4202 = vsyncpa %s4201, 1
    %4203 = vsyncpa [#allocation4], 1
    %s4204 = scalar_lea.sflag [#allocation4], 1
    %4205 = vsyncpa %s4204, 1

</llo_original>
